<compile_context>
chip_gen: v5e
topology: v5e:2x2
jax: 0.10.0
libtpu: 0.0.40
codegen_flags: <defaults>
</compile_context>

<pallas_src>
import functools

import jax
import jax.numpy as jnp
import numpy as np
from jax.experimental import pallas as pl
from jax.experimental.pallas import tpu as pltpu


# ---------------------------------------------------------------------------
# Single fused forward kernel (per batch element)
# ---------------------------------------------------------------------------
def _gnn_fused_kernel(adj_ref, x_ref,
                      wr1_ref, br1_ref, wr2_ref, br2_ref,
                      wc1_ref, bc1_ref, wo1_ref, bo1_ref,
                      wc2_ref, bc2_ref, wo2_ref, bo2_ref,
                      wc3_ref, bc3_ref, wo3_ref, bo3_ref,
                      wf_ref, bf_ref,
                      o_ref, *, K):
    f32 = jnp.float32
    a = adj_ref[0].astype(f32)                                    # (N, N)
    N = a.shape[0]

    # L = D^{-1/2} (A + I) D^{-1/2}  with D from row degrees (as in PyTorch ref)
    row = jax.lax.broadcasted_iota(jnp.int32, (N, N), 0)
    col = jax.lax.broadcasted_iota(jnp.int32, (N, N), 1)
    a_hat = a + (row == col).astype(f32)
    d = jax.lax.rsqrt(jnp.sum(a_hat, axis=1, keepdims=True))      # (N, 1)
    L = d * a_hat * jnp.transpose(d)                              # (N, N)

    # Legendre polynomial stack P_0..P_K, kept resident (never touches HBM).
    Ps = [jnp.ones_like(L), L]
    for k in range(2, K + 1):
        Ps.append(((2 * k - 1) * L * Ps[-1] - (k - 1) * Ps[-2]) / k)
    P_stack = jnp.concatenate(Ps, axis=0)                         # ((K+1)*N, N)

    def linear(h, w_ref, b_ref):
        return jnp.dot(h, w_ref[...], preferred_element_type=f32) + b_ref[...]

    def mh_layer(h, wc_ref, bc_ref, wo_ref, bo_ref):
        # concat_h concat_k (P_k @ h) @ W_{h,k} + b  == one stacked matmul plus
        # K+1 accumulating dots against the pre-concatenated head weights.
        fin = h.shape[1]
        hs = jnp.dot(P_stack, h, preferred_element_type=f32)      # ((K+1)*N, fin)
        acc = bc_ref[...]                                         # (1, Fout)
        for k in range(K + 1):
            acc = acc + jnp.dot(hs[k * N:(k + 1) * N, :],
                                wc_ref[k * fin:(k + 1) * fin, :],
                                preferred_element_type=f32)
        return linear(acc, wo_ref, bo_ref)

    x = x_ref[0].astype(f32)                                      # (N, Fin)

    res1 = linear(x, wr1_ref, br1_ref)
    h = jnp.maximum(mh_layer(x, wc1_ref, bc1_ref, wo1_ref, bo1_ref) + res1, 0.0)
    res2 = linear(h, wr2_ref, br2_ref)
    h = jnp.maximum(mh_layer(h, wc2_ref, bc2_ref, wo2_ref, bo2_ref) + res2, 0.0)
    h = mh_layer(h, wc3_ref, bc3_ref, wo3_ref, bo3_ref)
    out = linear(h, wf_ref, bf_ref)                               # (N, Fout)
    o_ref[0] = jnp.mean(out, axis=0, keepdims=True).astype(o_ref.dtype)


# ---------------------------------------------------------------------------
# Parameter init (deterministic, mirrors nn.Linear shapes; weights N(0, 0.01))
# Weights are stored transposed: Wt has shape (fan_in, fan_out).
# ---------------------------------------------------------------------------
def init_linear(key, fin, fout):
    kw, kb = jax.random.split(key)
    W = 0.01 * jax.random.normal(kw, (fout, fin), jnp.float32)
    bound = 1.0 / float(np.sqrt(fin))
    b = jax.random.uniform(kb, (fout,), jnp.float32, -bound, bound)
    return {"Wt": jnp.transpose(W), "b": b[None, :]}


def init_multihead(key, fin, fout, K, heads):
    keys = jax.random.split(key, heads + 1)
    return {
        "heads": [init_linear(keys[i], fin * (K + 1), fout // heads)
                  for i in range(heads)],
        "out": init_linear(keys[-1], fout, fout),
    }


def init_gnn_params(key, fin, hidden, fout, K, heads):
    ks = jax.random.split(key, 6)
    return {
        "lgc1": init_multihead(ks[0], fin, hidden, K, heads),
        "lgc2": init_multihead(ks[1], hidden, hidden, K, heads),
        "lgc3": init_multihead(ks[2], hidden, hidden, K, heads),
        "out": init_linear(ks[3], hidden, fout),
        "res1": init_linear(ks[4], fin, hidden),
        "res2": init_linear(ks[5], hidden, hidden),
    }


# ---------------------------------------------------------------------------
# Model forward: one pallas_call over the batch
# ---------------------------------------------------------------------------
def gnn_forward(params, x, adj, K, object_ids=None):
    # object_ids is accepted for signature parity but unused by the reference forward.
    B, N, Fin = x.shape
    Fout = params["out"]["Wt"].shape[1]

    def cat_heads(p):
        # Pre-concatenate per-head weights: one ((K+1)*Fin, hidden) matrix.
        wc = jnp.concatenate([hp["Wt"] for hp in p["heads"]], axis=1)
        bc = jnp.concatenate([hp["b"] for hp in p["heads"]], axis=1)
        return wc, bc, p["out"]["Wt"], p["out"]["b"]

    wc1, bc1, wo1, bo1 = cat_heads(params["lgc1"])
    wc2, bc2, wo2, bo2 = cat_heads(params["lgc2"])
    wc3, bc3, wo3, bo3 = cat_heads(params["lgc3"])

    weights = [
        params["res1"]["Wt"], params["res1"]["b"],
        params["res2"]["Wt"], params["res2"]["b"],
        wc1, bc1, wo1, bo1,
        wc2, bc2, wo2, bo2,
        wc3, bc3, wo3, bo3,
        params["out"]["Wt"], params["out"]["b"],
    ]

    def w_spec(w):
        nd = w.ndim
        return pl.BlockSpec(w.shape, lambda b, _nd=nd: (0,) * _nd)

    kernel = functools.partial(_gnn_fused_kernel, K=K)
    out = pl.pallas_call(
        kernel,
        out_shape=jax.ShapeDtypeStruct((B, 1, Fout), x.dtype),
        grid=(B,),
        in_specs=[pl.BlockSpec((1, N, N), lambda b: (b, 0, 0)),
                  pl.BlockSpec((1, N, Fin), lambda b: (b, 0, 0))]
                 + [w_spec(w) for w in weights],
        out_specs=pl.BlockSpec((1, 1, Fout), lambda b: (b, 0, 0)),
        compiler_params=pltpu.CompilerParams(
            dimension_semantics=("parallel",)),
    )(adj, x, *weights)
    return out[:, 0, :]


# ---------------------------------------------------------------------------
# Pure-JAX reference (mirrors the PyTorch forward) for a correctness check
# ---------------------------------------------------------------------------
def reference_forward(params, x, adj, K):
    B, N, _ = adj.shape
    A_hat = adj + jnp.eye(N, dtype=adj.dtype)[None]
    d = jnp.sum(A_hat, axis=2) ** -0.5
    D = jax.vmap(jnp.diag)(d)
    L = D @ A_hat @ D
    P = [jnp.ones_like(L), L]
    for k in range(2, K + 1):
        P.append(((2 * k - 1) * L * P[-1] - (k - 1) * P[-2]) / k)
    LP = jnp.stack(P, axis=-1)                                    # (B,N,N,K+1)

    def lin(p, h):
        return h @ p["Wt"] + p["b"]

    def conv(p, h):
        out = jnp.concatenate([LP[..., k] @ h for k in range(K + 1)], axis=2)
        return lin(p, out)

    def mh(p, h):
        out = jnp.concatenate([conv(hp, h) for hp in p["heads"]], axis=-1)
        return lin(p["out"], out)

    res1 = lin(params["res1"], x)
    h = jax.nn.relu(mh(params["lgc1"], x) + res1)
    res2 = lin(params["res2"], h)
    h = jax.nn.relu(mh(params["lgc2"], h) + res2)
    h = mh(params["lgc3"], h)
    h = lin(params["out"], h)
    return jnp.mean(h, axis=1)


if __name__ == "__main__":
    jax.config.update("jax_default_matmul_precision", "highest")

    B, N = 2, 16
    in_features, hidden_features, out_features = 8, 32, 4
    K, heads = 3, 4

    key = jax.random.PRNGKey(0)
    ka, kx, kp = jax.random.split(key, 3)
    a = (jax.random.uniform(ka, (B, N, N)) < 0.3).astype(jnp.float32)
    adj = jnp.maximum(a, jnp.swapaxes(a, 1, 2))          # symmetric 0/1 adjacency
    x = jax.random.normal(kx, (B, N, in_features), jnp.float32)
    object_ids = jnp.arange(B, dtype=jnp.int32)          # unused by forward

    params = init_gnn_params(kp, in_features, hidden_features, out_features, K, heads)

    out = jax.block_until_ready(gnn_forward(params, x, adj, K, object_ids))
    ref = reference_forward(params, x, adj, K)
    np.testing.assert_allclose(np.asarray(out), np.asarray(ref), rtol=1e-2, atol=1e-6)
    assert out.shape == (B, out_features)

    print("KERNEL_OK")
</pallas_src>

<mosaic_0001>
module attributes {stable_mosaic.version = 11 : i64} {
  func.func @_gnn_fused_kernel(%arg0: i32, %arg1: memref<1x16x16xf32, #tpu.memory_space<vmem>>, %arg2: memref<1x16x8xf32, #tpu.memory_space<vmem>>, %arg3: memref<8x32xf32, #tpu.memory_space<vmem>>, %arg4: memref<1x32xf32, #tpu.memory_space<vmem>>, %arg5: memref<32x32xf32, #tpu.memory_space<vmem>>, %arg6: memref<1x32xf32, #tpu.memory_space<vmem>>, %arg7: memref<32x32xf32, #tpu.memory_space<vmem>>, %arg8: memref<1x32xf32, #tpu.memory_space<vmem>>, %arg9: memref<32x32xf32, #tpu.memory_space<vmem>>, %arg10: memref<1x32xf32, #tpu.memory_space<vmem>>, %arg11: memref<128x32xf32, #tpu.memory_space<vmem>>, %arg12: memref<1x32xf32, #tpu.memory_space<vmem>>, %arg13: memref<32x32xf32, #tpu.memory_space<vmem>>, %arg14: memref<1x32xf32, #tpu.memory_space<vmem>>, %arg15: memref<128x32xf32, #tpu.memory_space<vmem>>, %arg16: memref<1x32xf32, #tpu.memory_space<vmem>>, %arg17: memref<32x32xf32, #tpu.memory_space<vmem>>, %arg18: memref<1x32xf32, #tpu.memory_space<vmem>>, %arg19: memref<32x4xf32, #tpu.memory_space<vmem>>, %arg20: memref<1x4xf32, #tpu.memory_space<vmem>>, %arg21: memref<1x1x4xf32, #tpu.memory_space<vmem>>) attributes {dimension_semantics = [#tpu.dimension_semantics<parallel>], iteration_bounds = array<i64: 2>, scalar_prefetch = 0 : i64, scratch_operands = 0 : i64, tpu.core_type = #tpu.core_type<tc>, window_params = [{transform_indices = @transform_0, window_bounds = array<i64: 1, 16, 16>}, {transform_indices = @transform_1, window_bounds = array<i64: 1, 16, 8>}, {pipeline_mode = #tpu.pipeline_mode<synchronous>, transform_indices = @transform_2, window_bounds = array<i64: 8, 32>}, {pipeline_mode = #tpu.pipeline_mode<synchronous>, transform_indices = @transform_3, window_bounds = array<i64: 1, 32>}, {pipeline_mode = #tpu.pipeline_mode<synchronous>, transform_indices = @transform_4, window_bounds = array<i64: 32, 32>}, {pipeline_mode = #tpu.pipeline_mode<synchronous>, transform_indices = @transform_5, window_bounds = array<i64: 1, 32>}, {pipeline_mode = #tpu.pipeline_mode<synchronous>, transform_indices = @transform_6, window_bounds = array<i64: 32, 32>}, {pipeline_mode = #tpu.pipeline_mode<synchronous>, transform_indices = @transform_7, window_bounds = array<i64: 1, 32>}, {pipeline_mode = #tpu.pipeline_mode<synchronous>, transform_indices = @transform_8, window_bounds = array<i64: 32, 32>}, {pipeline_mode = #tpu.pipeline_mode<synchronous>, transform_indices = @transform_9, window_bounds = array<i64: 1, 32>}, {pipeline_mode = #tpu.pipeline_mode<synchronous>, transform_indices = @transform_10, window_bounds = array<i64: 128, 32>}, {pipeline_mode = #tpu.pipeline_mode<synchronous>, transform_indices = @transform_11, window_bounds = array<i64: 1, 32>}, {pipeline_mode = #tpu.pipeline_mode<synchronous>, transform_indices = @transform_12, window_bounds = array<i64: 32, 32>}, {pipeline_mode = #tpu.pipeline_mode<synchronous>, transform_indices = @transform_13, window_bounds = array<i64: 1, 32>}, {pipeline_mode = #tpu.pipeline_mode<synchronous>, transform_indices = @transform_14, window_bounds = array<i64: 128, 32>}, {pipeline_mode = #tpu.pipeline_mode<synchronous>, transform_indices = @transform_15, window_bounds = array<i64: 1, 32>}, {pipeline_mode = #tpu.pipeline_mode<synchronous>, transform_indices = @transform_16, window_bounds = array<i64: 32, 32>}, {pipeline_mode = #tpu.pipeline_mode<synchronous>, transform_indices = @transform_17, window_bounds = array<i64: 1, 32>}, {pipeline_mode = #tpu.pipeline_mode<synchronous>, transform_indices = @transform_18, window_bounds = array<i64: 32, 4>}, {pipeline_mode = #tpu.pipeline_mode<synchronous>, transform_indices = @transform_19, window_bounds = array<i64: 1, 4>}, {transform_indices = @transform_20, window_bounds = array<i64: 1, 1, 4>}]} {
    %c0 = arith.constant 0 : index
    %c0_0 = arith.constant 0 : index
    %c0_1 = arith.constant 0 : index
    %0 = vector.load %arg1[%c0, %c0_0, %c0_1] : memref<1x16x16xf32, #tpu.memory_space<vmem>>, vector<1x16x16xf32>
    %1 = vector.shape_cast %0 : vector<1x16x16xf32> to vector<16x16xf32>
    %2 = tpu.iota {dimensions = array<i32: 0>} : vector<16x16xi32>
    %3 = tpu.iota {dimensions = array<i32: 1>} : vector<16x16xi32>
    %4 = arith.cmpi eq, %2, %3 : vector<16x16xi32>
    %5 = arith.extui %4 : vector<16x16xi1> to vector<16x16xi32>
    %6 = arith.sitofp %5 : vector<16x16xi32> to vector<16x16xf32>
    %7 = arith.addf %1, %6 : vector<16x16xf32>
    %cst = arith.constant dense<0.000000e+00> : vector<16xf32>
    %8 = vector.multi_reduction <add>, %7, %cst [1] : vector<16x16xf32> to vector<16xf32>
    %9 = vector.shape_cast %8 : vector<16xf32> to vector<16x1xf32>
    %10 = math.rsqrt %9 : vector<16x1xf32>
    %11 = vector.broadcast %10 : vector<16x1xf32> to vector<16x16xf32>
    %12 = arith.mulf %11, %7 : vector<16x16xf32>
    %13 = tpu.transpose %10, [1, 0] : vector<16x1xf32> -> vector<1x16xf32>
    %14 = vector.broadcast %13 : vector<1x16xf32> to vector<16x16xf32>
    %15 = arith.mulf %12, %14 : vector<16x16xf32>
    %cst_2 = arith.constant 1.000000e+00 : f32
    %16 = vector.broadcast %cst_2 : f32 to vector<16x16xf32>
    %cst_3 = arith.constant 3.000000e+00 : f32
    %17 = vector.broadcast %cst_3 : f32 to vector<16x16xf32>
    %18 = arith.mulf %17, %15 : vector<16x16xf32>
    %19 = arith.mulf %18, %15 : vector<16x16xf32>
    %cst_4 = arith.constant 1.000000e+00 : f32
    %20 = vector.broadcast %cst_4 : f32 to vector<16x16xf32>
    %21 = arith.mulf %20, %16 : vector<16x16xf32>
    %22 = arith.subf %19, %21 : vector<16x16xf32>
    %cst_5 = arith.constant 2.000000e+00 : f32
    %23 = vector.broadcast %cst_5 : f32 to vector<16x16xf32>
    %24 = arith.divf %22, %23 : vector<16x16xf32>
    %cst_6 = arith.constant 5.000000e+00 : f32
    %25 = vector.broadcast %cst_6 : f32 to vector<16x16xf32>
    %26 = arith.mulf %25, %15 : vector<16x16xf32>
    %27 = arith.mulf %26, %24 : vector<16x16xf32>
    %cst_7 = arith.constant 2.000000e+00 : f32
    %28 = vector.broadcast %cst_7 : f32 to vector<16x16xf32>
    %29 = arith.mulf %28, %15 : vector<16x16xf32>
    %30 = arith.subf %27, %29 : vector<16x16xf32>
    %cst_8 = arith.constant 3.000000e+00 : f32
    %31 = vector.broadcast %cst_8 : f32 to vector<16x16xf32>
    %32 = arith.divf %30, %31 : vector<16x16xf32>
    %33 = tpu.concatenate %16, %15, %24, %32 in 0 : vector<16x16xf32>, vector<16x16xf32>, vector<16x16xf32>, vector<16x16xf32> -> vector<64x16xf32>
    %c0_9 = arith.constant 0 : index
    %c0_10 = arith.constant 0 : index
    %c0_11 = arith.constant 0 : index
    %34 = vector.load %arg2[%c0_9, %c0_10, %c0_11] : memref<1x16x8xf32, #tpu.memory_space<vmem>>, vector<1x16x8xf32>
    %35 = vector.shape_cast %34 : vector<1x16x8xf32> to vector<16x8xf32>
    %c0_12 = arith.constant 0 : index
    %c0_13 = arith.constant 0 : index
    %36 = vector.load %arg3[%c0_12, %c0_13] : memref<8x32xf32, #tpu.memory_space<vmem>>, vector<8x32xf32>
    %cst_14 = arith.constant dense<0.000000e+00> : vector<16x32xf32>
    %37 = tpu.matmul %35, %36, %cst_14 {dimension_numbers = #tpu.dot_dimension_numbers<[1], [0], [0], [1], [0, 0, 1, 1], [], []>, precision = #tpu.contract_precision<fp32>} : vector<16x8xf32>, vector<8x32xf32>, vector<16x32xf32> -> vector<16x32xf32>
    %c0_15 = arith.constant 0 : index
    %c0_16 = arith.constant 0 : index
    %38 = vector.load %arg4[%c0_15, %c0_16] : memref<1x32xf32, #tpu.memory_space<vmem>>, vector<1x32xf32>
    %39 = vector.broadcast %38 : vector<1x32xf32> to vector<16x32xf32>
    %40 = arith.addf %37, %39 : vector<16x32xf32>
    %cst_17 = arith.constant dense<0.000000e+00> : vector<64x8xf32>
    %41 = tpu.matmul %33, %35, %cst_17 {dimension_numbers = #tpu.dot_dimension_numbers<[1], [0], [0], [1], [0, 0, 1, 1], [], []>, precision = #tpu.contract_precision<fp32>} : vector<64x16xf32>, vector<16x8xf32>, vector<64x8xf32> -> vector<64x8xf32>
    %c0_18 = arith.constant 0 : index
    %c0_19 = arith.constant 0 : index
    %42 = vector.load %arg8[%c0_18, %c0_19] : memref<1x32xf32, #tpu.memory_space<vmem>>, vector<1x32xf32>
    %43 = vector.extract_strided_slice %41 {offsets = [0, 0], sizes = [16, 8], strides = [1, 1]} : vector<64x8xf32> to vector<16x8xf32>
    %c0_20 = arith.constant 0 : index
    %c0_21 = arith.constant 0 : index
    %44 = vector.load %arg7[%c0_20, %c0_21] : memref<32x32xf32, #tpu.memory_space<vmem>>, vector<8x32xf32>
    %cst_22 = arith.constant dense<0.000000e+00> : vector<16x32xf32>
    %45 = tpu.matmul %43, %44, %cst_22 {dimension_numbers = #tpu.dot_dimension_numbers<[1], [0], [0], [1], [0, 0, 1, 1], [], []>, precision = #tpu.contract_precision<fp32>} : vector<16x8xf32>, vector<8x32xf32>, vector<16x32xf32> -> vector<16x32xf32>
    %46 = vector.broadcast %42 : vector<1x32xf32> to vector<16x32xf32>
    %47 = arith.addf %46, %45 : vector<16x32xf32>
    %48 = vector.extract_strided_slice %41 {offsets = [16, 0], sizes = [16, 8], strides = [1, 1]} : vector<64x8xf32> to vector<16x8xf32>
    %c8 = arith.constant 8 : index
    %c0_23 = arith.constant 0 : index
    %49 = vector.load %arg7[%c8, %c0_23] : memref<32x32xf32, #tpu.memory_space<vmem>>, vector<8x32xf32>
    %cst_24 = arith.constant dense<0.000000e+00> : vector<16x32xf32>
    %50 = tpu.matmul %48, %49, %cst_24 {dimension_numbers = #tpu.dot_dimension_numbers<[1], [0], [0], [1], [0, 0, 1, 1], [], []>, precision = #tpu.contract_precision<fp32>} : vector<16x8xf32>, vector<8x32xf32>, vector<16x32xf32> -> vector<16x32xf32>
    %51 = arith.addf %47, %50 : vector<16x32xf32>
    %52 = vector.extract_strided_slice %41 {offsets = [32, 0], sizes = [16, 8], strides = [1, 1]} : vector<64x8xf32> to vector<16x8xf32>
    %c16 = arith.constant 16 : index
    %c0_25 = arith.constant 0 : index
    %53 = vector.load %arg7[%c16, %c0_25] : memref<32x32xf32, #tpu.memory_space<vmem>>, vector<8x32xf32>
    %cst_26 = arith.constant dense<0.000000e+00> : vector<16x32xf32>
    %54 = tpu.matmul %52, %53, %cst_26 {dimension_numbers = #tpu.dot_dimension_numbers<[1], [0], [0], [1], [0, 0, 1, 1], [], []>, precision = #tpu.contract_precision<fp32>} : vector<16x8xf32>, vector<8x32xf32>, vector<16x32xf32> -> vector<16x32xf32>
    %55 = arith.addf %51, %54 : vector<16x32xf32>
    %56 = vector.extract_strided_slice %41 {offsets = [48, 0], sizes = [16, 8], strides = [1, 1]} : vector<64x8xf32> to vector<16x8xf32>
    %c24 = arith.constant 24 : index
    %c0_27 = arith.constant 0 : index
    %57 = vector.load %arg7[%c24, %c0_27] : memref<32x32xf32, #tpu.memory_space<vmem>>, vector<8x32xf32>
    %cst_28 = arith.constant dense<0.000000e+00> : vector<16x32xf32>
    %58 = tpu.matmul %56, %57, %cst_28 {dimension_numbers = #tpu.dot_dimension_numbers<[1], [0], [0], [1], [0, 0, 1, 1], [], []>, precision = #tpu.contract_precision<fp32>} : vector<16x8xf32>, vector<8x32xf32>, vector<16x32xf32> -> vector<16x32xf32>
    %59 = arith.addf %55, %58 : vector<16x32xf32>
    %c0_29 = arith.constant 0 : index
    %c0_30 = arith.constant 0 : index
    %60 = vector.load %arg9[%c0_29, %c0_30] : memref<32x32xf32, #tpu.memory_space<vmem>>, vector<32x32xf32>
    %cst_31 = arith.constant dense<0.000000e+00> : vector<16x32xf32>
    %61 = tpu.matmul %59, %60, %cst_31 {dimension_numbers = #tpu.dot_dimension_numbers<[1], [0], [0], [1], [0, 0, 1, 1], [], []>, precision = #tpu.contract_precision<fp32>} : vector<16x32xf32>, vector<32x32xf32>, vector<16x32xf32> -> vector<16x32xf32>
    %c0_32 = arith.constant 0 : index
    %c0_33 = arith.constant 0 : index
    %62 = vector.load %arg10[%c0_32, %c0_33] : memref<1x32xf32, #tpu.memory_space<vmem>>, vector<1x32xf32>
    %63 = vector.broadcast %62 : vector<1x32xf32> to vector<16x32xf32>
    %64 = arith.addf %61, %63 : vector<16x32xf32>
    %65 = arith.addf %64, %40 : vector<16x32xf32>
    %cst_34 = arith.constant 0.000000e+00 : f32
    %66 = vector.broadcast %cst_34 : f32 to vector<16x32xf32>
    %67 = arith.maximumf %65, %66 : vector<16x32xf32>
    %c0_35 = arith.constant 0 : index
    %c0_36 = arith.constant 0 : index
    %68 = vector.load %arg5[%c0_35, %c0_36] : memref<32x32xf32, #tpu.memory_space<vmem>>, vector<32x32xf32>
    %cst_37 = arith.constant dense<0.000000e+00> : vector<16x32xf32>
    %69 = tpu.matmul %67, %68, %cst_37 {dimension_numbers = #tpu.dot_dimension_numbers<[1], [0], [0], [1], [0, 0, 1, 1], [], []>, precision = #tpu.contract_precision<fp32>} : vector<16x32xf32>, vector<32x32xf32>, vector<16x32xf32> -> vector<16x32xf32>
    %c0_38 = arith.constant 0 : index
    %c0_39 = arith.constant 0 : index
    %70 = vector.load %arg6[%c0_38, %c0_39] : memref<1x32xf32, #tpu.memory_space<vmem>>, vector<1x32xf32>
    %71 = vector.broadcast %70 : vector<1x32xf32> to vector<16x32xf32>
    %72 = arith.addf %69, %71 : vector<16x32xf32>
    %cst_40 = arith.constant dense<0.000000e+00> : vector<64x32xf32>
    %73 = tpu.matmul %33, %67, %cst_40 {dimension_numbers = #tpu.dot_dimension_numbers<[1], [0], [0], [1], [0, 0, 1, 1], [], []>, precision = #tpu.contract_precision<fp32>} : vector<64x16xf32>, vector<16x32xf32>, vector<64x32xf32> -> vector<64x32xf32>
    %c0_41 = arith.constant 0 : index
    %c0_42 = arith.constant 0 : index
    %74 = vector.load %arg12[%c0_41, %c0_42] : memref<1x32xf32, #tpu.memory_space<vmem>>, vector<1x32xf32>
    %75 = vector.extract_strided_slice %73 {offsets = [0, 0], sizes = [16, 32], strides = [1, 1]} : vector<64x32xf32> to vector<16x32xf32>
    %c0_43 = arith.constant 0 : index
    %c0_44 = arith.constant 0 : index
    %76 = vector.load %arg11[%c0_43, %c0_44] : memref<128x32xf32, #tpu.memory_space<vmem>>, vector<32x32xf32>
    %cst_45 = arith.constant dense<0.000000e+00> : vector<16x32xf32>
    %77 = tpu.matmul %75, %76, %cst_45 {dimension_numbers = #tpu.dot_dimension_numbers<[1], [0], [0], [1], [0, 0, 1, 1], [], []>, precision = #tpu.contract_precision<fp32>} : vector<16x32xf32>, vector<32x32xf32>, vector<16x32xf32> -> vector<16x32xf32>
    %78 = vector.broadcast %74 : vector<1x32xf32> to vector<16x32xf32>
    %79 = arith.addf %78, %77 : vector<16x32xf32>
    %80 = vector.extract_strided_slice %73 {offsets = [16, 0], sizes = [16, 32], strides = [1, 1]} : vector<64x32xf32> to vector<16x32xf32>
    %c32 = arith.constant 32 : index
    %c0_46 = arith.constant 0 : index
    %81 = vector.load %arg11[%c32, %c0_46] : memref<128x32xf32, #tpu.memory_space<vmem>>, vector<32x32xf32>
    %cst_47 = arith.constant dense<0.000000e+00> : vector<16x32xf32>
    %82 = tpu.matmul %80, %81, %cst_47 {dimension_numbers = #tpu.dot_dimension_numbers<[1], [0], [0], [1], [0, 0, 1, 1], [], []>, precision = #tpu.contract_precision<fp32>} : vector<16x32xf32>, vector<32x32xf32>, vector<16x32xf32> -> vector<16x32xf32>
    %83 = arith.addf %79, %82 : vector<16x32xf32>
    %84 = vector.extract_strided_slice %73 {offsets = [32, 0], sizes = [16, 32], strides = [1, 1]} : vector<64x32xf32> to vector<16x32xf32>
    %c64 = arith.constant 64 : index
    %c0_48 = arith.constant 0 : index
    %85 = vector.load %arg11[%c64, %c0_48] : memref<128x32xf32, #tpu.memory_space<vmem>>, vector<32x32xf32>
    %cst_49 = arith.constant dense<0.000000e+00> : vector<16x32xf32>
    %86 = tpu.matmul %84, %85, %cst_49 {dimension_numbers = #tpu.dot_dimension_numbers<[1], [0], [0], [1], [0, 0, 1, 1], [], []>, precision = #tpu.contract_precision<fp32>} : vector<16x32xf32>, vector<32x32xf32>, vector<16x32xf32> -> vector<16x32xf32>
    %87 = arith.addf %83, %86 : vector<16x32xf32>
    %88 = vector.extract_strided_slice %73 {offsets = [48, 0], sizes = [16, 32], strides = [1, 1]} : vector<64x32xf32> to vector<16x32xf32>
    %c96 = arith.constant 96 : index
    %c0_50 = arith.constant 0 : index
    %89 = vector.load %arg11[%c96, %c0_50] : memref<128x32xf32, #tpu.memory_space<vmem>>, vector<32x32xf32>
    %cst_51 = arith.constant dense<0.000000e+00> : vector<16x32xf32>
    %90 = tpu.matmul %88, %89, %cst_51 {dimension_numbers = #tpu.dot_dimension_numbers<[1], [0], [0], [1], [0, 0, 1, 1], [], []>, precision = #tpu.contract_precision<fp32>} : vector<16x32xf32>, vector<32x32xf32>, vector<16x32xf32> -> vector<16x32xf32>
    %91 = arith.addf %87, %90 : vector<16x32xf32>
    %c0_52 = arith.constant 0 : index
    %c0_53 = arith.constant 0 : index
    %92 = vector.load %arg13[%c0_52, %c0_53] : memref<32x32xf32, #tpu.memory_space<vmem>>, vector<32x32xf32>
    %cst_54 = arith.constant dense<0.000000e+00> : vector<16x32xf32>
    %93 = tpu.matmul %91, %92, %cst_54 {dimension_numbers = #tpu.dot_dimension_numbers<[1], [0], [0], [1], [0, 0, 1, 1], [], []>, precision = #tpu.contract_precision<fp32>} : vector<16x32xf32>, vector<32x32xf32>, vector<16x32xf32> -> vector<16x32xf32>
    %c0_55 = arith.constant 0 : index
    %c0_56 = arith.constant 0 : index
    %94 = vector.load %arg14[%c0_55, %c0_56] : memref<1x32xf32, #tpu.memory_space<vmem>>, vector<1x32xf32>
    %95 = vector.broadcast %94 : vector<1x32xf32> to vector<16x32xf32>
    %96 = arith.addf %93, %95 : vector<16x32xf32>
    %97 = arith.addf %96, %72 : vector<16x32xf32>
    %cst_57 = arith.constant 0.000000e+00 : f32
    %98 = vector.broadcast %cst_57 : f32 to vector<16x32xf32>
    %99 = arith.maximumf %97, %98 : vector<16x32xf32>
    %cst_58 = arith.constant dense<0.000000e+00> : vector<64x32xf32>
    %100 = tpu.matmul %33, %99, %cst_58 {dimension_numbers = #tpu.dot_dimension_numbers<[1], [0], [0], [1], [0, 0, 1, 1], [], []>, precision = #tpu.contract_precision<fp32>} : vector<64x16xf32>, vector<16x32xf32>, vector<64x32xf32> -> vector<64x32xf32>
    %c0_59 = arith.constant 0 : index
    %c0_60 = arith.constant 0 : index
    %101 = vector.load %arg16[%c0_59, %c0_60] : memref<1x32xf32, #tpu.memory_space<vmem>>, vector<1x32xf32>
    %102 = vector.extract_strided_slice %100 {offsets = [0, 0], sizes = [16, 32], strides = [1, 1]} : vector<64x32xf32> to vector<16x32xf32>
    %c0_61 = arith.constant 0 : index
    %c0_62 = arith.constant 0 : index
    %103 = vector.load %arg15[%c0_61, %c0_62] : memref<128x32xf32, #tpu.memory_space<vmem>>, vector<32x32xf32>
    %cst_63 = arith.constant dense<0.000000e+00> : vector<16x32xf32>
    %104 = tpu.matmul %102, %103, %cst_63 {dimension_numbers = #tpu.dot_dimension_numbers<[1], [0], [0], [1], [0, 0, 1, 1], [], []>, precision = #tpu.contract_precision<fp32>} : vector<16x32xf32>, vector<32x32xf32>, vector<16x32xf32> -> vector<16x32xf32>
    %105 = vector.broadcast %101 : vector<1x32xf32> to vector<16x32xf32>
    %106 = arith.addf %105, %104 : vector<16x32xf32>
    %107 = vector.extract_strided_slice %100 {offsets = [16, 0], sizes = [16, 32], strides = [1, 1]} : vector<64x32xf32> to vector<16x32xf32>
    %c32_64 = arith.constant 32 : index
    %c0_65 = arith.constant 0 : index
    %108 = vector.load %arg15[%c32_64, %c0_65] : memref<128x32xf32, #tpu.memory_space<vmem>>, vector<32x32xf32>
    %cst_66 = arith.constant dense<0.000000e+00> : vector<16x32xf32>
    %109 = tpu.matmul %107, %108, %cst_66 {dimension_numbers = #tpu.dot_dimension_numbers<[1], [0], [0], [1], [0, 0, 1, 1], [], []>, precision = #tpu.contract_precision<fp32>} : vector<16x32xf32>, vector<32x32xf32>, vector<16x32xf32> -> vector<16x32xf32>
    %110 = arith.addf %106, %109 : vector<16x32xf32>
    %111 = vector.extract_strided_slice %100 {offsets = [32, 0], sizes = [16, 32], strides = [1, 1]} : vector<64x32xf32> to vector<16x32xf32>
    %c64_67 = arith.constant 64 : index
    %c0_68 = arith.constant 0 : index
    %112 = vector.load %arg15[%c64_67, %c0_68] : memref<128x32xf32, #tpu.memory_space<vmem>>, vector<32x32xf32>
    %cst_69 = arith.constant dense<0.000000e+00> : vector<16x32xf32>
    %113 = tpu.matmul %111, %112, %cst_69 {dimension_numbers = #tpu.dot_dimension_numbers<[1], [0], [0], [1], [0, 0, 1, 1], [], []>, precision = #tpu.contract_precision<fp32>} : vector<16x32xf32>, vector<32x32xf32>, vector<16x32xf32> -> vector<16x32xf32>
    %114 = arith.addf %110, %113 : vector<16x32xf32>
    %115 = vector.extract_strided_slice %100 {offsets = [48, 0], sizes = [16, 32], strides = [1, 1]} : vector<64x32xf32> to vector<16x32xf32>
    %c96_70 = arith.constant 96 : index
    %c0_71 = arith.constant 0 : index
    %116 = vector.load %arg15[%c96_70, %c0_71] : memref<128x32xf32, #tpu.memory_space<vmem>>, vector<32x32xf32>
    %cst_72 = arith.constant dense<0.000000e+00> : vector<16x32xf32>
    %117 = tpu.matmul %115, %116, %cst_72 {dimension_numbers = #tpu.dot_dimension_numbers<[1], [0], [0], [1], [0, 0, 1, 1], [], []>, precision = #tpu.contract_precision<fp32>} : vector<16x32xf32>, vector<32x32xf32>, vector<16x32xf32> -> vector<16x32xf32>
    %118 = arith.addf %114, %117 : vector<16x32xf32>
    %c0_73 = arith.constant 0 : index
    %c0_74 = arith.constant 0 : index
    %119 = vector.load %arg17[%c0_73, %c0_74] : memref<32x32xf32, #tpu.memory_space<vmem>>, vector<32x32xf32>
    %cst_75 = arith.constant dense<0.000000e+00> : vector<16x32xf32>
    %120 = tpu.matmul %118, %119, %cst_75 {dimension_numbers = #tpu.dot_dimension_numbers<[1], [0], [0], [1], [0, 0, 1, 1], [], []>, precision = #tpu.contract_precision<fp32>} : vector<16x32xf32>, vector<32x32xf32>, vector<16x32xf32> -> vector<16x32xf32>
    %c0_76 = arith.constant 0 : index
    %c0_77 = arith.constant 0 : index
    %121 = vector.load %arg18[%c0_76, %c0_77] : memref<1x32xf32, #tpu.memory_space<vmem>>, vector<1x32xf32>
    %122 = vector.broadcast %121 : vector<1x32xf32> to vector<16x32xf32>
    %123 = arith.addf %120, %122 : vector<16x32xf32>
    %c0_78 = arith.constant 0 : index
    %c0_79 = arith.constant 0 : index
    %124 = vector.load %arg19[%c0_78, %c0_79] : memref<32x4xf32, #tpu.memory_space<vmem>>, vector<32x4xf32>
    %cst_80 = arith.constant dense<0.000000e+00> : vector<16x4xf32>
    %125 = tpu.matmul %123, %124, %cst_80 {dimension_numbers = #tpu.dot_dimension_numbers<[1], [0], [0], [1], [0, 0, 1, 1], [], []>, precision = #tpu.contract_precision<fp32>} : vector<16x32xf32>, vector<32x4xf32>, vector<16x4xf32> -> vector<16x4xf32>
    %c0_81 = arith.constant 0 : index
    %c0_82 = arith.constant 0 : index
    %126 = vector.load %arg20[%c0_81, %c0_82] : memref<1x4xf32, #tpu.memory_space<vmem>>, vector<1x4xf32>
    %127 = vector.broadcast %126 : vector<1x4xf32> to vector<16x4xf32>
    %128 = arith.addf %125, %127 : vector<16x4xf32>
    %cst_83 = arith.constant dense<0.000000e+00> : vector<4xf32>
    %129 = vector.multi_reduction <add>, %128, %cst_83 [0] : vector<16x4xf32> to vector<4xf32>
    %130 = vector.shape_cast %129 : vector<4xf32> to vector<1x4xf32>
    %cst_84 = arith.constant 1.600000e+01 : f32
    %131 = vector.broadcast %cst_84 : f32 to vector<1x4xf32>
    %132 = arith.divf %130, %131 : vector<1x4xf32>
    %c0_85 = arith.constant 0 : index
    %c0_86 = arith.constant 0 : index
    %c0_87 = arith.constant 0 : index
    %133 = vector.load %arg21[%c0_85, %c0_86, %c0_87] : memref<1x1x4xf32, #tpu.memory_space<vmem>>, vector<1x1x4xf32>
    %134 = vector.shape_cast %133 : vector<1x1x4xf32> to vector<1x4xf32>
    %135 = vector.shape_cast %132 : vector<1x4xf32> to vector<1x1x4xf32>
    tpu.vector_store %arg21[%c0_85, %c0_86, %c0_87], %135 {strides = array<i32>} : memref<1x1x4xf32, #tpu.memory_space<vmem>>, vector<1x1x4xf32>,
    return
  }
  func.func @transform_0(%arg0: i32) -> (i32, i32, i32) {
    %c0_i32 = arith.constant 0 : i32
    %c0_i32_0 = arith.constant 0 : i32
    %c0_i32_1 = arith.constant 0 : i32
    return %arg0, %c0_i32, %c0_i32_0 : i32, i32, i32
  }
  func.func @transform_1(%arg0: i32) -> (i32, i32, i32) {
    %c0_i32 = arith.constant 0 : i32
    %c0_i32_0 = arith.constant 0 : i32
    %c0_i32_1 = arith.constant 0 : i32
    return %arg0, %c0_i32, %c0_i32_0 : i32, i32, i32
  }
  func.func @transform_2(%arg0: i32) -> (i32, i32) {
    %c0_i32 = arith.constant 0 : i32
    %c0_i32_0 = arith.constant 0 : i32
    %c0_i32_1 = arith.constant 0 : i32
    return %c0_i32, %c0_i32_0 : i32, i32
  }
  func.func @transform_3(%arg0: i32) -> (i32, i32) {
    %c0_i32 = arith.constant 0 : i32
    %c0_i32_0 = arith.constant 0 : i32
    %c0_i32_1 = arith.constant 0 : i32
    return %c0_i32, %c0_i32_0 : i32, i32
  }
  func.func @transform_4(%arg0: i32) -> (i32, i32) {
    %c0_i32 = arith.constant 0 : i32
    %c0_i32_0 = arith.constant 0 : i32
    %c0_i32_1 = arith.constant 0 : i32
    return %c0_i32, %c0_i32_0 : i32, i32
  }
  func.func @transform_5(%arg0: i32) -> (i32, i32) {
    %c0_i32 = arith.constant 0 : i32
    %c0_i32_0 = arith.constant 0 : i32
    %c0_i32_1 = arith.constant 0 : i32
    return %c0_i32, %c0_i32_0 : i32, i32
  }
  func.func @transform_6(%arg0: i32) -> (i32, i32) {
    %c0_i32 = arith.constant 0 : i32
    %c0_i32_0 = arith.constant 0 : i32
    %c0_i32_1 = arith.constant 0 : i32
    return %c0_i32, %c0_i32_0 : i32, i32
  }
  func.func @transform_7(%arg0: i32) -> (i32, i32) {
    %c0_i32 = arith.constant 0 : i32
    %c0_i32_0 = arith.constant 0 : i32
    %c0_i32_1 = arith.constant 0 : i32
    return %c0_i32, %c0_i32_0 : i32, i32
  }
  func.func @transform_8(%arg0: i32) -> (i32, i32) {
    %c0_i32 = arith.constant 0 : i32
    %c0_i32_0 = arith.constant 0 : i32
    %c0_i32_1 = arith.constant 0 : i32
    return %c0_i32, %c0_i32_0 : i32, i32
  }
  func.func @transform_9(%arg0: i32) -> (i32, i32) {
    %c0_i32 = arith.constant 0 : i32
    %c0_i32_0 = arith.constant 0 : i32
    %c0_i32_1 = arith.constant 0 : i32
    return %c0_i32, %c0_i32_0 : i32, i32
  }
  func.func @transform_10(%arg0: i32) -> (i32, i32) {
    %c0_i32 = arith.constant 0 : i32
    %c0_i32_0 = arith.constant 0 : i32
    %c0_i32_1 = arith.constant 0 : i32
    return %c0_i32, %c0_i32_0 : i32, i32
  }
  func.func @transform_11(%arg0: i32) -> (i32, i32) {
    %c0_i32 = arith.constant 0 : i32
    %c0_i32_0 = arith.constant 0 : i32
    %c0_i32_1 = arith.constant 0 : i32
    return %c0_i32, %c0_i32_0 : i32, i32
  }
  func.func @transform_12(%arg0: i32) -> (i32, i32) {
    %c0_i32 = arith.constant 0 : i32
    %c0_i32_0 = arith.constant 0 : i32
    %c0_i32_1 = arith.constant 0 : i32
    return %c0_i32, %c0_i32_0 : i32, i32
  }
  func.func @transform_13(%arg0: i32) -> (i32, i32) {
    %c0_i32 = arith.constant 0 : i32
    %c0_i32_0 = arith.constant 0 : i32
    %c0_i32_1 = arith.constant 0 : i32
    return %c0_i32, %c0_i32_0 : i32, i32
  }
  func.func @transform_14(%arg0: i32) -> (i32, i32) {
    %c0_i32 = arith.constant 0 : i32
    %c0_i32_0 = arith.constant 0 : i32
    %c0_i32_1 = arith.constant 0 : i32
    return %c0_i32, %c0_i32_0 : i32, i32
  }
  func.func @transform_15(%arg0: i32) -> (i32, i32) {
    %c0_i32 = arith.constant 0 : i32
    %c0_i32_0 = arith.constant 0 : i32
    %c0_i32_1 = arith.constant 0 : i32
    return %c0_i32, %c0_i32_0 : i32, i32
  }
  func.func @transform_16(%arg0: i32) -> (i32, i32) {
    %c0_i32 = arith.constant 0 : i32
    %c0_i32_0 = arith.constant 0 : i32
    %c0_i32_1 = arith.constant 0 : i32
    return %c0_i32, %c0_i32_0 : i32, i32
  }
  func.func @transform_17(%arg0: i32) -> (i32, i32) {
    %c0_i32 = arith.constant 0 : i32
    %c0_i32_0 = arith.constant 0 : i32
    %c0_i32_1 = arith.constant 0 : i32
    return %c0_i32, %c0_i32_0 : i32, i32
  }
  func.func @transform_18(%arg0: i32) -> (i32, i32) {
    %c0_i32 = arith.constant 0 : i32
    %c0_i32_0 = arith.constant 0 : i32
    %c0_i32_1 = arith.constant 0 : i32
    return %c0_i32, %c0_i32_0 : i32, i32
  }
  func.func @transform_19(%arg0: i32) -> (i32, i32) {
    %c0_i32 = arith.constant 0 : i32
    %c0_i32_0 = arith.constant 0 : i32
    %c0_i32_1 = arith.constant 0 : i32
    return %c0_i32, %c0_i32_0 : i32, i32
  }
  func.func @transform_20(%arg0: i32) -> (i32, i32, i32) {
    %c0_i32 = arith.constant 0 : i32
    %c0_i32_0 = arith.constant 0 : i32
    %c0_i32_1 = arith.constant 0 : i32
    return %arg0, %c0_i32, %c0_i32_0 : i32, i32, i32
  }
}

</mosaic_0001>

<llo_original>
// kernel: tpu_custom_call.1
$region0: #{tpu_custom_call.1}
  #allocation0 [shape = 'u32[]', space=smem, size = 0x4, offset = 0x4, fixed_abs, tag = 'smem constant byte address 0x4 - core index']
  #allocation1 [shape = 'u32[72,128]{1,0:T(1,128)}', space=vmem, size = 0x9000, scoped, tag = 'internal scratch']
  %s0 = inlined_call_operand.vmem [shape: f32[2,16,16], index: 0, kind: input, shape index: {}]
  %s1 = inlined_call_operand.vmem [shape: f32[2,16,8], index: 1, kind: input, shape index: {}]
  %s2 = inlined_call_operand.vmem [shape: f32[8,32], index: 2, kind: input, shape index: {}]
  %s3 = inlined_call_operand.vmem [shape: f32[1,32], index: 3, kind: input, shape index: {}]
  %s4 = inlined_call_operand.vmem [shape: f32[32,32], index: 4, kind: input, shape index: {}]
  %s5 = inlined_call_operand.vmem [shape: f32[1,32], index: 5, kind: input, shape index: {}]
  %s6 = inlined_call_operand.vmem [shape: f32[32,32], index: 6, kind: input, shape index: {}]
  %s7 = inlined_call_operand.vmem [shape: f32[1,32], index: 7, kind: input, shape index: {}]
  %s8 = inlined_call_operand.vmem [shape: f32[32,32], index: 8, kind: input, shape index: {}]
  %s9 = inlined_call_operand.vmem [shape: f32[1,32], index: 9, kind: input, shape index: {}]
  %s10 = inlined_call_operand.vmem [shape: f32[128,32], index: 10, kind: input, shape index: {}]
  %s11 = inlined_call_operand.vmem [shape: f32[1,32], index: 11, kind: input, shape index: {}]
  %s12 = inlined_call_operand.vmem [shape: f32[32,32], index: 12, kind: input, shape index: {}]
  %s13 = inlined_call_operand.vmem [shape: f32[1,32], index: 13, kind: input, shape index: {}]
  %s14 = inlined_call_operand.vmem [shape: f32[128,32], index: 14, kind: input, shape index: {}]
  %s15 = inlined_call_operand.vmem [shape: f32[1,32], index: 15, kind: input, shape index: {}]
  %s16 = inlined_call_operand.vmem [shape: f32[32,32], index: 16, kind: input, shape index: {}]
  %s17 = inlined_call_operand.vmem [shape: f32[1,32], index: 17, kind: input, shape index: {}]
  %s18 = inlined_call_operand.vmem [shape: f32[32,4], index: 18, kind: input, shape index: {}]
  %s19 = inlined_call_operand.vmem [shape: f32[1,4], index: 19, kind: input, shape index: {}]
  %s20 = inlined_call_operand.hbm [shape: f32[2,1,4], index: 20, kind: output, shape index: {}]
  %s21 = sld [smem:[#allocation0]]
  $region113: #{tpu_custom_call.1} parent=0
    _
  %s23 = ssub.s32 1, %s21
  %s24 = scalar_select 0, %s23, %s21
  $region1: #{tpu_custom_call.1} parent=0
    #allocation2 [shape = 'u8[1024]{0}', space=vmem, size = 0x400, scoped, tag = 'output window, operand 0']
    #allocation3 [shape = 's32[2]{0}', space=sflag, size = 0x8, scoped, tag = 'scoped memory for tpu_custom_call.1']
    %25 = vsyncpa [#allocation3], 0
    %s26 = scalar_lea.sflag [#allocation3], 1
    %27 = vsyncpa %s26, 0
    loop: start=0, step=1, limit=4
    $region2: #{tpu_custom_call.1} parent=1 // loop_pre_header
      _
    $region3: #{tpu_custom_call.1} parent=1 // loop_header
      %s29 = sphi 0, %s33
      %p30 = scmp.ge.s32.totalorder %s29, 4
      %s39 = sphi 0, %s41
      %s42 = sphi 0, %s39
      %s43 = sphi 0, %s42
      %s59 = sphi 0, %s43
      %s65 = sphi 0, %s67
      %s68 = sphi 0, %s65
      %s69 = sphi 0, %s68
      %s85 = sphi 0, %s69
      %s89 = sphi 0, %s89
      %s91 = sphi 0, %s89
      %s92 = sphi 0, %s91
      %s106 = sphi 0, %s92
      %s110 = sphi 0, %s110
      %s112 = sphi 0, %s110
      %s113 = sphi 0, %s112
      %s127 = sphi 0, %s113
      %s131 = sphi 0, %s131
      %s133 = sphi 0, %s131
      %s134 = sphi 0, %s133
      %s148 = sphi 0, %s134
      %s152 = sphi 0, %s152
      %s154 = sphi 0, %s152
      %s155 = sphi 0, %s154
      %s169 = sphi 0, %s155
      %s173 = sphi 0, %s173
      %s175 = sphi 0, %s173
      %s176 = sphi 0, %s175
      %s190 = sphi 0, %s176
      %s194 = sphi 0, %s194
      %s196 = sphi 0, %s194
      %s197 = sphi 0, %s196
      %s211 = sphi 0, %s197
      %s215 = sphi 0, %s215
      %s217 = sphi 0, %s215
      %s218 = sphi 0, %s217
      %s232 = sphi 0, %s218
      %s236 = sphi 0, %s236
      %s238 = sphi 0, %s236
      %s239 = sphi 0, %s238
      %s253 = sphi 0, %s239
      %s257 = sphi 0, %s257
      %s259 = sphi 0, %s257
      %s260 = sphi 0, %s259
      %s274 = sphi 0, %s260
      %s278 = sphi 0, %s278
      %s280 = sphi 0, %s278
      %s281 = sphi 0, %s280
      %s295 = sphi 0, %s281
      %s299 = sphi 0, %s299
      %s301 = sphi 0, %s299
      %s302 = sphi 0, %s301
      %s316 = sphi 0, %s302
      %s320 = sphi 0, %s320
      %s322 = sphi 0, %s320
      %s323 = sphi 0, %s322
      %s337 = sphi 0, %s323
      %s341 = sphi 0, %s341
      %s343 = sphi 0, %s341
      %s344 = sphi 0, %s343
      %s358 = sphi 0, %s344
      %s362 = sphi 0, %s362
      %s364 = sphi 0, %s362
      %s365 = sphi 0, %s364
      %s379 = sphi 0, %s365
      %s383 = sphi 0, %s383
      %s385 = sphi 0, %s383
      %s386 = sphi 0, %s385
      %s400 = sphi 0, %s386
      %s404 = sphi 0, %s404
      %s406 = sphi 0, %s404
      %s407 = sphi 0, %s406
      %s421 = sphi 0, %s407
      %s425 = sphi 0, %s425
      %s427 = sphi 0, %s425
      %s428 = sphi 0, %s427
      %s442 = sphi 0, %s428
      %s446 = sphi 0, %s446
      %s448 = sphi 0, %s446
      %s449 = sphi 0, %s448
      %s463 = sphi 0, %s449
      %s469 = sphi 0, %s471
      %s472 = sphi 0, %s469
      %s473 = sphi 0, %s472
      %s489 = sphi 0, %s473
    $region4: #{tpu_custom_call.1} parent=1 // loop_header_branch
      %32 = sbr.rel (%p30) target = $region8
    $region5: #{tpu_custom_call.1} parent=1 // loop_body
      %s34 = ssub.s32 %s29, 1
      %s35 = ssub.s32 %s29, 2
      %s36 = sadd.s32 %s29, 1
      %s37 = ssub.s32 %s29, %s36
      %p38 = scmp.eq.s32.totalorder %s37, 0
      %s40 = sadd.s32 %s39, 1
      %s41 = scalar_select %p38, %s39, %s40
      %p44 = pneg %p38
      %p45 = scmp.eq.s32.totalorder %s29, 1
      %p46 = por %p44, %p45
      %p47 = scmp.ne.s32.totalorder %s39, %s42
      %p48 = scmp.eq.s32.totalorder %s29, 0
      %p49 = por %p47, %p48
      %p50 = scmp.ne.s32.totalorder %s39, %s42
      %p51 = scmp.eq.s32.totalorder %s34, 1
      %p52 = por %p50, %p51
      %p53 = scmp.ne.s32.totalorder %s42, %s43
      %p54 = scmp.eq.s32.totalorder %s34, 0
      %p55 = por %p53, %p54
      %p56 = scmp.ne.s32.totalorder %s42, %s43
      %p57 = scmp.eq.s32.totalorder %s35, 1
      %p58 = por %p56, %p57
      %p60 = scmp.ne.s32.totalorder %s43, %s59
      %p61 = scmp.eq.s32.totalorder %s35, 0
      %p62 = por %p60, %p61
      %s63 = ssub.s32 %s29, %s36
      %p64 = scmp.eq.s32.totalorder %s63, 0
      %s66 = sadd.s32 %s65, 1
      %s67 = scalar_select %p64, %s65, %s66
      %p70 = pneg %p64
      %p71 = scmp.eq.s32.totalorder %s29, 1
      %p72 = por %p70, %p71
      %p73 = scmp.ne.s32.totalorder %s65, %s68
      %p74 = scmp.eq.s32.totalorder %s29, 0
      %p75 = por %p73, %p74
      %p76 = scmp.ne.s32.totalorder %s65, %s68
      %p77 = scmp.eq.s32.totalorder %s34, 1
      %p78 = por %p76, %p77
      %p79 = scmp.ne.s32.totalorder %s68, %s69
      %p80 = scmp.eq.s32.totalorder %s34, 0
      %p81 = por %p79, %p80
      %p82 = scmp.ne.s32.totalorder %s68, %s69
      %p83 = scmp.eq.s32.totalorder %s35, 1
      %p84 = por %p82, %p83
      %p86 = scmp.ne.s32.totalorder %s69, %s85
      %p87 = scmp.eq.s32.totalorder %s35, 0
      %p88 = por %p86, %p87
      %s90 = sadd.s32 %s89, 1
      %p93 = scmp.eq.s32.totalorder %s29, 1
      %p94 = scmp.ne.s32.totalorder %s89, %s91
      %p95 = scmp.eq.s32.totalorder %s29, 0
      %p96 = por %p94, %p95
      %p97 = scmp.ne.s32.totalorder %s89, %s91
      %p98 = scmp.eq.s32.totalorder %s34, 1
      %p99 = por %p97, %p98
      %p100 = scmp.ne.s32.totalorder %s91, %s92
      %p101 = scmp.eq.s32.totalorder %s34, 0
      %p102 = por %p100, %p101
      %p103 = scmp.ne.s32.totalorder %s91, %s92
      %p104 = scmp.eq.s32.totalorder %s35, 1
      %p105 = por %p103, %p104
      %p107 = scmp.ne.s32.totalorder %s92, %s106
      %p108 = scmp.eq.s32.totalorder %s35, 0
      %p109 = por %p107, %p108
      %s111 = sadd.s32 %s110, 1
      %p114 = scmp.eq.s32.totalorder %s29, 1
      %p115 = scmp.ne.s32.totalorder %s110, %s112
      %p116 = scmp.eq.s32.totalorder %s29, 0
      %p117 = por %p115, %p116
      %p118 = scmp.ne.s32.totalorder %s110, %s112
      %p119 = scmp.eq.s32.totalorder %s34, 1
      %p120 = por %p118, %p119
      %p121 = scmp.ne.s32.totalorder %s112, %s113
      %p122 = scmp.eq.s32.totalorder %s34, 0
      %p123 = por %p121, %p122
      %p124 = scmp.ne.s32.totalorder %s112, %s113
      %p125 = scmp.eq.s32.totalorder %s35, 1
      %p126 = por %p124, %p125
      %p128 = scmp.ne.s32.totalorder %s113, %s127
      %p129 = scmp.eq.s32.totalorder %s35, 0
      %p130 = por %p128, %p129
      %s132 = sadd.s32 %s131, 1
      %p135 = scmp.eq.s32.totalorder %s29, 1
      %p136 = scmp.ne.s32.totalorder %s131, %s133
      %p137 = scmp.eq.s32.totalorder %s29, 0
      %p138 = por %p136, %p137
      %p139 = scmp.ne.s32.totalorder %s131, %s133
      %p140 = scmp.eq.s32.totalorder %s34, 1
      %p141 = por %p139, %p140
      %p142 = scmp.ne.s32.totalorder %s133, %s134
      %p143 = scmp.eq.s32.totalorder %s34, 0
      %p144 = por %p142, %p143
      %p145 = scmp.ne.s32.totalorder %s133, %s134
      %p146 = scmp.eq.s32.totalorder %s35, 1
      %p147 = por %p145, %p146
      %p149 = scmp.ne.s32.totalorder %s134, %s148
      %p150 = scmp.eq.s32.totalorder %s35, 0
      %p151 = por %p149, %p150
      %s153 = sadd.s32 %s152, 1
      %p156 = scmp.eq.s32.totalorder %s29, 1
      %p157 = scmp.ne.s32.totalorder %s152, %s154
      %p158 = scmp.eq.s32.totalorder %s29, 0
      %p159 = por %p157, %p158
      %p160 = scmp.ne.s32.totalorder %s152, %s154
      %p161 = scmp.eq.s32.totalorder %s34, 1
      %p162 = por %p160, %p161
      %p163 = scmp.ne.s32.totalorder %s154, %s155
      %p164 = scmp.eq.s32.totalorder %s34, 0
      %p165 = por %p163, %p164
      %p166 = scmp.ne.s32.totalorder %s154, %s155
      %p167 = scmp.eq.s32.totalorder %s35, 1
      %p168 = por %p166, %p167
      %p170 = scmp.ne.s32.totalorder %s155, %s169
      %p171 = scmp.eq.s32.totalorder %s35, 0
      %p172 = por %p170, %p171
      %s174 = sadd.s32 %s173, 1
      %p177 = scmp.eq.s32.totalorder %s29, 1
      %p178 = scmp.ne.s32.totalorder %s173, %s175
      %p179 = scmp.eq.s32.totalorder %s29, 0
      %p180 = por %p178, %p179
      %p181 = scmp.ne.s32.totalorder %s173, %s175
      %p182 = scmp.eq.s32.totalorder %s34, 1
      %p183 = por %p181, %p182
      %p184 = scmp.ne.s32.totalorder %s175, %s176
      %p185 = scmp.eq.s32.totalorder %s34, 0
      %p186 = por %p184, %p185
      %p187 = scmp.ne.s32.totalorder %s175, %s176
      %p188 = scmp.eq.s32.totalorder %s35, 1
      %p189 = por %p187, %p188
      %p191 = scmp.ne.s32.totalorder %s176, %s190
      %p192 = scmp.eq.s32.totalorder %s35, 0
      %p193 = por %p191, %p192
      %s195 = sadd.s32 %s194, 1
      %p198 = scmp.eq.s32.totalorder %s29, 1
      %p199 = scmp.ne.s32.totalorder %s194, %s196
      %p200 = scmp.eq.s32.totalorder %s29, 0
      %p201 = por %p199, %p200
      %p202 = scmp.ne.s32.totalorder %s194, %s196
      %p203 = scmp.eq.s32.totalorder %s34, 1
      %p204 = por %p202, %p203
      %p205 = scmp.ne.s32.totalorder %s196, %s197
      %p206 = scmp.eq.s32.totalorder %s34, 0
      %p207 = por %p205, %p206
      %p208 = scmp.ne.s32.totalorder %s196, %s197
      %p209 = scmp.eq.s32.totalorder %s35, 1
      %p210 = por %p208, %p209
      %p212 = scmp.ne.s32.totalorder %s197, %s211
      %p213 = scmp.eq.s32.totalorder %s35, 0
      %p214 = por %p212, %p213
      %s216 = sadd.s32 %s215, 1
      %p219 = scmp.eq.s32.totalorder %s29, 1
      %p220 = scmp.ne.s32.totalorder %s215, %s217
      %p221 = scmp.eq.s32.totalorder %s29, 0
      %p222 = por %p220, %p221
      %p223 = scmp.ne.s32.totalorder %s215, %s217
      %p224 = scmp.eq.s32.totalorder %s34, 1
      %p225 = por %p223, %p224
      %p226 = scmp.ne.s32.totalorder %s217, %s218
      %p227 = scmp.eq.s32.totalorder %s34, 0
      %p228 = por %p226, %p227
      %p229 = scmp.ne.s32.totalorder %s217, %s218
      %p230 = scmp.eq.s32.totalorder %s35, 1
      %p231 = por %p229, %p230
      %p233 = scmp.ne.s32.totalorder %s218, %s232
      %p234 = scmp.eq.s32.totalorder %s35, 0
      %p235 = por %p233, %p234
      %s237 = sadd.s32 %s236, 1
      %p240 = scmp.eq.s32.totalorder %s29, 1
      %p241 = scmp.ne.s32.totalorder %s236, %s238
      %p242 = scmp.eq.s32.totalorder %s29, 0
      %p243 = por %p241, %p242
      %p244 = scmp.ne.s32.totalorder %s236, %s238
      %p245 = scmp.eq.s32.totalorder %s34, 1
      %p246 = por %p244, %p245
      %p247 = scmp.ne.s32.totalorder %s238, %s239
      %p248 = scmp.eq.s32.totalorder %s34, 0
      %p249 = por %p247, %p248
      %p250 = scmp.ne.s32.totalorder %s238, %s239
      %p251 = scmp.eq.s32.totalorder %s35, 1
      %p252 = por %p250, %p251
      %p254 = scmp.ne.s32.totalorder %s239, %s253
      %p255 = scmp.eq.s32.totalorder %s35, 0
      %p256 = por %p254, %p255
      %s258 = sadd.s32 %s257, 1
      %p261 = scmp.eq.s32.totalorder %s29, 1
      %p262 = scmp.ne.s32.totalorder %s257, %s259
      %p263 = scmp.eq.s32.totalorder %s29, 0
      %p264 = por %p262, %p263
      %p265 = scmp.ne.s32.totalorder %s257, %s259
      %p266 = scmp.eq.s32.totalorder %s34, 1
      %p267 = por %p265, %p266
      %p268 = scmp.ne.s32.totalorder %s259, %s260
      %p269 = scmp.eq.s32.totalorder %s34, 0
      %p270 = por %p268, %p269
      %p271 = scmp.ne.s32.totalorder %s259, %s260
      %p272 = scmp.eq.s32.totalorder %s35, 1
      %p273 = por %p271, %p272
      %p275 = scmp.ne.s32.totalorder %s260, %s274
      %p276 = scmp.eq.s32.totalorder %s35, 0
      %p277 = por %p275, %p276
      %s279 = sadd.s32 %s278, 1
      %p282 = scmp.eq.s32.totalorder %s29, 1
      %p283 = scmp.ne.s32.totalorder %s278, %s280
      %p284 = scmp.eq.s32.totalorder %s29, 0
      %p285 = por %p283, %p284
      %p286 = scmp.ne.s32.totalorder %s278, %s280
      %p287 = scmp.eq.s32.totalorder %s34, 1
      %p288 = por %p286, %p287
      %p289 = scmp.ne.s32.totalorder %s280, %s281
      %p290 = scmp.eq.s32.totalorder %s34, 0
      %p291 = por %p289, %p290
      %p292 = scmp.ne.s32.totalorder %s280, %s281
      %p293 = scmp.eq.s32.totalorder %s35, 1
      %p294 = por %p292, %p293
      %p296 = scmp.ne.s32.totalorder %s281, %s295
      %p297 = scmp.eq.s32.totalorder %s35, 0
      %p298 = por %p296, %p297
      %s300 = sadd.s32 %s299, 1
      %p303 = scmp.eq.s32.totalorder %s29, 1
      %p304 = scmp.ne.s32.totalorder %s299, %s301
      %p305 = scmp.eq.s32.totalorder %s29, 0
      %p306 = por %p304, %p305
      %p307 = scmp.ne.s32.totalorder %s299, %s301
      %p308 = scmp.eq.s32.totalorder %s34, 1
      %p309 = por %p307, %p308
      %p310 = scmp.ne.s32.totalorder %s301, %s302
      %p311 = scmp.eq.s32.totalorder %s34, 0
      %p312 = por %p310, %p311
      %p313 = scmp.ne.s32.totalorder %s301, %s302
      %p314 = scmp.eq.s32.totalorder %s35, 1
      %p315 = por %p313, %p314
      %p317 = scmp.ne.s32.totalorder %s302, %s316
      %p318 = scmp.eq.s32.totalorder %s35, 0
      %p319 = por %p317, %p318
      %s321 = sadd.s32 %s320, 1
      %p324 = scmp.eq.s32.totalorder %s29, 1
      %p325 = scmp.ne.s32.totalorder %s320, %s322
      %p326 = scmp.eq.s32.totalorder %s29, 0
      %p327 = por %p325, %p326
      %p328 = scmp.ne.s32.totalorder %s320, %s322
      %p329 = scmp.eq.s32.totalorder %s34, 1
      %p330 = por %p328, %p329
      %p331 = scmp.ne.s32.totalorder %s322, %s323
      %p332 = scmp.eq.s32.totalorder %s34, 0
      %p333 = por %p331, %p332
      %p334 = scmp.ne.s32.totalorder %s322, %s323
      %p335 = scmp.eq.s32.totalorder %s35, 1
      %p336 = por %p334, %p335
      %p338 = scmp.ne.s32.totalorder %s323, %s337
      %p339 = scmp.eq.s32.totalorder %s35, 0
      %p340 = por %p338, %p339
      %s342 = sadd.s32 %s341, 1
      %p345 = scmp.eq.s32.totalorder %s29, 1
      %p346 = scmp.ne.s32.totalorder %s341, %s343
      %p347 = scmp.eq.s32.totalorder %s29, 0
      %p348 = por %p346, %p347
      %p349 = scmp.ne.s32.totalorder %s341, %s343
      %p350 = scmp.eq.s32.totalorder %s34, 1
      %p351 = por %p349, %p350
      %p352 = scmp.ne.s32.totalorder %s343, %s344
      %p353 = scmp.eq.s32.totalorder %s34, 0
      %p354 = por %p352, %p353
      %p355 = scmp.ne.s32.totalorder %s343, %s344
      %p356 = scmp.eq.s32.totalorder %s35, 1
      %p357 = por %p355, %p356
      %p359 = scmp.ne.s32.totalorder %s344, %s358
      %p360 = scmp.eq.s32.totalorder %s35, 0
      %p361 = por %p359, %p360
      %s363 = sadd.s32 %s362, 1
      %p366 = scmp.eq.s32.totalorder %s29, 1
      %p367 = scmp.ne.s32.totalorder %s362, %s364
      %p368 = scmp.eq.s32.totalorder %s29, 0
      %p369 = por %p367, %p368
      %p370 = scmp.ne.s32.totalorder %s362, %s364
      %p371 = scmp.eq.s32.totalorder %s34, 1
      %p372 = por %p370, %p371
      %p373 = scmp.ne.s32.totalorder %s364, %s365
      %p374 = scmp.eq.s32.totalorder %s34, 0
      %p375 = por %p373, %p374
      %p376 = scmp.ne.s32.totalorder %s364, %s365
      %p377 = scmp.eq.s32.totalorder %s35, 1
      %p378 = por %p376, %p377
      %p380 = scmp.ne.s32.totalorder %s365, %s379
      %p381 = scmp.eq.s32.totalorder %s35, 0
      %p382 = por %p380, %p381
      %s384 = sadd.s32 %s383, 1
      %p387 = scmp.eq.s32.totalorder %s29, 1
      %p388 = scmp.ne.s32.totalorder %s383, %s385
      %p389 = scmp.eq.s32.totalorder %s29, 0
      %p390 = por %p388, %p389
      %p391 = scmp.ne.s32.totalorder %s383, %s385
      %p392 = scmp.eq.s32.totalorder %s34, 1
      %p393 = por %p391, %p392
      %p394 = scmp.ne.s32.totalorder %s385, %s386
      %p395 = scmp.eq.s32.totalorder %s34, 0
      %p396 = por %p394, %p395
      %p397 = scmp.ne.s32.totalorder %s385, %s386
      %p398 = scmp.eq.s32.totalorder %s35, 1
      %p399 = por %p397, %p398
      %p401 = scmp.ne.s32.totalorder %s386, %s400
      %p402 = scmp.eq.s32.totalorder %s35, 0
      %p403 = por %p401, %p402
      %s405 = sadd.s32 %s404, 1
      %p408 = scmp.eq.s32.totalorder %s29, 1
      %p409 = scmp.ne.s32.totalorder %s404, %s406
      %p410 = scmp.eq.s32.totalorder %s29, 0
      %p411 = por %p409, %p410
      %p412 = scmp.ne.s32.totalorder %s404, %s406
      %p413 = scmp.eq.s32.totalorder %s34, 1
      %p414 = por %p412, %p413
      %p415 = scmp.ne.s32.totalorder %s406, %s407
      %p416 = scmp.eq.s32.totalorder %s34, 0
      %p417 = por %p415, %p416
      %p418 = scmp.ne.s32.totalorder %s406, %s407
      %p419 = scmp.eq.s32.totalorder %s35, 1
      %p420 = por %p418, %p419
      %p422 = scmp.ne.s32.totalorder %s407, %s421
      %p423 = scmp.eq.s32.totalorder %s35, 0
      %p424 = por %p422, %p423
      %s426 = sadd.s32 %s425, 1
      %p429 = scmp.eq.s32.totalorder %s29, 1
      %p430 = scmp.ne.s32.totalorder %s425, %s427
      %p431 = scmp.eq.s32.totalorder %s29, 0
      %p432 = por %p430, %p431
      %p433 = scmp.ne.s32.totalorder %s425, %s427
      %p434 = scmp.eq.s32.totalorder %s34, 1
      %p435 = por %p433, %p434
      %p436 = scmp.ne.s32.totalorder %s427, %s428
      %p437 = scmp.eq.s32.totalorder %s34, 0
      %p438 = por %p436, %p437
      %p439 = scmp.ne.s32.totalorder %s427, %s428
      %p440 = scmp.eq.s32.totalorder %s35, 1
      %p441 = por %p439, %p440
      %p443 = scmp.ne.s32.totalorder %s428, %s442
      %p444 = scmp.eq.s32.totalorder %s35, 0
      %p445 = por %p443, %p444
      %s447 = sadd.s32 %s446, 1
      %p450 = scmp.eq.s32.totalorder %s29, 1
      %p451 = scmp.ne.s32.totalorder %s446, %s448
      %p452 = scmp.eq.s32.totalorder %s29, 0
      %p453 = por %p451, %p452
      %p454 = scmp.ne.s32.totalorder %s446, %s448
      %p455 = scmp.eq.s32.totalorder %s34, 1
      %p456 = por %p454, %p455
      %p457 = scmp.ne.s32.totalorder %s448, %s449
      %p458 = scmp.eq.s32.totalorder %s34, 0
      %p459 = por %p457, %p458
      %p460 = scmp.ne.s32.totalorder %s448, %s449
      %p461 = scmp.eq.s32.totalorder %s35, 1
      %p462 = por %p460, %p461
      %p464 = scmp.ne.s32.totalorder %s449, %s463
      %p465 = scmp.eq.s32.totalorder %s35, 0
      %p466 = por %p464, %p465
      %s467 = ssub.s32 %s29, %s36
      %p468 = scmp.eq.s32.totalorder %s467, 0
      %s470 = sadd.s32 %s469, 1
      %s471 = scalar_select %p468, %s469, %s470
      %p474 = pneg %p468
      %p475 = scmp.eq.s32.totalorder %s29, 1
      %p476 = por %p474, %p475
      %p477 = scmp.ne.s32.totalorder %s469, %s472
      %p478 = scmp.eq.s32.totalorder %s29, 0
      %p479 = por %p477, %p478
      %p480 = scmp.ne.s32.totalorder %s469, %s472
      %p481 = scmp.eq.s32.totalorder %s34, 1
      %p482 = por %p480, %p481
      %p483 = scmp.ne.s32.totalorder %s472, %s473
      %p484 = scmp.eq.s32.totalorder %s34, 0
      %p485 = por %p483, %p484
      %p486 = scmp.ne.s32.totalorder %s472, %s473
      %p487 = scmp.eq.s32.totalorder %s35, 1
      %p488 = por %p486, %p487
      %p490 = scmp.ne.s32.totalorder %s473, %s489
      %p491 = scmp.eq.s32.totalorder %s35, 0
      %p492 = por %p490, %p491
      %p493 = scmp.le.s32.totalorder 1, %s29
      %p494 = scmp.lt.s32.totalorder %s29, 3
      %p495 = pnand %p493, %p494
      %p496 = pneg %p495
      // Predicated region
      $region9: #{tpu_custom_call.1} parent=5 // pred_check
        _
      $region10: #{tpu_custom_call.1} parent=5 // pred_check_branch
        %498 = sbr.rel (%p495) target = $region12
      $region11: #{tpu_custom_call.1} parent=5 // pred_region
        %s499 = ssub.s32 %s29, 1
        // Predicated region
        $region13: #{tpu_custom_call.1} parent=11 // pred_check
          %p500 = pneg %p102
        $region14: #{tpu_custom_call.1} parent=11 // pred_check_branch
          %502 = sbr.rel (%p500) target = $region16
        $region15: #{tpu_custom_call.1} parent=11 // pred_region
          _
        $region16: #{tpu_custom_call.1} parent=11 // pred_fallthru
          _
        // Predicated region
        $region17: #{tpu_custom_call.1} parent=11 // pred_check
          %p503 = pneg %p123
        $region18: #{tpu_custom_call.1} parent=11 // pred_check_branch
          %505 = sbr.rel (%p503) target = $region20
        $region19: #{tpu_custom_call.1} parent=11 // pred_region
          _
        $region20: #{tpu_custom_call.1} parent=11 // pred_fallthru
          _
        // Predicated region
        $region21: #{tpu_custom_call.1} parent=11 // pred_check
          %p506 = pneg %p144
        $region22: #{tpu_custom_call.1} parent=11 // pred_check_branch
          %508 = sbr.rel (%p506) target = $region24
        $region23: #{tpu_custom_call.1} parent=11 // pred_region
          _
        $region24: #{tpu_custom_call.1} parent=11 // pred_fallthru
          _
        // Predicated region
        $region25: #{tpu_custom_call.1} parent=11 // pred_check
          %p509 = pneg %p165
        $region26: #{tpu_custom_call.1} parent=11 // pred_check_branch
          %511 = sbr.rel (%p509) target = $region28
        $region27: #{tpu_custom_call.1} parent=11 // pred_region
          _
        $region28: #{tpu_custom_call.1} parent=11 // pred_fallthru
          _
        // Predicated region
        $region29: #{tpu_custom_call.1} parent=11 // pred_check
          %p512 = pneg %p186
        $region30: #{tpu_custom_call.1} parent=11 // pred_check_branch
          %514 = sbr.rel (%p512) target = $region32
        $region31: #{tpu_custom_call.1} parent=11 // pred_region
          _
        $region32: #{tpu_custom_call.1} parent=11 // pred_fallthru
          _
        // Predicated region
        $region33: #{tpu_custom_call.1} parent=11 // pred_check
          %p515 = pneg %p207
        $region34: #{tpu_custom_call.1} parent=11 // pred_check_branch
          %517 = sbr.rel (%p515) target = $region36
        $region35: #{tpu_custom_call.1} parent=11 // pred_region
          _
        $region36: #{tpu_custom_call.1} parent=11 // pred_fallthru
          _
        // Predicated region
        $region37: #{tpu_custom_call.1} parent=11 // pred_check
          %p518 = pneg %p228
        $region38: #{tpu_custom_call.1} parent=11 // pred_check_branch
          %520 = sbr.rel (%p518) target = $region40
        $region39: #{tpu_custom_call.1} parent=11 // pred_region
          _
        $region40: #{tpu_custom_call.1} parent=11 // pred_fallthru
          _
        // Predicated region
        $region41: #{tpu_custom_call.1} parent=11 // pred_check
          %p521 = pneg %p249
        $region42: #{tpu_custom_call.1} parent=11 // pred_check_branch
          %523 = sbr.rel (%p521) target = $region44
        $region43: #{tpu_custom_call.1} parent=11 // pred_region
          _
        $region44: #{tpu_custom_call.1} parent=11 // pred_fallthru
          _
        // Predicated region
        $region45: #{tpu_custom_call.1} parent=11 // pred_check
          %p524 = pneg %p270
        $region46: #{tpu_custom_call.1} parent=11 // pred_check_branch
          %526 = sbr.rel (%p524) target = $region48
        $region47: #{tpu_custom_call.1} parent=11 // pred_region
          _
        $region48: #{tpu_custom_call.1} parent=11 // pred_fallthru
          _
        // Predicated region
        $region49: #{tpu_custom_call.1} parent=11 // pred_check
          %p527 = pneg %p291
        $region50: #{tpu_custom_call.1} parent=11 // pred_check_branch
          %529 = sbr.rel (%p527) target = $region52
        $region51: #{tpu_custom_call.1} parent=11 // pred_region
          _
        $region52: #{tpu_custom_call.1} parent=11 // pred_fallthru
          _
        // Predicated region
        $region53: #{tpu_custom_call.1} parent=11 // pred_check
          %p530 = pneg %p312
        $region54: #{tpu_custom_call.1} parent=11 // pred_check_branch
          %532 = sbr.rel (%p530) target = $region56
        $region55: #{tpu_custom_call.1} parent=11 // pred_region
          _
        $region56: #{tpu_custom_call.1} parent=11 // pred_fallthru
          _
        // Predicated region
        $region57: #{tpu_custom_call.1} parent=11 // pred_check
          %p533 = pneg %p333
        $region58: #{tpu_custom_call.1} parent=11 // pred_check_branch
          %535 = sbr.rel (%p533) target = $region60
        $region59: #{tpu_custom_call.1} parent=11 // pred_region
          _
        $region60: #{tpu_custom_call.1} parent=11 // pred_fallthru
          _
        // Predicated region
        $region61: #{tpu_custom_call.1} parent=11 // pred_check
          %p536 = pneg %p354
        $region62: #{tpu_custom_call.1} parent=11 // pred_check_branch
          %538 = sbr.rel (%p536) target = $region64
        $region63: #{tpu_custom_call.1} parent=11 // pred_region
          _
        $region64: #{tpu_custom_call.1} parent=11 // pred_fallthru
          _
        // Predicated region
        $region65: #{tpu_custom_call.1} parent=11 // pred_check
          %p539 = pneg %p375
        $region66: #{tpu_custom_call.1} parent=11 // pred_check_branch
          %541 = sbr.rel (%p539) target = $region68
        $region67: #{tpu_custom_call.1} parent=11 // pred_region
          _
        $region68: #{tpu_custom_call.1} parent=11 // pred_fallthru
          _
        // Predicated region
        $region69: #{tpu_custom_call.1} parent=11 // pred_check
          %p542 = pneg %p396
        $region70: #{tpu_custom_call.1} parent=11 // pred_check_branch
          %544 = sbr.rel (%p542) target = $region72
        $region71: #{tpu_custom_call.1} parent=11 // pred_region
          _
        $region72: #{tpu_custom_call.1} parent=11 // pred_fallthru
          _
        // Predicated region
        $region73: #{tpu_custom_call.1} parent=11 // pred_check
          %p545 = pneg %p417
        $region74: #{tpu_custom_call.1} parent=11 // pred_check_branch
          %547 = sbr.rel (%p545) target = $region76
        $region75: #{tpu_custom_call.1} parent=11 // pred_region
          _
        $region76: #{tpu_custom_call.1} parent=11 // pred_fallthru
          _
        // Predicated region
        $region77: #{tpu_custom_call.1} parent=11 // pred_check
          %p548 = pneg %p438
        $region78: #{tpu_custom_call.1} parent=11 // pred_check_branch
          %550 = sbr.rel (%p548) target = $region80
        $region79: #{tpu_custom_call.1} parent=11 // pred_region
          _
        $region80: #{tpu_custom_call.1} parent=11 // pred_fallthru
          _
        // Predicated region
        $region81: #{tpu_custom_call.1} parent=11 // pred_check
          %p551 = pneg %p459
        $region82: #{tpu_custom_call.1} parent=11 // pred_check_branch
          %553 = sbr.rel (%p551) target = $region84
        $region83: #{tpu_custom_call.1} parent=11 // pred_region
          _
        $region84: #{tpu_custom_call.1} parent=11 // pred_fallthru
          _
      $region12: #{tpu_custom_call.1} parent=5 // pred_fallthru
        _
      %p554 = scmp.lt.s32.totalorder %s29, 2
      // Predicated region
      $region85: #{tpu_custom_call.1} parent=5 // pred_check
        %p555 = pneg %p554
      $region86: #{tpu_custom_call.1} parent=5 // pred_check_branch
        %557 = sbr.rel (%p555) target = $region88
      $region87: #{tpu_custom_call.1} parent=5 // pred_region
        // Predicated region
        $region89: #{tpu_custom_call.1} parent=87 // pred_check
          %p558 = pneg %p49
        $region90: #{tpu_custom_call.1} parent=87 // pred_check_branch
          %560 = sbr.rel (%p558) target = $region92
        $region91: #{tpu_custom_call.1} parent=87 // pred_region
          %p561 = scmp.lt.s32.totalorder %s29, 1
          %s562 = scalar_select %p561, %s29, 1
          %s563 = smul.addr %s562, 2
          %s564 = smul.addr %s563, 8
          %s565 = scalar_lea.vmem %s0, %s564
        $region92: #{tpu_custom_call.1} parent=87 // pred_fallthru
          _
        // Predicated region
        $region93: #{tpu_custom_call.1} parent=87 // pred_check
          %p566 = pneg %p75
        $region94: #{tpu_custom_call.1} parent=87 // pred_check_branch
          %568 = sbr.rel (%p566) target = $region96
        $region95: #{tpu_custom_call.1} parent=87 // pred_region
          %p569 = scmp.lt.s32.totalorder %s29, 1
          %s570 = scalar_select %p569, %s29, 1
          %s571 = smul.addr %s570, 2
          %s572 = smul.addr %s571, 8
          %s573 = scalar_lea.vmem %s1, %s572
        $region96: #{tpu_custom_call.1} parent=87 // pred_fallthru
          _
      $region88: #{tpu_custom_call.1} parent=5 // pred_fallthru
        _
      %p574 = scmp.le.s32.totalorder 1, %s29
      %p575 = scmp.lt.s32.totalorder %s29, 3
      %p576 = pnand %p574, %p575
      %p577 = pneg %p576
      // Predicated region
      $region97: #{tpu_custom_call.1} parent=5 // pred_check
        _
      $region98: #{tpu_custom_call.1} parent=5 // pred_check_branch
        %579 = sbr.rel (%p576) target = $region100
      $region99: #{tpu_custom_call.1} parent=5 // pred_region
        %s580 = ssub.s32 %s29, 1
        %p581 = scmp.lt.s32.totalorder %s34, 1
        %s582 = scalar_select %p581, %s34, 1
        %s583 = smul.addr %s582, 2
        %s584 = smul.addr %s583, 8
        %s585 = scalar_lea.vmem %s0, %s584
        %p586 = pneg %p55
        %p587 = pneg %p52
        %p588 = scmp.lt.s32.totalorder %s34, 1
        %s589 = scalar_select %p588, %s34, 1
        %s590 = smul.addr %s589, 2
        %s591 = smul.addr %s590, 8
        %s592 = scalar_lea.vmem %s1, %s591
        %p593 = pneg %p81
        %p594 = pneg %p78
        %p595 = pneg %p102
        %p596 = pneg %p99
        %p597 = pneg %p123
        %p598 = pneg %p120
        %p599 = pneg %p144
        %p600 = pneg %p141
        %p601 = pneg %p165
        %p602 = pneg %p162
        %p603 = pneg %p186
        %p604 = pneg %p183
        %p605 = pneg %p207
        %p606 = pneg %p204
        %p607 = pneg %p228
        %p608 = pneg %p225
        %p609 = pneg %p249
        %p610 = pneg %p246
        %p611 = pneg %p270
        %p612 = pneg %p267
        %p613 = pneg %p291
        %p614 = pneg %p288
        %p615 = pneg %p312
        %p616 = pneg %p309
        %p617 = pneg %p333
        %p618 = pneg %p330
        %p619 = pneg %p354
        %p620 = pneg %p351
        %p621 = pneg %p375
        %p622 = pneg %p372
        %p623 = pneg %p396
        %p624 = pneg %p393
        %p625 = pneg %p417
        %p626 = pneg %p414
        %p627 = pneg %p438
        %p628 = pneg %p435
        %p629 = pneg %p459
        %p630 = pneg %p456
        %p631 = pneg %p485
        %p632 = pneg %p482
        %s633 = sand.u32 %s472, 1
        %s634 = scalar_lea.sflag [#allocation3], %s633
        %s635 = sand.u32 %s472, 1
        %s636 = scalar_lea.vmem [#allocation2], %s635
        %p637 = scmp.lt.s32.totalorder %s34, 1
        %s638 = scalar_select %p637, %s34, 1
        %s639 = smul.addr %s638, 2
        %s640 = smul.addr %s639, 8
        %s641 = scalar_lea.vmem %s0, %s640
        %p642 = scmp.lt.s32.totalorder %s34, 1
        %s643 = scalar_select %p642, %s34, 1
        %s644 = smul.addr %s643, 2
        %s645 = smul.addr %s644, 8
        %s646 = scalar_lea.vmem %s1, %s645
        %v647 = vld [vmem:[%s641] sm:$0xff]
        %v648 = vld [vmem:[%s641 + $0x8] sm:$0xff]
        %v649 = vlaneseq
        %v650 = vshrl.u32 %v649, 7
        %v651 = vadd.s32 %v650, 8
        %v652 = vlaneseq
        %v653 = vand.u32 %v652, 127
        %vm654 = vcmp.eq.s32.totalorder %v650, %v653
        %vm655 = vcmp.eq.s32.totalorder %v651, %v653
        %v656 = vsel %vm654, 1, 0
        %v657 = vsel %vm655, 1, 0
        %v658 = vcvt.s32.f32 %v656
        %v659 = vcvt.s32.f32 %v657
        %v660 = vadd.f32 %v647, %v658
        %v661 = vadd.f32 %v648, %v659
        %vm662 = vcmask 130048
        %v663 = vsel %vm662, %v660, 0.0
        %664 = vadd.xlane.f32.xlu0 %v663
        %v665 = vpop.xlane.xlu0 %664
        %v666 = vsel %vm662, %v661, 0.0
        %667 = vadd.xlane.f32.xlu0 %v666
        %v668 = vpop.xlane.xlu0 %667
        %v669 = vrsqrt.pop %v665
        %v670 = vmul.f32 %v669, %v665
        %v671 = vmul.f32 %v670, %v669
        %v672 = vmul.f32 0.5, %v671
        %v673 = vsub.f32 1.5, %v672
        %v674 = vmul.f32 %v669, %v673
        %vm675 = vweird.f32 %v665
        %vm676 = vweird.f32 %v669
        %vm677 = vmor %vm675, %vm676
        %v678 = vsel %vm677, %v669, %v674
        %v679 = vrsqrt.pop %v668
        %v680 = vmul.f32 %v679, %v668
        %v681 = vmul.f32 %v680, %v679
        %v682 = vmul.f32 0.5, %v681
        %v683 = vsub.f32 1.5, %v682
        %v684 = vmul.f32 %v679, %v683
        %vm685 = vweird.f32 %v668
        %vm686 = vweird.f32 %v679
        %vm687 = vmor %vm685, %vm686
        %v688 = vsel %vm687, %v679, %v684
        %v689 = vmul.f32 %v678, %v660
        %v690 = vmul.f32 %v688, %v661
        %691 = vxpose.xlu0.b32.start [1/16] %v678, 128
        %692 = vxpose.xlu0.b32.cont [2/16] %v688, 128
        %693 = vxpose.xlu0.b32.cont [3/16] 0.0, 128
        %694 = vxpose.xlu0.b32.cont [4/16] 0.0, 128
        %695 = vxpose.xlu0.b32.cont [5/16] 0.0, 128
        %696 = vxpose.xlu0.b32.cont [6/16] 0.0, 128
        %697 = vxpose.xlu0.b32.cont [7/16] 0.0, 128
        %698 = vxpose.xlu0.b32.cont [8/16] 0.0, 128
        %699 = vxpose.xlu0.b32.cont [9/16] 0.0, 128
        %700 = vxpose.xlu0.b32.cont [10/16] 0.0, 128
        %701 = vxpose.xlu0.b32.cont [11/16] 0.0, 128
        %702 = vxpose.xlu0.b32.cont [12/16] 0.0, 128
        %703 = vxpose.xlu0.b32.cont [13/16] 0.0, 128
        %704 = vxpose.xlu0.b32.cont [14/16] 0.0, 128
        %705 = vxpose.xlu0.b32.cont [15/16] 0.0, 128
        %706 = vxpose.xlu0.b32.end [16/16] 0.0, 128
        %v707 = vpop.trf.xlu0
        %v708 = vpop.trf.xlu0
        %v709 = vpop.trf.xlu0
        %v710 = vpop.trf.xlu0
        %v711 = vpop.trf.xlu0
        %v712 = vpop.trf.xlu0
        %v713 = vpop.trf.xlu0
        %v714 = vpop.trf.xlu0
        %v715 = vpop.trf.xlu0
        %v716 = vpop.trf.xlu0
        %v717 = vpop.trf.xlu0
        %v718 = vpop.trf.xlu0
        %v719 = vpop.trf.xlu0
        %v720 = vpop.trf.xlu0
        %v721 = vpop.trf.xlu0
        %v722 = vpop.trf.xlu0
        %v723 = vperm.slane %v707, 0
        %v724 = vmul.f32 %v689, %v723
        %v725 = vmul.f32 %v690, %v723
        %v726 = vmul.f32 %v724, 3.0
        %v727 = vmul.f32 %v725, 3.0
        %v728 = vmul.f32 %v726, %v724
        %v729 = vmul.f32 %v727, %v725
        %v730 = vsub.f32 %v728, 1.0
        %v731 = vsub.f32 %v729, 1.0
        %v732 = vrcp.pop 2.0
        %v733 = vmul.f32 2.0, %v732
        %v734 = vsub.f32 1.0, %v733
        %v735 = vmul.f32 %v732, %v734
        %v736 = vadd.f32 %v732, %v735
        %vm737 = vweird.f32 %v732
        %v738 = vsel %vm737, %v732, %v736
        %v739 = vmul.f32 %v730, %v738
        %v740 = vmul.f32 %v731, %v738
        %v741 = vmul.f32 %v724, 5.0
        %v742 = vmul.f32 %v725, 5.0
        %v743 = vmul.f32 %v741, %v739
        %v744 = vmul.f32 %v742, %v740
        %v745 = vmul.f32 %v724, 2.0
        %v746 = vmul.f32 %v725, 2.0
        %v747 = vsub.f32 %v743, %v745
        %v748 = vsub.f32 %v744, %v746
        %v749 = vrcp.pop 3.0
        %v750 = vmul.f32 3.0, %v749
        %v751 = vsub.f32 1.0, %v750
        %v752 = vmul.f32 %v749, %v751
        %v753 = vadd.f32 %v749, %v752
        %vm754 = vweird.f32 %v749
        %v755 = vsel %vm754, %v749, %v753
        %v756 = vmul.f32 %v747, %v755
        %v757 = vmul.f32 %v748, %v755
        %v758 = vld [vmem:[%s646] sm:$0xff]
        %v759 = vld [vmem:[%s646 + $0x8] sm:$0xff]
        %v760 = vld [vmem:[%s2] sm:$0xff]
        %v761 = vld [vmem:[%s3] sm:$0x1]
        %v763 = vperm.slane %v761, 0
        %vm765 = vcmask 64512
        %v767 = vsel %vm765, %v758, 0
        %v770 = vsel %vm765, %v759, 0
        %772 = vmatpush.msra.mxu0 0.0
        %773 = vmatpush.msra.mxu0 0.0
        %774 = vmatpush.msra.mxu0 0.0
        %775 = vmatpush.msra.mxu0 0.0
        %776 = vmatpush.msra.mxu0 0.0
        %777 = vmatpush.msra.mxu0 0.0
        %778 = vmatpush.msra.mxu0 0.0
        %779 = vmatpush.msra.mxu0 0.0
        %780 = vmatpush.msra.mxu0 0.0
        %781 = vmatpush.msra.mxu0 0.0
        %782 = vmatpush.msra.mxu0 0.0
        %783 = vmatpush.msra.mxu0 0.0
        %784 = vmatpush.msra.mxu0 0.0
        %785 = vmatpush.msra.mxu0 0.0
        %786 = vmatpush.msra.mxu0 0.0
        %v787 = vand.u32 %v760, 4294901760
        %788 = vmatpush.msra.mxu0 %v787
        %v789 = vand.u32 %v767, 4294901760
        %v790 = vsub.f32 %v767, %v789
        %v791 = vand.u32 %v790, 4294901760
        %v792 = vsub.f32 %v790, %v791
        %v793 = vand.u32 %v792, 4294901760
        %794 = vmatmul.f32.gmra.mxu0 %v793
        %v795 = vpop.f32.mrf.mxu0
        %v796 = vadd.f32 %v763, %v795
        %v797 = vand.u32 %v770, 4294901760
        %v798 = vsub.f32 %v770, %v797
        %v799 = vand.u32 %v798, 4294901760
        %v800 = vsub.f32 %v798, %v799
        %v801 = vand.u32 %v800, 4294901760
        %802 = vmatmul.f32.gmra.mxu0 %v801
        %v803 = vpop.f32.mrf.mxu0
        %v804 = vadd.f32 %v763, %v803
        %805 = vdwg.mxu0
        %806 = vmatpush.msra.mxu0 0.0
        %807 = vmatpush.msra.mxu0 0.0
        %808 = vmatpush.msra.mxu0 0.0
        %809 = vmatpush.msra.mxu0 0.0
        %810 = vmatpush.msra.mxu0 0.0
        %811 = vmatpush.msra.mxu0 0.0
        %812 = vmatpush.msra.mxu0 0.0
        %813 = vmatpush.msra.mxu0 0.0
        %814 = vmatpush.msra.mxu0 0.0
        %815 = vmatpush.msra.mxu0 0.0
        %816 = vmatpush.msra.mxu0 0.0
        %817 = vmatpush.msra.mxu0 0.0
        %818 = vmatpush.msra.mxu0 0.0
        %819 = vmatpush.msra.mxu0 0.0
        %820 = vmatpush.msra.mxu0 0.0
        %v821 = vand.u32 %v760, 4294901760
        %v822 = vsub.f32 %v760, %v821
        %v823 = vand.u32 %v822, 4294901760
        %v824 = vsub.f32 %v822, %v823
        %v825 = vand.u32 %v824, 4294901760
        %826 = vmatpush.msra.mxu0 %v825
        %v827 = vand.u32 %v767, 4294901760
        %828 = vmatmul.f32.gmra.mxu0 %v827
        %v829 = vpop.f32.mrf.mxu0
        %v830 = vadd.f32 %v796, %v829
        %v831 = vand.u32 %v770, 4294901760
        %832 = vmatmul.f32.gmra.mxu0 %v831
        %v833 = vpop.f32.mrf.mxu0
        %v834 = vadd.f32 %v804, %v833
        %835 = vdwg.mxu0
        %836 = vmatpush.msra.mxu0 0.0
        %837 = vmatpush.msra.mxu0 0.0
        %838 = vmatpush.msra.mxu0 0.0
        %839 = vmatpush.msra.mxu0 0.0
        %840 = vmatpush.msra.mxu0 0.0
        %841 = vmatpush.msra.mxu0 0.0
        %842 = vmatpush.msra.mxu0 0.0
        %843 = vmatpush.msra.mxu0 0.0
        %844 = vmatpush.msra.mxu0 0.0
        %845 = vmatpush.msra.mxu0 0.0
        %846 = vmatpush.msra.mxu0 0.0
        %847 = vmatpush.msra.mxu0 0.0
        %848 = vmatpush.msra.mxu0 0.0
        %849 = vmatpush.msra.mxu0 0.0
        %850 = vmatpush.msra.mxu0 0.0
        %v851 = vand.u32 %v760, 4294901760
        %v852 = vsub.f32 %v760, %v851
        %853 = vmatpush.msra.mxu0 %v852
        %v854 = vand.u32 %v767, 4294901760
        %v855 = vsub.f32 %v767, %v854
        %856 = vmatmul.f32.gmra.mxu0 %v855
        %v857 = vpop.f32.mrf.mxu0
        %v858 = vadd.f32 %v830, %v857
        %v859 = vand.u32 %v770, 4294901760
        %v860 = vsub.f32 %v770, %v859
        %861 = vmatmul.f32.gmra.mxu0 %v860
        %v862 = vpop.f32.mrf.mxu0
        %v863 = vadd.f32 %v834, %v862
        %864 = vdwg.mxu0
        %865 = vmatpush.msra.mxu0 0.0
        %866 = vmatpush.msra.mxu0 0.0
        %867 = vmatpush.msra.mxu0 0.0
        %868 = vmatpush.msra.mxu0 0.0
        %869 = vmatpush.msra.mxu0 0.0
        %870 = vmatpush.msra.mxu0 0.0
        %871 = vmatpush.msra.mxu0 0.0
        %872 = vmatpush.msra.mxu0 0.0
        %873 = vmatpush.msra.mxu0 0.0
        %874 = vmatpush.msra.mxu0 0.0
        %875 = vmatpush.msra.mxu0 0.0
        %876 = vmatpush.msra.mxu0 0.0
        %877 = vmatpush.msra.mxu0 0.0
        %878 = vmatpush.msra.mxu0 0.0
        %879 = vmatpush.msra.mxu0 0.0
        %v880 = vand.u32 %v760, 4294901760
        %881 = vmatpush.msra.mxu0 %v880
        %v882 = vand.u32 %v767, 4294901760
        %v883 = vsub.f32 %v767, %v882
        %v884 = vand.u32 %v883, 4294901760
        %885 = vmatmul.f32.gmra.mxu0 %v884
        %v886 = vpop.f32.mrf.mxu0
        %v887 = vadd.f32 %v858, %v886
        %v888 = vand.u32 %v770, 4294901760
        %v889 = vsub.f32 %v770, %v888
        %v890 = vand.u32 %v889, 4294901760
        %891 = vmatmul.f32.gmra.mxu0 %v890
        %v892 = vpop.f32.mrf.mxu0
        %v893 = vadd.f32 %v863, %v892
        %894 = vdwg.mxu0
        %895 = vmatpush.msra.mxu0 0.0
        %896 = vmatpush.msra.mxu0 0.0
        %897 = vmatpush.msra.mxu0 0.0
        %898 = vmatpush.msra.mxu0 0.0
        %899 = vmatpush.msra.mxu0 0.0
        %900 = vmatpush.msra.mxu0 0.0
        %901 = vmatpush.msra.mxu0 0.0
        %902 = vmatpush.msra.mxu0 0.0
        %903 = vmatpush.msra.mxu0 0.0
        %904 = vmatpush.msra.mxu0 0.0
        %905 = vmatpush.msra.mxu0 0.0
        %906 = vmatpush.msra.mxu0 0.0
        %907 = vmatpush.msra.mxu0 0.0
        %908 = vmatpush.msra.mxu0 0.0
        %909 = vmatpush.msra.mxu0 0.0
        %v910 = vand.u32 %v760, 4294901760
        %v911 = vsub.f32 %v760, %v910
        %v912 = vand.u32 %v911, 4294901760
        %913 = vmatpush.msra.mxu0 %v912
        %v914 = vand.u32 %v767, 4294901760
        %915 = vmatmul.f32.gmra.mxu0 %v914
        %v916 = vpop.f32.mrf.mxu0
        %v917 = vadd.f32 %v887, %v916
        %v918 = vand.u32 %v770, 4294901760
        %919 = vmatmul.f32.gmra.mxu0 %v918
        %v920 = vpop.f32.mrf.mxu0
        %v921 = vadd.f32 %v893, %v920
        %922 = vdwg.mxu0
        %923 = vmatpush.msra.mxu0 0.0
        %924 = vmatpush.msra.mxu0 0.0
        %925 = vmatpush.msra.mxu0 0.0
        %926 = vmatpush.msra.mxu0 0.0
        %927 = vmatpush.msra.mxu0 0.0
        %928 = vmatpush.msra.mxu0 0.0
        %929 = vmatpush.msra.mxu0 0.0
        %930 = vmatpush.msra.mxu0 0.0
        %931 = vmatpush.msra.mxu0 0.0
        %932 = vmatpush.msra.mxu0 0.0
        %933 = vmatpush.msra.mxu0 0.0
        %934 = vmatpush.msra.mxu0 0.0
        %935 = vmatpush.msra.mxu0 0.0
        %936 = vmatpush.msra.mxu0 0.0
        %937 = vmatpush.msra.mxu0 0.0
        %v938 = vand.u32 %v760, 4294901760
        %939 = vmatpush.msra.mxu0 %v938
        %v940 = vand.u32 %v767, 4294901760
        %941 = vmatmul.f32.gmra.mxu0 %v940
        %v942 = vpop.f32.mrf.mxu0
        %v943 = vadd.f32 %v917, %v942
        %v944 = vand.u32 %v770, 4294901760
        %945 = vmatmul.f32.gmra.mxu0 %v944
        %v946 = vpop.f32.mrf.mxu0
        %v947 = vadd.f32 %v921, %v946
        %948 = vdwg.mxu0
        %v950 = vsel %vm662, 1.0, 0
        %v953 = vsel %vm662, %v724, 0
        %v956 = vsel %vm662, %v725, 0
        %v959 = vsel %vm662, %v739, 0
        %v962 = vsel %vm662, %v740, 0
        %v965 = vsel %vm662, %v756, 0
        %v968 = vsel %vm662, %v757, 0
        %970 = vmatpush.msra.mxu0 0.0
        %971 = vmatpush.msra.mxu0 0.0
        %972 = vmatpush.msra.mxu0 0.0
        %973 = vmatpush.msra.mxu0 0.0
        %974 = vmatpush.msra.mxu0 0.0
        %975 = vmatpush.msra.mxu0 0.0
        %976 = vmatpush.msra.mxu0 0.0
        %977 = vmatpush.msra.mxu0 0.0
        %978 = vmatpush.msra.mxu0 0.0
        %979 = vmatpush.msra.mxu0 0.0
        %980 = vmatpush.msra.mxu0 0.0
        %981 = vmatpush.msra.mxu0 0.0
        %982 = vmatpush.msra.mxu0 0.0
        %983 = vmatpush.msra.mxu0 0.0
        %v984 = vand.u32 %v759, 4294901760
        %985 = vmatpush.msra.mxu0 %v984
        %v986 = vand.u32 %v758, 4294901760
        %987 = vmatpush.msra.mxu0 %v986
        %v988 = vand.u32 %v950, 4294901760
        %v989 = vsub.f32 %v950, %v988
        %v990 = vand.u32 %v989, 4294901760
        %v991 = vsub.f32 %v989, %v990
        %v992 = vand.u32 %v991, 4294901760
        %993 = vmatmul.f32.gmra.mxu0 %v992
        %v994 = vpop.f32.mrf.mxu0
        %v995 = vadd.f32 0.0, %v994
        %v996 = vand.u32 %v950, 4294901760
        %v997 = vsub.f32 %v950, %v996
        %v998 = vand.u32 %v997, 4294901760
        %v999 = vsub.f32 %v997, %v998
        %v1000 = vand.u32 %v999, 4294901760
        %1001 = vmatmul.f32.gmra.mxu0 %v1000
        %v1002 = vpop.f32.mrf.mxu0
        %v1003 = vadd.f32 0.0, %v1002
        %v1004 = vand.u32 %v953, 4294901760
        %v1005 = vsub.f32 %v953, %v1004
        %v1006 = vand.u32 %v1005, 4294901760
        %v1007 = vsub.f32 %v1005, %v1006
        %v1008 = vand.u32 %v1007, 4294901760
        %1009 = vmatmul.f32.gmra.mxu0 %v1008
        %v1010 = vpop.f32.mrf.mxu0
        %v1011 = vadd.f32 0.0, %v1010
        %v1012 = vand.u32 %v956, 4294901760
        %v1013 = vsub.f32 %v956, %v1012
        %v1014 = vand.u32 %v1013, 4294901760
        %v1015 = vsub.f32 %v1013, %v1014
        %v1016 = vand.u32 %v1015, 4294901760
        %1017 = vmatmul.f32.gmra.mxu0 %v1016
        %v1018 = vpop.f32.mrf.mxu0
        %v1019 = vadd.f32 0.0, %v1018
        %v1020 = vand.u32 %v959, 4294901760
        %v1021 = vsub.f32 %v959, %v1020
        %v1022 = vand.u32 %v1021, 4294901760
        %v1023 = vsub.f32 %v1021, %v1022
        %v1024 = vand.u32 %v1023, 4294901760
        %1025 = vmatmul.f32.gmra.mxu0 %v1024
        %v1026 = vpop.f32.mrf.mxu0
        %v1027 = vadd.f32 0.0, %v1026
        %v1028 = vand.u32 %v962, 4294901760
        %v1029 = vsub.f32 %v962, %v1028
        %v1030 = vand.u32 %v1029, 4294901760
        %v1031 = vsub.f32 %v1029, %v1030
        %v1032 = vand.u32 %v1031, 4294901760
        %1033 = vmatmul.f32.gmra.mxu0 %v1032
        %v1034 = vpop.f32.mrf.mxu0
        %v1035 = vadd.f32 0.0, %v1034
        %v1036 = vand.u32 %v965, 4294901760
        %v1037 = vsub.f32 %v965, %v1036
        %v1038 = vand.u32 %v1037, 4294901760
        %v1039 = vsub.f32 %v1037, %v1038
        %v1040 = vand.u32 %v1039, 4294901760
        %1041 = vmatmul.f32.gmra.mxu0 %v1040
        %v1042 = vpop.f32.mrf.mxu0
        %v1043 = vadd.f32 0.0, %v1042
        %v1044 = vand.u32 %v968, 4294901760
        %v1045 = vsub.f32 %v968, %v1044
        %v1046 = vand.u32 %v1045, 4294901760
        %v1047 = vsub.f32 %v1045, %v1046
        %v1048 = vand.u32 %v1047, 4294901760
        %1049 = vmatmul.f32.gmra.mxu0 %v1048
        %v1050 = vpop.f32.mrf.mxu0
        %v1051 = vadd.f32 0.0, %v1050
        %1052 = vdwg.mxu0
        %1053 = vmatpush.msra.mxu0 0.0
        %1054 = vmatpush.msra.mxu0 0.0
        %1055 = vmatpush.msra.mxu0 0.0
        %1056 = vmatpush.msra.mxu0 0.0
        %1057 = vmatpush.msra.mxu0 0.0
        %1058 = vmatpush.msra.mxu0 0.0
        %1059 = vmatpush.msra.mxu0 0.0
        %1060 = vmatpush.msra.mxu0 0.0
        %1061 = vmatpush.msra.mxu0 0.0
        %1062 = vmatpush.msra.mxu0 0.0
        %1063 = vmatpush.msra.mxu0 0.0
        %1064 = vmatpush.msra.mxu0 0.0
        %1065 = vmatpush.msra.mxu0 0.0
        %1066 = vmatpush.msra.mxu0 0.0
        %v1067 = vand.u32 %v759, 4294901760
        %v1068 = vsub.f32 %v759, %v1067
        %v1069 = vand.u32 %v1068, 4294901760
        %v1070 = vsub.f32 %v1068, %v1069
        %v1071 = vand.u32 %v1070, 4294901760
        %1072 = vmatpush.msra.mxu0 %v1071
        %v1073 = vand.u32 %v758, 4294901760
        %v1074 = vsub.f32 %v758, %v1073
        %v1075 = vand.u32 %v1074, 4294901760
        %v1076 = vsub.f32 %v1074, %v1075
        %v1077 = vand.u32 %v1076, 4294901760
        %1078 = vmatpush.msra.mxu0 %v1077
        %v1079 = vand.u32 %v950, 4294901760
        %1080 = vmatmul.f32.gmra.mxu0 %v1079
        %v1081 = vpop.f32.mrf.mxu0
        %v1082 = vadd.f32 %v995, %v1081
        %v1083 = vand.u32 %v950, 4294901760
        %1084 = vmatmul.f32.gmra.mxu0 %v1083
        %v1085 = vpop.f32.mrf.mxu0
        %v1086 = vadd.f32 %v1003, %v1085
        %v1087 = vand.u32 %v953, 4294901760
        %1088 = vmatmul.f32.gmra.mxu0 %v1087
        %v1089 = vpop.f32.mrf.mxu0
        %v1090 = vadd.f32 %v1011, %v1089
        %v1091 = vand.u32 %v956, 4294901760
        %1092 = vmatmul.f32.gmra.mxu0 %v1091
        %v1093 = vpop.f32.mrf.mxu0
        %v1094 = vadd.f32 %v1019, %v1093
        %v1095 = vand.u32 %v959, 4294901760
        %1096 = vmatmul.f32.gmra.mxu0 %v1095
        %v1097 = vpop.f32.mrf.mxu0
        %v1098 = vadd.f32 %v1027, %v1097
        %v1099 = vand.u32 %v962, 4294901760
        %1100 = vmatmul.f32.gmra.mxu0 %v1099
        %v1101 = vpop.f32.mrf.mxu0
        %v1102 = vadd.f32 %v1035, %v1101
        %v1103 = vand.u32 %v965, 4294901760
        %1104 = vmatmul.f32.gmra.mxu0 %v1103
        %v1105 = vpop.f32.mrf.mxu0
        %v1106 = vadd.f32 %v1043, %v1105
        %v1107 = vand.u32 %v968, 4294901760
        %1108 = vmatmul.f32.gmra.mxu0 %v1107
        %v1109 = vpop.f32.mrf.mxu0
        %v1110 = vadd.f32 %v1051, %v1109
        %1111 = vdwg.mxu0
        %1112 = vmatpush.msra.mxu0 0.0
        %1113 = vmatpush.msra.mxu0 0.0
        %1114 = vmatpush.msra.mxu0 0.0
        %1115 = vmatpush.msra.mxu0 0.0
        %1116 = vmatpush.msra.mxu0 0.0
        %1117 = vmatpush.msra.mxu0 0.0
        %1118 = vmatpush.msra.mxu0 0.0
        %1119 = vmatpush.msra.mxu0 0.0
        %1120 = vmatpush.msra.mxu0 0.0
        %1121 = vmatpush.msra.mxu0 0.0
        %1122 = vmatpush.msra.mxu0 0.0
        %1123 = vmatpush.msra.mxu0 0.0
        %1124 = vmatpush.msra.mxu0 0.0
        %1125 = vmatpush.msra.mxu0 0.0
        %v1126 = vand.u32 %v759, 4294901760
        %v1127 = vsub.f32 %v759, %v1126
        %1128 = vmatpush.msra.mxu0 %v1127
        %v1129 = vand.u32 %v758, 4294901760
        %v1130 = vsub.f32 %v758, %v1129
        %1131 = vmatpush.msra.mxu0 %v1130
        %v1132 = vand.u32 %v950, 4294901760
        %v1133 = vsub.f32 %v950, %v1132
        %1134 = vmatmul.f32.gmra.mxu0 %v1133
        %v1135 = vpop.f32.mrf.mxu0
        %v1136 = vadd.f32 %v1082, %v1135
        %v1137 = vand.u32 %v950, 4294901760
        %v1138 = vsub.f32 %v950, %v1137
        %1139 = vmatmul.f32.gmra.mxu0 %v1138
        %v1140 = vpop.f32.mrf.mxu0
        %v1141 = vadd.f32 %v1086, %v1140
        %v1142 = vand.u32 %v953, 4294901760
        %v1143 = vsub.f32 %v953, %v1142
        %1144 = vmatmul.f32.gmra.mxu0 %v1143
        %v1145 = vpop.f32.mrf.mxu0
        %v1146 = vadd.f32 %v1090, %v1145
        %v1147 = vand.u32 %v956, 4294901760
        %v1148 = vsub.f32 %v956, %v1147
        %1149 = vmatmul.f32.gmra.mxu0 %v1148
        %v1150 = vpop.f32.mrf.mxu0
        %v1151 = vadd.f32 %v1094, %v1150
        %v1152 = vand.u32 %v959, 4294901760
        %v1153 = vsub.f32 %v959, %v1152
        %1154 = vmatmul.f32.gmra.mxu0 %v1153
        %v1155 = vpop.f32.mrf.mxu0
        %v1156 = vadd.f32 %v1098, %v1155
        %v1157 = vand.u32 %v962, 4294901760
        %v1158 = vsub.f32 %v962, %v1157
        %1159 = vmatmul.f32.gmra.mxu0 %v1158
        %v1160 = vpop.f32.mrf.mxu0
        %v1161 = vadd.f32 %v1102, %v1160
        %v1162 = vand.u32 %v965, 4294901760
        %v1163 = vsub.f32 %v965, %v1162
        %1164 = vmatmul.f32.gmra.mxu0 %v1163
        %v1165 = vpop.f32.mrf.mxu0
        %v1166 = vadd.f32 %v1106, %v1165
        %v1167 = vand.u32 %v968, 4294901760
        %v1168 = vsub.f32 %v968, %v1167
        %1169 = vmatmul.f32.gmra.mxu0 %v1168
        %v1170 = vpop.f32.mrf.mxu0
        %v1171 = vadd.f32 %v1110, %v1170
        %1172 = vdwg.mxu0
        %1173 = vmatpush.msra.mxu0 0.0
        %1174 = vmatpush.msra.mxu0 0.0
        %1175 = vmatpush.msra.mxu0 0.0
        %1176 = vmatpush.msra.mxu0 0.0
        %1177 = vmatpush.msra.mxu0 0.0
        %1178 = vmatpush.msra.mxu0 0.0
        %1179 = vmatpush.msra.mxu0 0.0
        %1180 = vmatpush.msra.mxu0 0.0
        %1181 = vmatpush.msra.mxu0 0.0
        %1182 = vmatpush.msra.mxu0 0.0
        %1183 = vmatpush.msra.mxu0 0.0
        %1184 = vmatpush.msra.mxu0 0.0
        %1185 = vmatpush.msra.mxu0 0.0
        %1186 = vmatpush.msra.mxu0 0.0
        %v1187 = vand.u32 %v759, 4294901760
        %1188 = vmatpush.msra.mxu0 %v1187
        %v1189 = vand.u32 %v758, 4294901760
        %1190 = vmatpush.msra.mxu0 %v1189
        %v1191 = vand.u32 %v950, 4294901760
        %v1192 = vsub.f32 %v950, %v1191
        %v1193 = vand.u32 %v1192, 4294901760
        %1194 = vmatmul.f32.gmra.mxu0 %v1193
        %v1195 = vpop.f32.mrf.mxu0
        %v1196 = vadd.f32 %v1136, %v1195
        %v1197 = vand.u32 %v950, 4294901760
        %v1198 = vsub.f32 %v950, %v1197
        %v1199 = vand.u32 %v1198, 4294901760
        %1200 = vmatmul.f32.gmra.mxu0 %v1199
        %v1201 = vpop.f32.mrf.mxu0
        %v1202 = vadd.f32 %v1141, %v1201
        %v1203 = vand.u32 %v953, 4294901760
        %v1204 = vsub.f32 %v953, %v1203
        %v1205 = vand.u32 %v1204, 4294901760
        %1206 = vmatmul.f32.gmra.mxu0 %v1205
        %v1207 = vpop.f32.mrf.mxu0
        %v1208 = vadd.f32 %v1146, %v1207
        %v1209 = vand.u32 %v956, 4294901760
        %v1210 = vsub.f32 %v956, %v1209
        %v1211 = vand.u32 %v1210, 4294901760
        %1212 = vmatmul.f32.gmra.mxu0 %v1211
        %v1213 = vpop.f32.mrf.mxu0
        %v1214 = vadd.f32 %v1151, %v1213
        %v1215 = vand.u32 %v959, 4294901760
        %v1216 = vsub.f32 %v959, %v1215
        %v1217 = vand.u32 %v1216, 4294901760
        %1218 = vmatmul.f32.gmra.mxu0 %v1217
        %v1219 = vpop.f32.mrf.mxu0
        %v1220 = vadd.f32 %v1156, %v1219
        %v1221 = vand.u32 %v962, 4294901760
        %v1222 = vsub.f32 %v962, %v1221
        %v1223 = vand.u32 %v1222, 4294901760
        %1224 = vmatmul.f32.gmra.mxu0 %v1223
        %v1225 = vpop.f32.mrf.mxu0
        %v1226 = vadd.f32 %v1161, %v1225
        %v1227 = vand.u32 %v965, 4294901760
        %v1228 = vsub.f32 %v965, %v1227
        %v1229 = vand.u32 %v1228, 4294901760
        %1230 = vmatmul.f32.gmra.mxu0 %v1229
        %v1231 = vpop.f32.mrf.mxu0
        %v1232 = vadd.f32 %v1166, %v1231
        %v1233 = vand.u32 %v968, 4294901760
        %v1234 = vsub.f32 %v968, %v1233
        %v1235 = vand.u32 %v1234, 4294901760
        %1236 = vmatmul.f32.gmra.mxu0 %v1235
        %v1237 = vpop.f32.mrf.mxu0
        %v1238 = vadd.f32 %v1171, %v1237
        %1239 = vdwg.mxu0
        %1240 = vmatpush.msra.mxu0 0.0
        %1241 = vmatpush.msra.mxu0 0.0
        %1242 = vmatpush.msra.mxu0 0.0
        %1243 = vmatpush.msra.mxu0 0.0
        %1244 = vmatpush.msra.mxu0 0.0
        %1245 = vmatpush.msra.mxu0 0.0
        %1246 = vmatpush.msra.mxu0 0.0
        %1247 = vmatpush.msra.mxu0 0.0
        %1248 = vmatpush.msra.mxu0 0.0
        %1249 = vmatpush.msra.mxu0 0.0
        %1250 = vmatpush.msra.mxu0 0.0
        %1251 = vmatpush.msra.mxu0 0.0
        %1252 = vmatpush.msra.mxu0 0.0
        %1253 = vmatpush.msra.mxu0 0.0
        %v1254 = vand.u32 %v759, 4294901760
        %v1255 = vsub.f32 %v759, %v1254
        %v1256 = vand.u32 %v1255, 4294901760
        %1257 = vmatpush.msra.mxu0 %v1256
        %v1258 = vand.u32 %v758, 4294901760
        %v1259 = vsub.f32 %v758, %v1258
        %v1260 = vand.u32 %v1259, 4294901760
        %1261 = vmatpush.msra.mxu0 %v1260
        %v1262 = vand.u32 %v950, 4294901760
        %1263 = vmatmul.f32.gmra.mxu0 %v1262
        %v1264 = vpop.f32.mrf.mxu0
        %v1265 = vadd.f32 %v1196, %v1264
        %v1266 = vand.u32 %v950, 4294901760
        %1267 = vmatmul.f32.gmra.mxu0 %v1266
        %v1268 = vpop.f32.mrf.mxu0
        %v1269 = vadd.f32 %v1202, %v1268
        %v1270 = vand.u32 %v953, 4294901760
        %1271 = vmatmul.f32.gmra.mxu0 %v1270
        %v1272 = vpop.f32.mrf.mxu0
        %v1273 = vadd.f32 %v1208, %v1272
        %v1274 = vand.u32 %v956, 4294901760
        %1275 = vmatmul.f32.gmra.mxu0 %v1274
        %v1276 = vpop.f32.mrf.mxu0
        %v1277 = vadd.f32 %v1214, %v1276
        %v1278 = vand.u32 %v959, 4294901760
        %1279 = vmatmul.f32.gmra.mxu0 %v1278
        %v1280 = vpop.f32.mrf.mxu0
        %v1281 = vadd.f32 %v1220, %v1280
        %v1282 = vand.u32 %v962, 4294901760
        %1283 = vmatmul.f32.gmra.mxu0 %v1282
        %v1284 = vpop.f32.mrf.mxu0
        %v1285 = vadd.f32 %v1226, %v1284
        %v1286 = vand.u32 %v965, 4294901760
        %1287 = vmatmul.f32.gmra.mxu0 %v1286
        %v1288 = vpop.f32.mrf.mxu0
        %v1289 = vadd.f32 %v1232, %v1288
        %v1290 = vand.u32 %v968, 4294901760
        %1291 = vmatmul.f32.gmra.mxu0 %v1290
        %v1292 = vpop.f32.mrf.mxu0
        %v1293 = vadd.f32 %v1238, %v1292
        %1294 = vdwg.mxu0
        %1295 = vmatpush.msra.mxu0 0.0
        %1296 = vmatpush.msra.mxu0 0.0
        %1297 = vmatpush.msra.mxu0 0.0
        %1298 = vmatpush.msra.mxu0 0.0
        %1299 = vmatpush.msra.mxu0 0.0
        %1300 = vmatpush.msra.mxu0 0.0
        %1301 = vmatpush.msra.mxu0 0.0
        %1302 = vmatpush.msra.mxu0 0.0
        %1303 = vmatpush.msra.mxu0 0.0
        %1304 = vmatpush.msra.mxu0 0.0
        %1305 = vmatpush.msra.mxu0 0.0
        %1306 = vmatpush.msra.mxu0 0.0
        %1307 = vmatpush.msra.mxu0 0.0
        %1308 = vmatpush.msra.mxu0 0.0
        %v1309 = vand.u32 %v759, 4294901760
        %1310 = vmatpush.msra.mxu0 %v1309
        %v1311 = vand.u32 %v758, 4294901760
        %1312 = vmatpush.msra.mxu0 %v1311
        %v1313 = vand.u32 %v950, 4294901760
        %1314 = vmatmul.f32.gmra.mxu0 %v1313
        %v1315 = vpop.f32.mrf.mxu0
        %v1316 = vadd.f32 %v1265, %v1315
        %v1317 = vand.u32 %v950, 4294901760
        %1318 = vmatmul.f32.gmra.mxu0 %v1317
        %v1319 = vpop.f32.mrf.mxu0
        %v1320 = vadd.f32 %v1269, %v1319
        %v1321 = vand.u32 %v953, 4294901760
        %1322 = vmatmul.f32.gmra.mxu0 %v1321
        %v1323 = vpop.f32.mrf.mxu0
        %v1324 = vadd.f32 %v1273, %v1323
        %v1325 = vand.u32 %v956, 4294901760
        %1326 = vmatmul.f32.gmra.mxu0 %v1325
        %v1327 = vpop.f32.mrf.mxu0
        %v1328 = vadd.f32 %v1277, %v1327
        %v1329 = vand.u32 %v959, 4294901760
        %1330 = vmatmul.f32.gmra.mxu0 %v1329
        %v1331 = vpop.f32.mrf.mxu0
        %v1332 = vadd.f32 %v1281, %v1331
        %v1333 = vand.u32 %v962, 4294901760
        %1334 = vmatmul.f32.gmra.mxu0 %v1333
        %v1335 = vpop.f32.mrf.mxu0
        %v1336 = vadd.f32 %v1285, %v1335
        %v1337 = vand.u32 %v965, 4294901760
        %1338 = vmatmul.f32.gmra.mxu0 %v1337
        %v1339 = vpop.f32.mrf.mxu0
        %v1340 = vadd.f32 %v1289, %v1339
        %v1341 = vand.u32 %v968, 4294901760
        %1342 = vmatmul.f32.gmra.mxu0 %v1341
        %v1343 = vpop.f32.mrf.mxu0
        %v1344 = vadd.f32 %v1293, %v1343
        %1345 = vdwg.mxu0
        %v1346 = vld [vmem:[%s7] sm:$0x1]
        %v1347 = vld [vmem:[%s6] sm:$0xff]
        %v1349 = vsel %vm765, %v1316, 0
        %v1352 = vsel %vm765, %v1320, 0
        %1354 = vmatpush.msra.mxu0 0.0
        %1355 = vmatpush.msra.mxu0 0.0
        %1356 = vmatpush.msra.mxu0 0.0
        %1357 = vmatpush.msra.mxu0 0.0
        %1358 = vmatpush.msra.mxu0 0.0
        %1359 = vmatpush.msra.mxu0 0.0
        %1360 = vmatpush.msra.mxu0 0.0
        %1361 = vmatpush.msra.mxu0 0.0
        %1362 = vmatpush.msra.mxu0 0.0
        %1363 = vmatpush.msra.mxu0 0.0
        %1364 = vmatpush.msra.mxu0 0.0
        %1365 = vmatpush.msra.mxu0 0.0
        %1366 = vmatpush.msra.mxu0 0.0
        %1367 = vmatpush.msra.mxu0 0.0
        %1368 = vmatpush.msra.mxu0 0.0
        %v1369 = vand.u32 %v1347, 4294901760
        %1370 = vmatpush.msra.mxu0 %v1369
        %v1371 = vand.u32 %v1349, 4294901760
        %v1372 = vsub.f32 %v1349, %v1371
        %v1373 = vand.u32 %v1372, 4294901760
        %v1374 = vsub.f32 %v1372, %v1373
        %v1375 = vand.u32 %v1374, 4294901760
        %1376 = vmatmul.f32.gmra.mxu0 %v1375
        %v1377 = vpop.f32.mrf.mxu0
        %v1378 = vadd.f32 0.0, %v1377
        %v1379 = vand.u32 %v1352, 4294901760
        %v1380 = vsub.f32 %v1352, %v1379
        %v1381 = vand.u32 %v1380, 4294901760
        %v1382 = vsub.f32 %v1380, %v1381
        %v1383 = vand.u32 %v1382, 4294901760
        %1384 = vmatmul.f32.gmra.mxu0 %v1383
        %v1385 = vpop.f32.mrf.mxu0
        %v1386 = vadd.f32 0.0, %v1385
        %1387 = vdwg.mxu0
        %1388 = vmatpush.msra.mxu0 0.0
        %1389 = vmatpush.msra.mxu0 0.0
        %1390 = vmatpush.msra.mxu0 0.0
        %1391 = vmatpush.msra.mxu0 0.0
        %1392 = vmatpush.msra.mxu0 0.0
        %1393 = vmatpush.msra.mxu0 0.0
        %1394 = vmatpush.msra.mxu0 0.0
        %1395 = vmatpush.msra.mxu0 0.0
        %1396 = vmatpush.msra.mxu0 0.0
        %1397 = vmatpush.msra.mxu0 0.0
        %1398 = vmatpush.msra.mxu0 0.0
        %1399 = vmatpush.msra.mxu0 0.0
        %1400 = vmatpush.msra.mxu0 0.0
        %1401 = vmatpush.msra.mxu0 0.0
        %1402 = vmatpush.msra.mxu0 0.0
        %v1403 = vand.u32 %v1347, 4294901760
        %v1404 = vsub.f32 %v1347, %v1403
        %v1405 = vand.u32 %v1404, 4294901760
        %v1406 = vsub.f32 %v1404, %v1405
        %v1407 = vand.u32 %v1406, 4294901760
        %1408 = vmatpush.msra.mxu0 %v1407
        %v1409 = vand.u32 %v1349, 4294901760
        %1410 = vmatmul.f32.gmra.mxu0 %v1409
        %v1411 = vpop.f32.mrf.mxu0
        %v1412 = vadd.f32 %v1378, %v1411
        %v1413 = vand.u32 %v1352, 4294901760
        %1414 = vmatmul.f32.gmra.mxu0 %v1413
        %v1415 = vpop.f32.mrf.mxu0
        %v1416 = vadd.f32 %v1386, %v1415
        %1417 = vdwg.mxu0
        %1418 = vmatpush.msra.mxu0 0.0
        %1419 = vmatpush.msra.mxu0 0.0
        %1420 = vmatpush.msra.mxu0 0.0
        %1421 = vmatpush.msra.mxu0 0.0
        %1422 = vmatpush.msra.mxu0 0.0
        %1423 = vmatpush.msra.mxu0 0.0
        %1424 = vmatpush.msra.mxu0 0.0
        %1425 = vmatpush.msra.mxu0 0.0
        %1426 = vmatpush.msra.mxu0 0.0
        %1427 = vmatpush.msra.mxu0 0.0
        %1428 = vmatpush.msra.mxu0 0.0
        %1429 = vmatpush.msra.mxu0 0.0
        %1430 = vmatpush.msra.mxu0 0.0
        %1431 = vmatpush.msra.mxu0 0.0
        %1432 = vmatpush.msra.mxu0 0.0
        %v1433 = vand.u32 %v1347, 4294901760
        %v1434 = vsub.f32 %v1347, %v1433
        %1435 = vmatpush.msra.mxu0 %v1434
        %v1436 = vand.u32 %v1349, 4294901760
        %v1437 = vsub.f32 %v1349, %v1436
        %1438 = vmatmul.f32.gmra.mxu0 %v1437
        %v1439 = vpop.f32.mrf.mxu0
        %v1440 = vadd.f32 %v1412, %v1439
        %v1441 = vand.u32 %v1352, 4294901760
        %v1442 = vsub.f32 %v1352, %v1441
        %1443 = vmatmul.f32.gmra.mxu0 %v1442
        %v1444 = vpop.f32.mrf.mxu0
        %v1445 = vadd.f32 %v1416, %v1444
        %1446 = vdwg.mxu0
        %1447 = vmatpush.msra.mxu0 0.0
        %1448 = vmatpush.msra.mxu0 0.0
        %1449 = vmatpush.msra.mxu0 0.0
        %1450 = vmatpush.msra.mxu0 0.0
        %1451 = vmatpush.msra.mxu0 0.0
        %1452 = vmatpush.msra.mxu0 0.0
        %1453 = vmatpush.msra.mxu0 0.0
        %1454 = vmatpush.msra.mxu0 0.0
        %1455 = vmatpush.msra.mxu0 0.0
        %1456 = vmatpush.msra.mxu0 0.0
        %1457 = vmatpush.msra.mxu0 0.0
        %1458 = vmatpush.msra.mxu0 0.0
        %1459 = vmatpush.msra.mxu0 0.0
        %1460 = vmatpush.msra.mxu0 0.0
        %1461 = vmatpush.msra.mxu0 0.0
        %v1462 = vand.u32 %v1347, 4294901760
        %1463 = vmatpush.msra.mxu0 %v1462
        %v1464 = vand.u32 %v1349, 4294901760
        %v1465 = vsub.f32 %v1349, %v1464
        %v1466 = vand.u32 %v1465, 4294901760
        %1467 = vmatmul.f32.gmra.mxu0 %v1466
        %v1468 = vpop.f32.mrf.mxu0
        %v1469 = vadd.f32 %v1440, %v1468
        %v1470 = vand.u32 %v1352, 4294901760
        %v1471 = vsub.f32 %v1352, %v1470
        %v1472 = vand.u32 %v1471, 4294901760
        %1473 = vmatmul.f32.gmra.mxu0 %v1472
        %v1474 = vpop.f32.mrf.mxu0
        %v1475 = vadd.f32 %v1445, %v1474
        %1476 = vdwg.mxu0
        %1477 = vmatpush.msra.mxu0 0.0
        %1478 = vmatpush.msra.mxu0 0.0
        %1479 = vmatpush.msra.mxu0 0.0
        %1480 = vmatpush.msra.mxu0 0.0
        %1481 = vmatpush.msra.mxu0 0.0
        %1482 = vmatpush.msra.mxu0 0.0
        %1483 = vmatpush.msra.mxu0 0.0
        %1484 = vmatpush.msra.mxu0 0.0
        %1485 = vmatpush.msra.mxu0 0.0
        %1486 = vmatpush.msra.mxu0 0.0
        %1487 = vmatpush.msra.mxu0 0.0
        %1488 = vmatpush.msra.mxu0 0.0
        %1489 = vmatpush.msra.mxu0 0.0
        %1490 = vmatpush.msra.mxu0 0.0
        %1491 = vmatpush.msra.mxu0 0.0
        %v1492 = vand.u32 %v1347, 4294901760
        %v1493 = vsub.f32 %v1347, %v1492
        %v1494 = vand.u32 %v1493, 4294901760
        %1495 = vmatpush.msra.mxu0 %v1494
        %v1496 = vand.u32 %v1349, 4294901760
        %1497 = vmatmul.f32.gmra.mxu0 %v1496
        %v1498 = vpop.f32.mrf.mxu0
        %v1499 = vadd.f32 %v1469, %v1498
        %v1500 = vand.u32 %v1352, 4294901760
        %1501 = vmatmul.f32.gmra.mxu0 %v1500
        %v1502 = vpop.f32.mrf.mxu0
        %v1503 = vadd.f32 %v1475, %v1502
        %1504 = vdwg.mxu0
        %1505 = vmatpush.msra.mxu0 0.0
        %1506 = vmatpush.msra.mxu0 0.0
        %1507 = vmatpush.msra.mxu0 0.0
        %1508 = vmatpush.msra.mxu0 0.0
        %1509 = vmatpush.msra.mxu0 0.0
        %1510 = vmatpush.msra.mxu0 0.0
        %1511 = vmatpush.msra.mxu0 0.0
        %1512 = vmatpush.msra.mxu0 0.0
        %1513 = vmatpush.msra.mxu0 0.0
        %1514 = vmatpush.msra.mxu0 0.0
        %1515 = vmatpush.msra.mxu0 0.0
        %1516 = vmatpush.msra.mxu0 0.0
        %1517 = vmatpush.msra.mxu0 0.0
        %1518 = vmatpush.msra.mxu0 0.0
        %1519 = vmatpush.msra.mxu0 0.0
        %v1520 = vand.u32 %v1347, 4294901760
        %1521 = vmatpush.msra.mxu0 %v1520
        %v1522 = vand.u32 %v1349, 4294901760
        %1523 = vmatmul.f32.gmra.mxu0 %v1522
        %v1524 = vpop.f32.mrf.mxu0
        %v1525 = vadd.f32 %v1499, %v1524
        %v1526 = vand.u32 %v1352, 4294901760
        %1527 = vmatmul.f32.gmra.mxu0 %v1526
        %v1528 = vpop.f32.mrf.mxu0
        %v1529 = vadd.f32 %v1503, %v1528
        %1530 = vdwg.mxu0
        %v1532 = vperm.slane %v1346, 0
        %v1534 = vadd.f32 %v1532, %v1525
        %v1535 = vadd.f32 %v1532, %v1529
        %v1536 = vld [vmem:[%s6 + $0x8] sm:$0xff]
        %v1538 = vsel %vm765, %v1324, 0
        %v1541 = vsel %vm765, %v1328, 0
        %1543 = vmatpush.msra.mxu0 0.0
        %1544 = vmatpush.msra.mxu0 0.0
        %1545 = vmatpush.msra.mxu0 0.0
        %1546 = vmatpush.msra.mxu0 0.0
        %1547 = vmatpush.msra.mxu0 0.0
        %1548 = vmatpush.msra.mxu0 0.0
        %1549 = vmatpush.msra.mxu0 0.0
        %1550 = vmatpush.msra.mxu0 0.0
        %1551 = vmatpush.msra.mxu0 0.0
        %1552 = vmatpush.msra.mxu0 0.0
        %1553 = vmatpush.msra.mxu0 0.0
        %1554 = vmatpush.msra.mxu0 0.0
        %1555 = vmatpush.msra.mxu0 0.0
        %1556 = vmatpush.msra.mxu0 0.0
        %1557 = vmatpush.msra.mxu0 0.0
        %v1558 = vand.u32 %v1536, 4294901760
        %1559 = vmatpush.msra.mxu0 %v1558
        %v1560 = vand.u32 %v1538, 4294901760
        %v1561 = vsub.f32 %v1538, %v1560
        %v1562 = vand.u32 %v1561, 4294901760
        %v1563 = vsub.f32 %v1561, %v1562
        %v1564 = vand.u32 %v1563, 4294901760
        %1565 = vmatmul.f32.gmra.mxu0 %v1564
        %v1566 = vpop.f32.mrf.mxu0
        %v1567 = vadd.f32 0.0, %v1566
        %v1568 = vand.u32 %v1541, 4294901760
        %v1569 = vsub.f32 %v1541, %v1568
        %v1570 = vand.u32 %v1569, 4294901760
        %v1571 = vsub.f32 %v1569, %v1570
        %v1572 = vand.u32 %v1571, 4294901760
        %1573 = vmatmul.f32.gmra.mxu0 %v1572
        %v1574 = vpop.f32.mrf.mxu0
        %v1575 = vadd.f32 0.0, %v1574
        %1576 = vdwg.mxu0
        %1577 = vmatpush.msra.mxu0 0.0
        %1578 = vmatpush.msra.mxu0 0.0
        %1579 = vmatpush.msra.mxu0 0.0
        %1580 = vmatpush.msra.mxu0 0.0
        %1581 = vmatpush.msra.mxu0 0.0
        %1582 = vmatpush.msra.mxu0 0.0
        %1583 = vmatpush.msra.mxu0 0.0
        %1584 = vmatpush.msra.mxu0 0.0
        %1585 = vmatpush.msra.mxu0 0.0
        %1586 = vmatpush.msra.mxu0 0.0
        %1587 = vmatpush.msra.mxu0 0.0
        %1588 = vmatpush.msra.mxu0 0.0
        %1589 = vmatpush.msra.mxu0 0.0
        %1590 = vmatpush.msra.mxu0 0.0
        %1591 = vmatpush.msra.mxu0 0.0
        %v1592 = vand.u32 %v1536, 4294901760
        %v1593 = vsub.f32 %v1536, %v1592
        %v1594 = vand.u32 %v1593, 4294901760
        %v1595 = vsub.f32 %v1593, %v1594
        %v1596 = vand.u32 %v1595, 4294901760
        %1597 = vmatpush.msra.mxu0 %v1596
        %v1598 = vand.u32 %v1538, 4294901760
        %1599 = vmatmul.f32.gmra.mxu0 %v1598
        %v1600 = vpop.f32.mrf.mxu0
        %v1601 = vadd.f32 %v1567, %v1600
        %v1602 = vand.u32 %v1541, 4294901760
        %1603 = vmatmul.f32.gmra.mxu0 %v1602
        %v1604 = vpop.f32.mrf.mxu0
        %v1605 = vadd.f32 %v1575, %v1604
        %1606 = vdwg.mxu0
        %1607 = vmatpush.msra.mxu0 0.0
        %1608 = vmatpush.msra.mxu0 0.0
        %1609 = vmatpush.msra.mxu0 0.0
        %1610 = vmatpush.msra.mxu0 0.0
        %1611 = vmatpush.msra.mxu0 0.0
        %1612 = vmatpush.msra.mxu0 0.0
        %1613 = vmatpush.msra.mxu0 0.0
        %1614 = vmatpush.msra.mxu0 0.0
        %1615 = vmatpush.msra.mxu0 0.0
        %1616 = vmatpush.msra.mxu0 0.0
        %1617 = vmatpush.msra.mxu0 0.0
        %1618 = vmatpush.msra.mxu0 0.0
        %1619 = vmatpush.msra.mxu0 0.0
        %1620 = vmatpush.msra.mxu0 0.0
        %1621 = vmatpush.msra.mxu0 0.0
        %v1622 = vand.u32 %v1536, 4294901760
        %v1623 = vsub.f32 %v1536, %v1622
        %1624 = vmatpush.msra.mxu0 %v1623
        %v1625 = vand.u32 %v1538, 4294901760
        %v1626 = vsub.f32 %v1538, %v1625
        %1627 = vmatmul.f32.gmra.mxu0 %v1626
        %v1628 = vpop.f32.mrf.mxu0
        %v1629 = vadd.f32 %v1601, %v1628
        %v1630 = vand.u32 %v1541, 4294901760
        %v1631 = vsub.f32 %v1541, %v1630
        %1632 = vmatmul.f32.gmra.mxu0 %v1631
        %v1633 = vpop.f32.mrf.mxu0
        %v1634 = vadd.f32 %v1605, %v1633
        %1635 = vdwg.mxu0
        %1636 = vmatpush.msra.mxu0 0.0
        %1637 = vmatpush.msra.mxu0 0.0
        %1638 = vmatpush.msra.mxu0 0.0
        %1639 = vmatpush.msra.mxu0 0.0
        %1640 = vmatpush.msra.mxu0 0.0
        %1641 = vmatpush.msra.mxu0 0.0
        %1642 = vmatpush.msra.mxu0 0.0
        %1643 = vmatpush.msra.mxu0 0.0
        %1644 = vmatpush.msra.mxu0 0.0
        %1645 = vmatpush.msra.mxu0 0.0
        %1646 = vmatpush.msra.mxu0 0.0
        %1647 = vmatpush.msra.mxu0 0.0
        %1648 = vmatpush.msra.mxu0 0.0
        %1649 = vmatpush.msra.mxu0 0.0
        %1650 = vmatpush.msra.mxu0 0.0
        %v1651 = vand.u32 %v1536, 4294901760
        %1652 = vmatpush.msra.mxu0 %v1651
        %v1653 = vand.u32 %v1538, 4294901760
        %v1654 = vsub.f32 %v1538, %v1653
        %v1655 = vand.u32 %v1654, 4294901760
        %1656 = vmatmul.f32.gmra.mxu0 %v1655
        %v1657 = vpop.f32.mrf.mxu0
        %v1658 = vadd.f32 %v1629, %v1657
        %v1659 = vand.u32 %v1541, 4294901760
        %v1660 = vsub.f32 %v1541, %v1659
        %v1661 = vand.u32 %v1660, 4294901760
        %1662 = vmatmul.f32.gmra.mxu0 %v1661
        %v1663 = vpop.f32.mrf.mxu0
        %v1664 = vadd.f32 %v1634, %v1663
        %1665 = vdwg.mxu0
        %1666 = vmatpush.msra.mxu0 0.0
        %1667 = vmatpush.msra.mxu0 0.0
        %1668 = vmatpush.msra.mxu0 0.0
        %1669 = vmatpush.msra.mxu0 0.0
        %1670 = vmatpush.msra.mxu0 0.0
        %1671 = vmatpush.msra.mxu0 0.0
        %1672 = vmatpush.msra.mxu0 0.0
        %1673 = vmatpush.msra.mxu0 0.0
        %1674 = vmatpush.msra.mxu0 0.0
        %1675 = vmatpush.msra.mxu0 0.0
        %1676 = vmatpush.msra.mxu0 0.0
        %1677 = vmatpush.msra.mxu0 0.0
        %1678 = vmatpush.msra.mxu0 0.0
        %1679 = vmatpush.msra.mxu0 0.0
        %1680 = vmatpush.msra.mxu0 0.0
        %v1681 = vand.u32 %v1536, 4294901760
        %v1682 = vsub.f32 %v1536, %v1681
        %v1683 = vand.u32 %v1682, 4294901760
        %1684 = vmatpush.msra.mxu0 %v1683
        %v1685 = vand.u32 %v1538, 4294901760
        %1686 = vmatmul.f32.gmra.mxu0 %v1685
        %v1687 = vpop.f32.mrf.mxu0
        %v1688 = vadd.f32 %v1658, %v1687
        %v1689 = vand.u32 %v1541, 4294901760
        %1690 = vmatmul.f32.gmra.mxu0 %v1689
        %v1691 = vpop.f32.mrf.mxu0
        %v1692 = vadd.f32 %v1664, %v1691
        %1693 = vdwg.mxu0
        %1694 = vmatpush.msra.mxu0 0.0
        %1695 = vmatpush.msra.mxu0 0.0
        %1696 = vmatpush.msra.mxu0 0.0
        %1697 = vmatpush.msra.mxu0 0.0
        %1698 = vmatpush.msra.mxu0 0.0
        %1699 = vmatpush.msra.mxu0 0.0
        %1700 = vmatpush.msra.mxu0 0.0
        %1701 = vmatpush.msra.mxu0 0.0
        %1702 = vmatpush.msra.mxu0 0.0
        %1703 = vmatpush.msra.mxu0 0.0
        %1704 = vmatpush.msra.mxu0 0.0
        %1705 = vmatpush.msra.mxu0 0.0
        %1706 = vmatpush.msra.mxu0 0.0
        %1707 = vmatpush.msra.mxu0 0.0
        %1708 = vmatpush.msra.mxu0 0.0
        %v1709 = vand.u32 %v1536, 4294901760
        %1710 = vmatpush.msra.mxu0 %v1709
        %v1711 = vand.u32 %v1538, 4294901760
        %1712 = vmatmul.f32.gmra.mxu0 %v1711
        %v1713 = vpop.f32.mrf.mxu0
        %v1714 = vadd.f32 %v1688, %v1713
        %v1715 = vand.u32 %v1541, 4294901760
        %1716 = vmatmul.f32.gmra.mxu0 %v1715
        %v1717 = vpop.f32.mrf.mxu0
        %v1718 = vadd.f32 %v1692, %v1717
        %1719 = vdwg.mxu0
        %v1720 = vadd.f32 %v1534, %v1714
        %v1721 = vadd.f32 %v1535, %v1718
        %v1722 = vld [vmem:[%s6 + $0x10] sm:$0xff]
        %v1724 = vsel %vm765, %v1332, 0
        %v1727 = vsel %vm765, %v1336, 0
        %1729 = vmatpush.msra.mxu0 0.0
        %1730 = vmatpush.msra.mxu0 0.0
        %1731 = vmatpush.msra.mxu0 0.0
        %1732 = vmatpush.msra.mxu0 0.0
        %1733 = vmatpush.msra.mxu0 0.0
        %1734 = vmatpush.msra.mxu0 0.0
        %1735 = vmatpush.msra.mxu0 0.0
        %1736 = vmatpush.msra.mxu0 0.0
        %1737 = vmatpush.msra.mxu0 0.0
        %1738 = vmatpush.msra.mxu0 0.0
        %1739 = vmatpush.msra.mxu0 0.0
        %1740 = vmatpush.msra.mxu0 0.0
        %1741 = vmatpush.msra.mxu0 0.0
        %1742 = vmatpush.msra.mxu0 0.0
        %1743 = vmatpush.msra.mxu0 0.0
        %v1744 = vand.u32 %v1722, 4294901760
        %1745 = vmatpush.msra.mxu0 %v1744
        %v1746 = vand.u32 %v1724, 4294901760
        %v1747 = vsub.f32 %v1724, %v1746
        %v1748 = vand.u32 %v1747, 4294901760
        %v1749 = vsub.f32 %v1747, %v1748
        %v1750 = vand.u32 %v1749, 4294901760
        %1751 = vmatmul.f32.gmra.mxu0 %v1750
        %v1752 = vpop.f32.mrf.mxu0
        %v1753 = vadd.f32 0.0, %v1752
        %v1754 = vand.u32 %v1727, 4294901760
        %v1755 = vsub.f32 %v1727, %v1754
        %v1756 = vand.u32 %v1755, 4294901760
        %v1757 = vsub.f32 %v1755, %v1756
        %v1758 = vand.u32 %v1757, 4294901760
        %1759 = vmatmul.f32.gmra.mxu0 %v1758
        %v1760 = vpop.f32.mrf.mxu0
        %v1761 = vadd.f32 0.0, %v1760
        %1762 = vdwg.mxu0
        %1763 = vmatpush.msra.mxu0 0.0
        %1764 = vmatpush.msra.mxu0 0.0
        %1765 = vmatpush.msra.mxu0 0.0
        %1766 = vmatpush.msra.mxu0 0.0
        %1767 = vmatpush.msra.mxu0 0.0
        %1768 = vmatpush.msra.mxu0 0.0
        %1769 = vmatpush.msra.mxu0 0.0
        %1770 = vmatpush.msra.mxu0 0.0
        %1771 = vmatpush.msra.mxu0 0.0
        %1772 = vmatpush.msra.mxu0 0.0
        %1773 = vmatpush.msra.mxu0 0.0
        %1774 = vmatpush.msra.mxu0 0.0
        %1775 = vmatpush.msra.mxu0 0.0
        %1776 = vmatpush.msra.mxu0 0.0
        %1777 = vmatpush.msra.mxu0 0.0
        %v1778 = vand.u32 %v1722, 4294901760
        %v1779 = vsub.f32 %v1722, %v1778
        %v1780 = vand.u32 %v1779, 4294901760
        %v1781 = vsub.f32 %v1779, %v1780
        %v1782 = vand.u32 %v1781, 4294901760
        %1783 = vmatpush.msra.mxu0 %v1782
        %v1784 = vand.u32 %v1724, 4294901760
        %1785 = vmatmul.f32.gmra.mxu0 %v1784
        %v1786 = vpop.f32.mrf.mxu0
        %v1787 = vadd.f32 %v1753, %v1786
        %v1788 = vand.u32 %v1727, 4294901760
        %1789 = vmatmul.f32.gmra.mxu0 %v1788
        %v1790 = vpop.f32.mrf.mxu0
        %v1791 = vadd.f32 %v1761, %v1790
        %1792 = vdwg.mxu0
        %1793 = vmatpush.msra.mxu0 0.0
        %1794 = vmatpush.msra.mxu0 0.0
        %1795 = vmatpush.msra.mxu0 0.0
        %1796 = vmatpush.msra.mxu0 0.0
        %1797 = vmatpush.msra.mxu0 0.0
        %1798 = vmatpush.msra.mxu0 0.0
        %1799 = vmatpush.msra.mxu0 0.0
        %1800 = vmatpush.msra.mxu0 0.0
        %1801 = vmatpush.msra.mxu0 0.0
        %1802 = vmatpush.msra.mxu0 0.0
        %1803 = vmatpush.msra.mxu0 0.0
        %1804 = vmatpush.msra.mxu0 0.0
        %1805 = vmatpush.msra.mxu0 0.0
        %1806 = vmatpush.msra.mxu0 0.0
        %1807 = vmatpush.msra.mxu0 0.0
        %v1808 = vand.u32 %v1722, 4294901760
        %v1809 = vsub.f32 %v1722, %v1808
        %1810 = vmatpush.msra.mxu0 %v1809
        %v1811 = vand.u32 %v1724, 4294901760
        %v1812 = vsub.f32 %v1724, %v1811
        %1813 = vmatmul.f32.gmra.mxu0 %v1812
        %v1814 = vpop.f32.mrf.mxu0
        %v1815 = vadd.f32 %v1787, %v1814
        %v1816 = vand.u32 %v1727, 4294901760
        %v1817 = vsub.f32 %v1727, %v1816
        %1818 = vmatmul.f32.gmra.mxu0 %v1817
        %v1819 = vpop.f32.mrf.mxu0
        %v1820 = vadd.f32 %v1791, %v1819
        %1821 = vdwg.mxu0
        %1822 = vmatpush.msra.mxu0 0.0
        %1823 = vmatpush.msra.mxu0 0.0
        %1824 = vmatpush.msra.mxu0 0.0
        %1825 = vmatpush.msra.mxu0 0.0
        %1826 = vmatpush.msra.mxu0 0.0
        %1827 = vmatpush.msra.mxu0 0.0
        %1828 = vmatpush.msra.mxu0 0.0
        %1829 = vmatpush.msra.mxu0 0.0
        %1830 = vmatpush.msra.mxu0 0.0
        %1831 = vmatpush.msra.mxu0 0.0
        %1832 = vmatpush.msra.mxu0 0.0
        %1833 = vmatpush.msra.mxu0 0.0
        %1834 = vmatpush.msra.mxu0 0.0
        %1835 = vmatpush.msra.mxu0 0.0
        %1836 = vmatpush.msra.mxu0 0.0
        %v1837 = vand.u32 %v1722, 4294901760
        %1838 = vmatpush.msra.mxu0 %v1837
        %v1839 = vand.u32 %v1724, 4294901760
        %v1840 = vsub.f32 %v1724, %v1839
        %v1841 = vand.u32 %v1840, 4294901760
        %1842 = vmatmul.f32.gmra.mxu0 %v1841
        %v1843 = vpop.f32.mrf.mxu0
        %v1844 = vadd.f32 %v1815, %v1843
        %v1845 = vand.u32 %v1727, 4294901760
        %v1846 = vsub.f32 %v1727, %v1845
        %v1847 = vand.u32 %v1846, 4294901760
        %1848 = vmatmul.f32.gmra.mxu0 %v1847
        %v1849 = vpop.f32.mrf.mxu0
        %v1850 = vadd.f32 %v1820, %v1849
        %1851 = vdwg.mxu0
        %1852 = vmatpush.msra.mxu0 0.0
        %1853 = vmatpush.msra.mxu0 0.0
        %1854 = vmatpush.msra.mxu0 0.0
        %1855 = vmatpush.msra.mxu0 0.0
        %1856 = vmatpush.msra.mxu0 0.0
        %1857 = vmatpush.msra.mxu0 0.0
        %1858 = vmatpush.msra.mxu0 0.0
        %1859 = vmatpush.msra.mxu0 0.0
        %1860 = vmatpush.msra.mxu0 0.0
        %1861 = vmatpush.msra.mxu0 0.0
        %1862 = vmatpush.msra.mxu0 0.0
        %1863 = vmatpush.msra.mxu0 0.0
        %1864 = vmatpush.msra.mxu0 0.0
        %1865 = vmatpush.msra.mxu0 0.0
        %1866 = vmatpush.msra.mxu0 0.0
        %v1867 = vand.u32 %v1722, 4294901760
        %v1868 = vsub.f32 %v1722, %v1867
        %v1869 = vand.u32 %v1868, 4294901760
        %1870 = vmatpush.msra.mxu0 %v1869
        %v1871 = vand.u32 %v1724, 4294901760
        %1872 = vmatmul.f32.gmra.mxu0 %v1871
        %v1873 = vpop.f32.mrf.mxu0
        %v1874 = vadd.f32 %v1844, %v1873
        %v1875 = vand.u32 %v1727, 4294901760
        %1876 = vmatmul.f32.gmra.mxu0 %v1875
        %v1877 = vpop.f32.mrf.mxu0
        %v1878 = vadd.f32 %v1850, %v1877
        %1879 = vdwg.mxu0
        %1880 = vmatpush.msra.mxu0 0.0
        %1881 = vmatpush.msra.mxu0 0.0
        %1882 = vmatpush.msra.mxu0 0.0
        %1883 = vmatpush.msra.mxu0 0.0
        %1884 = vmatpush.msra.mxu0 0.0
        %1885 = vmatpush.msra.mxu0 0.0
        %1886 = vmatpush.msra.mxu0 0.0
        %1887 = vmatpush.msra.mxu0 0.0
        %1888 = vmatpush.msra.mxu0 0.0
        %1889 = vmatpush.msra.mxu0 0.0
        %1890 = vmatpush.msra.mxu0 0.0
        %1891 = vmatpush.msra.mxu0 0.0
        %1892 = vmatpush.msra.mxu0 0.0
        %1893 = vmatpush.msra.mxu0 0.0
        %1894 = vmatpush.msra.mxu0 0.0
        %v1895 = vand.u32 %v1722, 4294901760
        %1896 = vmatpush.msra.mxu0 %v1895
        %v1897 = vand.u32 %v1724, 4294901760
        %1898 = vmatmul.f32.gmra.mxu0 %v1897
        %v1899 = vpop.f32.mrf.mxu0
        %v1900 = vadd.f32 %v1874, %v1899
        %v1901 = vand.u32 %v1727, 4294901760
        %1902 = vmatmul.f32.gmra.mxu0 %v1901
        %v1903 = vpop.f32.mrf.mxu0
        %v1904 = vadd.f32 %v1878, %v1903
        %1905 = vdwg.mxu0
        %v1906 = vadd.f32 %v1720, %v1900
        %v1907 = vadd.f32 %v1721, %v1904
        %v1908 = vld [vmem:[%s6 + $0x18] sm:$0xff]
        %v1910 = vsel %vm765, %v1340, 0
        %v1913 = vsel %vm765, %v1344, 0
        %1915 = vmatpush.msra.mxu0 0.0
        %1916 = vmatpush.msra.mxu0 0.0
        %1917 = vmatpush.msra.mxu0 0.0
        %1918 = vmatpush.msra.mxu0 0.0
        %1919 = vmatpush.msra.mxu0 0.0
        %1920 = vmatpush.msra.mxu0 0.0
        %1921 = vmatpush.msra.mxu0 0.0
        %1922 = vmatpush.msra.mxu0 0.0
        %1923 = vmatpush.msra.mxu0 0.0
        %1924 = vmatpush.msra.mxu0 0.0
        %1925 = vmatpush.msra.mxu0 0.0
        %1926 = vmatpush.msra.mxu0 0.0
        %1927 = vmatpush.msra.mxu0 0.0
        %1928 = vmatpush.msra.mxu0 0.0
        %1929 = vmatpush.msra.mxu0 0.0
        %v1930 = vand.u32 %v1908, 4294901760
        %1931 = vmatpush.msra.mxu0 %v1930
        %v1932 = vand.u32 %v1910, 4294901760
        %v1933 = vsub.f32 %v1910, %v1932
        %v1934 = vand.u32 %v1933, 4294901760
        %v1935 = vsub.f32 %v1933, %v1934
        %v1936 = vand.u32 %v1935, 4294901760
        %1937 = vmatmul.f32.gmra.mxu0 %v1936
        %v1938 = vpop.f32.mrf.mxu0
        %v1939 = vadd.f32 0.0, %v1938
        %v1940 = vand.u32 %v1913, 4294901760
        %v1941 = vsub.f32 %v1913, %v1940
        %v1942 = vand.u32 %v1941, 4294901760
        %v1943 = vsub.f32 %v1941, %v1942
        %v1944 = vand.u32 %v1943, 4294901760
        %1945 = vmatmul.f32.gmra.mxu0 %v1944
        %v1946 = vpop.f32.mrf.mxu0
        %v1947 = vadd.f32 0.0, %v1946
        %1948 = vdwg.mxu0
        %1949 = vmatpush.msra.mxu0 0.0
        %1950 = vmatpush.msra.mxu0 0.0
        %1951 = vmatpush.msra.mxu0 0.0
        %1952 = vmatpush.msra.mxu0 0.0
        %1953 = vmatpush.msra.mxu0 0.0
        %1954 = vmatpush.msra.mxu0 0.0
        %1955 = vmatpush.msra.mxu0 0.0
        %1956 = vmatpush.msra.mxu0 0.0
        %1957 = vmatpush.msra.mxu0 0.0
        %1958 = vmatpush.msra.mxu0 0.0
        %1959 = vmatpush.msra.mxu0 0.0
        %1960 = vmatpush.msra.mxu0 0.0
        %1961 = vmatpush.msra.mxu0 0.0
        %1962 = vmatpush.msra.mxu0 0.0
        %1963 = vmatpush.msra.mxu0 0.0
        %v1964 = vand.u32 %v1908, 4294901760
        %v1965 = vsub.f32 %v1908, %v1964
        %v1966 = vand.u32 %v1965, 4294901760
        %v1967 = vsub.f32 %v1965, %v1966
        %v1968 = vand.u32 %v1967, 4294901760
        %1969 = vmatpush.msra.mxu0 %v1968
        %v1970 = vand.u32 %v1910, 4294901760
        %1971 = vmatmul.f32.gmra.mxu0 %v1970
        %v1972 = vpop.f32.mrf.mxu0
        %v1973 = vadd.f32 %v1939, %v1972
        %v1974 = vand.u32 %v1913, 4294901760
        %1975 = vmatmul.f32.gmra.mxu0 %v1974
        %v1976 = vpop.f32.mrf.mxu0
        %v1977 = vadd.f32 %v1947, %v1976
        %1978 = vdwg.mxu0
        %1979 = vmatpush.msra.mxu0 0.0
        %1980 = vmatpush.msra.mxu0 0.0
        %1981 = vmatpush.msra.mxu0 0.0
        %1982 = vmatpush.msra.mxu0 0.0
        %1983 = vmatpush.msra.mxu0 0.0
        %1984 = vmatpush.msra.mxu0 0.0
        %1985 = vmatpush.msra.mxu0 0.0
        %1986 = vmatpush.msra.mxu0 0.0
        %1987 = vmatpush.msra.mxu0 0.0
        %1988 = vmatpush.msra.mxu0 0.0
        %1989 = vmatpush.msra.mxu0 0.0
        %1990 = vmatpush.msra.mxu0 0.0
        %1991 = vmatpush.msra.mxu0 0.0
        %1992 = vmatpush.msra.mxu0 0.0
        %1993 = vmatpush.msra.mxu0 0.0
        %v1994 = vand.u32 %v1908, 4294901760
        %v1995 = vsub.f32 %v1908, %v1994
        %1996 = vmatpush.msra.mxu0 %v1995
        %v1997 = vand.u32 %v1910, 4294901760
        %v1998 = vsub.f32 %v1910, %v1997
        %1999 = vmatmul.f32.gmra.mxu0 %v1998
        %v2000 = vpop.f32.mrf.mxu0
        %v2001 = vadd.f32 %v1973, %v2000
        %v2002 = vand.u32 %v1913, 4294901760
        %v2003 = vsub.f32 %v1913, %v2002
        %2004 = vmatmul.f32.gmra.mxu0 %v2003
        %v2005 = vpop.f32.mrf.mxu0
        %v2006 = vadd.f32 %v1977, %v2005
        %2007 = vdwg.mxu0
        %2008 = vmatpush.msra.mxu0 0.0
        %2009 = vmatpush.msra.mxu0 0.0
        %2010 = vmatpush.msra.mxu0 0.0
        %2011 = vmatpush.msra.mxu0 0.0
        %2012 = vmatpush.msra.mxu0 0.0
        %2013 = vmatpush.msra.mxu0 0.0
        %2014 = vmatpush.msra.mxu0 0.0
        %2015 = vmatpush.msra.mxu0 0.0
        %2016 = vmatpush.msra.mxu0 0.0
        %2017 = vmatpush.msra.mxu0 0.0
        %2018 = vmatpush.msra.mxu0 0.0
        %2019 = vmatpush.msra.mxu0 0.0
        %2020 = vmatpush.msra.mxu0 0.0
        %2021 = vmatpush.msra.mxu0 0.0
        %2022 = vmatpush.msra.mxu0 0.0
        %v2023 = vand.u32 %v1908, 4294901760
        %2024 = vmatpush.msra.mxu0 %v2023
        %v2025 = vand.u32 %v1910, 4294901760
        %v2026 = vsub.f32 %v1910, %v2025
        %v2027 = vand.u32 %v2026, 4294901760
        %2028 = vmatmul.f32.gmra.mxu0 %v2027
        %v2029 = vpop.f32.mrf.mxu0
        %v2030 = vadd.f32 %v2001, %v2029
        %v2031 = vand.u32 %v1913, 4294901760
        %v2032 = vsub.f32 %v1913, %v2031
        %v2033 = vand.u32 %v2032, 4294901760
        %2034 = vmatmul.f32.gmra.mxu0 %v2033
        %v2035 = vpop.f32.mrf.mxu0
        %v2036 = vadd.f32 %v2006, %v2035
        %2037 = vdwg.mxu0
        %2038 = vmatpush.msra.mxu0 0.0
        %2039 = vmatpush.msra.mxu0 0.0
        %2040 = vmatpush.msra.mxu0 0.0
        %2041 = vmatpush.msra.mxu0 0.0
        %2042 = vmatpush.msra.mxu0 0.0
        %2043 = vmatpush.msra.mxu0 0.0
        %2044 = vmatpush.msra.mxu0 0.0
        %2045 = vmatpush.msra.mxu0 0.0
        %2046 = vmatpush.msra.mxu0 0.0
        %2047 = vmatpush.msra.mxu0 0.0
        %2048 = vmatpush.msra.mxu0 0.0
        %2049 = vmatpush.msra.mxu0 0.0
        %2050 = vmatpush.msra.mxu0 0.0
        %2051 = vmatpush.msra.mxu0 0.0
        %2052 = vmatpush.msra.mxu0 0.0
        %v2053 = vand.u32 %v1908, 4294901760
        %v2054 = vsub.f32 %v1908, %v2053
        %v2055 = vand.u32 %v2054, 4294901760
        %2056 = vmatpush.msra.mxu0 %v2055
        %v2057 = vand.u32 %v1910, 4294901760
        %2058 = vmatmul.f32.gmra.mxu0 %v2057
        %v2059 = vpop.f32.mrf.mxu0
        %v2060 = vadd.f32 %v2030, %v2059
        %v2061 = vand.u32 %v1913, 4294901760
        %2062 = vmatmul.f32.gmra.mxu0 %v2061
        %v2063 = vpop.f32.mrf.mxu0
        %v2064 = vadd.f32 %v2036, %v2063
        %2065 = vdwg.mxu0
        %2066 = vmatpush.msra.mxu0 0.0
        %2067 = vmatpush.msra.mxu0 0.0
        %2068 = vmatpush.msra.mxu0 0.0
        %2069 = vmatpush.msra.mxu0 0.0
        %2070 = vmatpush.msra.mxu0 0.0
        %2071 = vmatpush.msra.mxu0 0.0
        %2072 = vmatpush.msra.mxu0 0.0
        %2073 = vmatpush.msra.mxu0 0.0
        %2074 = vmatpush.msra.mxu0 0.0
        %2075 = vmatpush.msra.mxu0 0.0
        %2076 = vmatpush.msra.mxu0 0.0
        %2077 = vmatpush.msra.mxu0 0.0
        %2078 = vmatpush.msra.mxu0 0.0
        %2079 = vmatpush.msra.mxu0 0.0
        %2080 = vmatpush.msra.mxu0 0.0
        %v2081 = vand.u32 %v1908, 4294901760
        %2082 = vmatpush.msra.mxu0 %v2081
        %v2083 = vand.u32 %v1910, 4294901760
        %2084 = vmatmul.f32.gmra.mxu0 %v2083
        %v2085 = vpop.f32.mrf.mxu0
        %v2086 = vadd.f32 %v2060, %v2085
        %v2087 = vand.u32 %v1913, 4294901760
        %2088 = vmatmul.f32.gmra.mxu0 %v2087
        %v2089 = vpop.f32.mrf.mxu0
        %v2090 = vadd.f32 %v2064, %v2089
        %2091 = vdwg.mxu0
        %v2092 = vadd.f32 %v1906, %v2086
        %v2093 = vadd.f32 %v1907, %v2090
        %v2094 = vld [vmem:[%s8] sm:$0xff]
        %v2095 = vld [vmem:[%s8 + $0x8] sm:$0xff]
        %v2096 = vld [vmem:[%s8 + $0x10] sm:$0xff]
        %v2097 = vld [vmem:[%s8 + $0x18] sm:$0xff]
        %v2098 = vld [vmem:[%s9] sm:$0x1]
        %v2100 = vperm.slane %v2098, 0
        %vm2102 = vcmask 261120
        %v2104 = vsel %vm2102, %v2092, 0
        %v2107 = vsel %vm2102, %v2093, 0
        %2109 = vmatpush.msra.mxu0 0.0
        %2110 = vmatpush.msra.mxu0 0.0
        %2111 = vmatpush.msra.mxu0 0.0
        %2112 = vmatpush.msra.mxu0 0.0
        %2113 = vmatpush.msra.mxu0 0.0
        %2114 = vmatpush.msra.mxu0 0.0
        %2115 = vmatpush.msra.mxu0 0.0
        %2116 = vmatpush.msra.mxu0 0.0
        %2117 = vmatpush.msra.mxu0 0.0
        %2118 = vmatpush.msra.mxu0 0.0
        %2119 = vmatpush.msra.mxu0 0.0
        %2120 = vmatpush.msra.mxu0 0.0
        %v2121 = vand.u32 %v2097, 4294901760
        %2122 = vmatpush.msra.mxu0 %v2121
        %v2123 = vand.u32 %v2096, 4294901760
        %2124 = vmatpush.msra.mxu0 %v2123
        %v2125 = vand.u32 %v2095, 4294901760
        %2126 = vmatpush.msra.mxu0 %v2125
        %v2127 = vand.u32 %v2094, 4294901760
        %2128 = vmatpush.msra.mxu0 %v2127
        %v2129 = vand.u32 %v2104, 4294901760
        %v2130 = vsub.f32 %v2104, %v2129
        %v2131 = vand.u32 %v2130, 4294901760
        %v2132 = vsub.f32 %v2130, %v2131
        %v2133 = vand.u32 %v2132, 4294901760
        %2134 = vmatmul.f32.gmra.mxu0 %v2133
        %v2135 = vpop.f32.mrf.mxu0
        %v2136 = vadd.f32 %v2100, %v2135
        %v2137 = vand.u32 %v2107, 4294901760
        %v2138 = vsub.f32 %v2107, %v2137
        %v2139 = vand.u32 %v2138, 4294901760
        %v2140 = vsub.f32 %v2138, %v2139
        %v2141 = vand.u32 %v2140, 4294901760
        %2142 = vmatmul.f32.gmra.mxu0 %v2141
        %v2143 = vpop.f32.mrf.mxu0
        %v2144 = vadd.f32 %v2100, %v2143
        %2145 = vdwg.mxu0
        %2146 = vmatpush.msra.mxu0 0.0
        %2147 = vmatpush.msra.mxu0 0.0
        %2148 = vmatpush.msra.mxu0 0.0
        %2149 = vmatpush.msra.mxu0 0.0
        %2150 = vmatpush.msra.mxu0 0.0
        %2151 = vmatpush.msra.mxu0 0.0
        %2152 = vmatpush.msra.mxu0 0.0
        %2153 = vmatpush.msra.mxu0 0.0
        %2154 = vmatpush.msra.mxu0 0.0
        %2155 = vmatpush.msra.mxu0 0.0
        %2156 = vmatpush.msra.mxu0 0.0
        %2157 = vmatpush.msra.mxu0 0.0
        %v2158 = vand.u32 %v2097, 4294901760
        %v2159 = vsub.f32 %v2097, %v2158
        %v2160 = vand.u32 %v2159, 4294901760
        %v2161 = vsub.f32 %v2159, %v2160
        %v2162 = vand.u32 %v2161, 4294901760
        %2163 = vmatpush.msra.mxu0 %v2162
        %v2164 = vand.u32 %v2096, 4294901760
        %v2165 = vsub.f32 %v2096, %v2164
        %v2166 = vand.u32 %v2165, 4294901760
        %v2167 = vsub.f32 %v2165, %v2166
        %v2168 = vand.u32 %v2167, 4294901760
        %2169 = vmatpush.msra.mxu0 %v2168
        %v2170 = vand.u32 %v2095, 4294901760
        %v2171 = vsub.f32 %v2095, %v2170
        %v2172 = vand.u32 %v2171, 4294901760
        %v2173 = vsub.f32 %v2171, %v2172
        %v2174 = vand.u32 %v2173, 4294901760
        %2175 = vmatpush.msra.mxu0 %v2174
        %v2176 = vand.u32 %v2094, 4294901760
        %v2177 = vsub.f32 %v2094, %v2176
        %v2178 = vand.u32 %v2177, 4294901760
        %v2179 = vsub.f32 %v2177, %v2178
        %v2180 = vand.u32 %v2179, 4294901760
        %2181 = vmatpush.msra.mxu0 %v2180
        %v2182 = vand.u32 %v2104, 4294901760
        %2183 = vmatmul.f32.gmra.mxu0 %v2182
        %v2184 = vpop.f32.mrf.mxu0
        %v2185 = vadd.f32 %v2136, %v2184
        %v2186 = vand.u32 %v2107, 4294901760
        %2187 = vmatmul.f32.gmra.mxu0 %v2186
        %v2188 = vpop.f32.mrf.mxu0
        %v2189 = vadd.f32 %v2144, %v2188
        %2190 = vdwg.mxu0
        %2191 = vmatpush.msra.mxu0 0.0
        %2192 = vmatpush.msra.mxu0 0.0
        %2193 = vmatpush.msra.mxu0 0.0
        %2194 = vmatpush.msra.mxu0 0.0
        %2195 = vmatpush.msra.mxu0 0.0
        %2196 = vmatpush.msra.mxu0 0.0
        %2197 = vmatpush.msra.mxu0 0.0
        %2198 = vmatpush.msra.mxu0 0.0
        %2199 = vmatpush.msra.mxu0 0.0
        %2200 = vmatpush.msra.mxu0 0.0
        %2201 = vmatpush.msra.mxu0 0.0
        %2202 = vmatpush.msra.mxu0 0.0
        %v2203 = vand.u32 %v2097, 4294901760
        %v2204 = vsub.f32 %v2097, %v2203
        %2205 = vmatpush.msra.mxu0 %v2204
        %v2206 = vand.u32 %v2096, 4294901760
        %v2207 = vsub.f32 %v2096, %v2206
        %2208 = vmatpush.msra.mxu0 %v2207
        %v2209 = vand.u32 %v2095, 4294901760
        %v2210 = vsub.f32 %v2095, %v2209
        %2211 = vmatpush.msra.mxu0 %v2210
        %v2212 = vand.u32 %v2094, 4294901760
        %v2213 = vsub.f32 %v2094, %v2212
        %2214 = vmatpush.msra.mxu0 %v2213
        %v2215 = vand.u32 %v2104, 4294901760
        %v2216 = vsub.f32 %v2104, %v2215
        %2217 = vmatmul.f32.gmra.mxu0 %v2216
        %v2218 = vpop.f32.mrf.mxu0
        %v2219 = vadd.f32 %v2185, %v2218
        %v2220 = vand.u32 %v2107, 4294901760
        %v2221 = vsub.f32 %v2107, %v2220
        %2222 = vmatmul.f32.gmra.mxu0 %v2221
        %v2223 = vpop.f32.mrf.mxu0
        %v2224 = vadd.f32 %v2189, %v2223
        %2225 = vdwg.mxu0
        %2226 = vmatpush.msra.mxu0 0.0
        %2227 = vmatpush.msra.mxu0 0.0
        %2228 = vmatpush.msra.mxu0 0.0
        %2229 = vmatpush.msra.mxu0 0.0
        %2230 = vmatpush.msra.mxu0 0.0
        %2231 = vmatpush.msra.mxu0 0.0
        %2232 = vmatpush.msra.mxu0 0.0
        %2233 = vmatpush.msra.mxu0 0.0
        %2234 = vmatpush.msra.mxu0 0.0
        %2235 = vmatpush.msra.mxu0 0.0
        %2236 = vmatpush.msra.mxu0 0.0
        %2237 = vmatpush.msra.mxu0 0.0
        %v2238 = vand.u32 %v2097, 4294901760
        %2239 = vmatpush.msra.mxu0 %v2238
        %v2240 = vand.u32 %v2096, 4294901760
        %2241 = vmatpush.msra.mxu0 %v2240
        %v2242 = vand.u32 %v2095, 4294901760
        %2243 = vmatpush.msra.mxu0 %v2242
        %v2244 = vand.u32 %v2094, 4294901760
        %2245 = vmatpush.msra.mxu0 %v2244
        %v2246 = vand.u32 %v2104, 4294901760
        %v2247 = vsub.f32 %v2104, %v2246
        %v2248 = vand.u32 %v2247, 4294901760
        %2249 = vmatmul.f32.gmra.mxu0 %v2248
        %v2250 = vpop.f32.mrf.mxu0
        %v2251 = vadd.f32 %v2219, %v2250
        %v2252 = vand.u32 %v2107, 4294901760
        %v2253 = vsub.f32 %v2107, %v2252
        %v2254 = vand.u32 %v2253, 4294901760
        %2255 = vmatmul.f32.gmra.mxu0 %v2254
        %v2256 = vpop.f32.mrf.mxu0
        %v2257 = vadd.f32 %v2224, %v2256
        %2258 = vdwg.mxu0
        %2259 = vmatpush.msra.mxu0 0.0
        %2260 = vmatpush.msra.mxu0 0.0
        %2261 = vmatpush.msra.mxu0 0.0
        %2262 = vmatpush.msra.mxu0 0.0
        %2263 = vmatpush.msra.mxu0 0.0
        %2264 = vmatpush.msra.mxu0 0.0
        %2265 = vmatpush.msra.mxu0 0.0
        %2266 = vmatpush.msra.mxu0 0.0
        %2267 = vmatpush.msra.mxu0 0.0
        %2268 = vmatpush.msra.mxu0 0.0
        %2269 = vmatpush.msra.mxu0 0.0
        %2270 = vmatpush.msra.mxu0 0.0
        %v2271 = vand.u32 %v2097, 4294901760
        %v2272 = vsub.f32 %v2097, %v2271
        %v2273 = vand.u32 %v2272, 4294901760
        %2274 = vmatpush.msra.mxu0 %v2273
        %v2275 = vand.u32 %v2096, 4294901760
        %v2276 = vsub.f32 %v2096, %v2275
        %v2277 = vand.u32 %v2276, 4294901760
        %2278 = vmatpush.msra.mxu0 %v2277
        %v2279 = vand.u32 %v2095, 4294901760
        %v2280 = vsub.f32 %v2095, %v2279
        %v2281 = vand.u32 %v2280, 4294901760
        %2282 = vmatpush.msra.mxu0 %v2281
        %v2283 = vand.u32 %v2094, 4294901760
        %v2284 = vsub.f32 %v2094, %v2283
        %v2285 = vand.u32 %v2284, 4294901760
        %2286 = vmatpush.msra.mxu0 %v2285
        %v2287 = vand.u32 %v2104, 4294901760
        %2288 = vmatmul.f32.gmra.mxu0 %v2287
        %v2289 = vpop.f32.mrf.mxu0
        %v2290 = vadd.f32 %v2251, %v2289
        %v2291 = vand.u32 %v2107, 4294901760
        %2292 = vmatmul.f32.gmra.mxu0 %v2291
        %v2293 = vpop.f32.mrf.mxu0
        %v2294 = vadd.f32 %v2257, %v2293
        %2295 = vdwg.mxu0
        %2296 = vmatpush.msra.mxu0 0.0
        %2297 = vmatpush.msra.mxu0 0.0
        %2298 = vmatpush.msra.mxu0 0.0
        %2299 = vmatpush.msra.mxu0 0.0
        %2300 = vmatpush.msra.mxu0 0.0
        %2301 = vmatpush.msra.mxu0 0.0
        %2302 = vmatpush.msra.mxu0 0.0
        %2303 = vmatpush.msra.mxu0 0.0
        %2304 = vmatpush.msra.mxu0 0.0
        %2305 = vmatpush.msra.mxu0 0.0
        %2306 = vmatpush.msra.mxu0 0.0
        %2307 = vmatpush.msra.mxu0 0.0
        %v2308 = vand.u32 %v2097, 4294901760
        %2309 = vmatpush.msra.mxu0 %v2308
        %v2310 = vand.u32 %v2096, 4294901760
        %2311 = vmatpush.msra.mxu0 %v2310
        %v2312 = vand.u32 %v2095, 4294901760
        %2313 = vmatpush.msra.mxu0 %v2312
        %v2314 = vand.u32 %v2094, 4294901760
        %2315 = vmatpush.msra.mxu0 %v2314
        %v2316 = vand.u32 %v2104, 4294901760
        %2317 = vmatmul.f32.gmra.mxu0 %v2316
        %v2318 = vpop.f32.mrf.mxu0
        %v2319 = vadd.f32 %v2290, %v2318
        %v2320 = vand.u32 %v2107, 4294901760
        %2321 = vmatmul.f32.gmra.mxu0 %v2320
        %v2322 = vpop.f32.mrf.mxu0
        %v2323 = vadd.f32 %v2294, %v2322
        %2324 = vdwg.mxu0
        %v2325 = vadd.f32 %v2319, %v943
        %v2326 = vadd.f32 %v2323, %v947
        %v2327 = vmax.f32 %v2325, 0.0
        %v2328 = vmax.f32 %v2326, 0.0
        %v2329 = vld [vmem:[%s4] sm:$0xff]
        %v2330 = vld [vmem:[%s4 + $0x8] sm:$0xff]
        %v2331 = vld [vmem:[%s4 + $0x10] sm:$0xff]
        %v2332 = vld [vmem:[%s4 + $0x18] sm:$0xff]
        %v2333 = vld [vmem:[%s5] sm:$0x1]
        %v2335 = vperm.slane %v2333, 0
        %v2338 = vsel %vm2102, %v2327, 0
        %v2341 = vsel %vm2102, %v2328, 0
        %2343 = vmatpush.msra.mxu0 0.0
        %2344 = vmatpush.msra.mxu0 0.0
        %2345 = vmatpush.msra.mxu0 0.0
        %2346 = vmatpush.msra.mxu0 0.0
        %2347 = vmatpush.msra.mxu0 0.0
        %2348 = vmatpush.msra.mxu0 0.0
        %2349 = vmatpush.msra.mxu0 0.0
        %2350 = vmatpush.msra.mxu0 0.0
        %2351 = vmatpush.msra.mxu0 0.0
        %2352 = vmatpush.msra.mxu0 0.0
        %2353 = vmatpush.msra.mxu0 0.0
        %2354 = vmatpush.msra.mxu0 0.0
        %v2355 = vand.u32 %v2332, 4294901760
        %2356 = vmatpush.msra.mxu0 %v2355
        %v2357 = vand.u32 %v2331, 4294901760
        %2358 = vmatpush.msra.mxu0 %v2357
        %v2359 = vand.u32 %v2330, 4294901760
        %2360 = vmatpush.msra.mxu0 %v2359
        %v2361 = vand.u32 %v2329, 4294901760
        %2362 = vmatpush.msra.mxu0 %v2361
        %v2363 = vand.u32 %v2338, 4294901760
        %v2364 = vsub.f32 %v2338, %v2363
        %v2365 = vand.u32 %v2364, 4294901760
        %v2366 = vsub.f32 %v2364, %v2365
        %v2367 = vand.u32 %v2366, 4294901760
        %2368 = vmatmul.f32.gmra.mxu0 %v2367
        %v2369 = vpop.f32.mrf.mxu0
        %v2370 = vadd.f32 %v2335, %v2369
        %v2371 = vand.u32 %v2341, 4294901760
        %v2372 = vsub.f32 %v2341, %v2371
        %v2373 = vand.u32 %v2372, 4294901760
        %v2374 = vsub.f32 %v2372, %v2373
        %v2375 = vand.u32 %v2374, 4294901760
        %2376 = vmatmul.f32.gmra.mxu0 %v2375
        %v2377 = vpop.f32.mrf.mxu0
        %v2378 = vadd.f32 %v2335, %v2377
        %2379 = vdwg.mxu0
        %2380 = vmatpush.msra.mxu0 0.0
        %2381 = vmatpush.msra.mxu0 0.0
        %2382 = vmatpush.msra.mxu0 0.0
        %2383 = vmatpush.msra.mxu0 0.0
        %2384 = vmatpush.msra.mxu0 0.0
        %2385 = vmatpush.msra.mxu0 0.0
        %2386 = vmatpush.msra.mxu0 0.0
        %2387 = vmatpush.msra.mxu0 0.0
        %2388 = vmatpush.msra.mxu0 0.0
        %2389 = vmatpush.msra.mxu0 0.0
        %2390 = vmatpush.msra.mxu0 0.0
        %2391 = vmatpush.msra.mxu0 0.0
        %v2392 = vand.u32 %v2332, 4294901760
        %v2393 = vsub.f32 %v2332, %v2392
        %v2394 = vand.u32 %v2393, 4294901760
        %v2395 = vsub.f32 %v2393, %v2394
        %v2396 = vand.u32 %v2395, 4294901760
        %2397 = vmatpush.msra.mxu0 %v2396
        %v2398 = vand.u32 %v2331, 4294901760
        %v2399 = vsub.f32 %v2331, %v2398
        %v2400 = vand.u32 %v2399, 4294901760
        %v2401 = vsub.f32 %v2399, %v2400
        %v2402 = vand.u32 %v2401, 4294901760
        %2403 = vmatpush.msra.mxu0 %v2402
        %v2404 = vand.u32 %v2330, 4294901760
        %v2405 = vsub.f32 %v2330, %v2404
        %v2406 = vand.u32 %v2405, 4294901760
        %v2407 = vsub.f32 %v2405, %v2406
        %v2408 = vand.u32 %v2407, 4294901760
        %2409 = vmatpush.msra.mxu0 %v2408
        %v2410 = vand.u32 %v2329, 4294901760
        %v2411 = vsub.f32 %v2329, %v2410
        %v2412 = vand.u32 %v2411, 4294901760
        %v2413 = vsub.f32 %v2411, %v2412
        %v2414 = vand.u32 %v2413, 4294901760
        %2415 = vmatpush.msra.mxu0 %v2414
        %v2416 = vand.u32 %v2338, 4294901760
        %2417 = vmatmul.f32.gmra.mxu0 %v2416
        %v2418 = vpop.f32.mrf.mxu0
        %v2419 = vadd.f32 %v2370, %v2418
        %v2420 = vand.u32 %v2341, 4294901760
        %2421 = vmatmul.f32.gmra.mxu0 %v2420
        %v2422 = vpop.f32.mrf.mxu0
        %v2423 = vadd.f32 %v2378, %v2422
        %2424 = vdwg.mxu0
        %2425 = vmatpush.msra.mxu0 0.0
        %2426 = vmatpush.msra.mxu0 0.0
        %2427 = vmatpush.msra.mxu0 0.0
        %2428 = vmatpush.msra.mxu0 0.0
        %2429 = vmatpush.msra.mxu0 0.0
        %2430 = vmatpush.msra.mxu0 0.0
        %2431 = vmatpush.msra.mxu0 0.0
        %2432 = vmatpush.msra.mxu0 0.0
        %2433 = vmatpush.msra.mxu0 0.0
        %2434 = vmatpush.msra.mxu0 0.0
        %2435 = vmatpush.msra.mxu0 0.0
        %2436 = vmatpush.msra.mxu0 0.0
        %v2437 = vand.u32 %v2332, 4294901760
        %v2438 = vsub.f32 %v2332, %v2437
        %2439 = vmatpush.msra.mxu0 %v2438
        %v2440 = vand.u32 %v2331, 4294901760
        %v2441 = vsub.f32 %v2331, %v2440
        %2442 = vmatpush.msra.mxu0 %v2441
        %v2443 = vand.u32 %v2330, 4294901760
        %v2444 = vsub.f32 %v2330, %v2443
        %2445 = vmatpush.msra.mxu0 %v2444
        %v2446 = vand.u32 %v2329, 4294901760
        %v2447 = vsub.f32 %v2329, %v2446
        %2448 = vmatpush.msra.mxu0 %v2447
        %v2449 = vand.u32 %v2338, 4294901760
        %v2450 = vsub.f32 %v2338, %v2449
        %2451 = vmatmul.f32.gmra.mxu0 %v2450
        %v2452 = vpop.f32.mrf.mxu0
        %v2453 = vadd.f32 %v2419, %v2452
        %v2454 = vand.u32 %v2341, 4294901760
        %v2455 = vsub.f32 %v2341, %v2454
        %2456 = vmatmul.f32.gmra.mxu0 %v2455
        %v2457 = vpop.f32.mrf.mxu0
        %v2458 = vadd.f32 %v2423, %v2457
        %2459 = vdwg.mxu0
        %2460 = vmatpush.msra.mxu0 0.0
        %2461 = vmatpush.msra.mxu0 0.0
        %2462 = vmatpush.msra.mxu0 0.0
        %2463 = vmatpush.msra.mxu0 0.0
        %2464 = vmatpush.msra.mxu0 0.0
        %2465 = vmatpush.msra.mxu0 0.0
        %2466 = vmatpush.msra.mxu0 0.0
        %2467 = vmatpush.msra.mxu0 0.0
        %2468 = vmatpush.msra.mxu0 0.0
        %2469 = vmatpush.msra.mxu0 0.0
        %2470 = vmatpush.msra.mxu0 0.0
        %2471 = vmatpush.msra.mxu0 0.0
        %v2472 = vand.u32 %v2332, 4294901760
        %2473 = vmatpush.msra.mxu0 %v2472
        %v2474 = vand.u32 %v2331, 4294901760
        %2475 = vmatpush.msra.mxu0 %v2474
        %v2476 = vand.u32 %v2330, 4294901760
        %2477 = vmatpush.msra.mxu0 %v2476
        %v2478 = vand.u32 %v2329, 4294901760
        %2479 = vmatpush.msra.mxu0 %v2478
        %v2480 = vand.u32 %v2338, 4294901760
        %v2481 = vsub.f32 %v2338, %v2480
        %v2482 = vand.u32 %v2481, 4294901760
        %2483 = vmatmul.f32.gmra.mxu0 %v2482
        %v2484 = vpop.f32.mrf.mxu0
        %v2485 = vadd.f32 %v2453, %v2484
        %v2486 = vand.u32 %v2341, 4294901760
        %v2487 = vsub.f32 %v2341, %v2486
        %v2488 = vand.u32 %v2487, 4294901760
        %2489 = vmatmul.f32.gmra.mxu0 %v2488
        %v2490 = vpop.f32.mrf.mxu0
        %v2491 = vadd.f32 %v2458, %v2490
        %2492 = vdwg.mxu0
        %2493 = vmatpush.msra.mxu0 0.0
        %2494 = vmatpush.msra.mxu0 0.0
        %2495 = vmatpush.msra.mxu0 0.0
        %2496 = vmatpush.msra.mxu0 0.0
        %2497 = vmatpush.msra.mxu0 0.0
        %2498 = vmatpush.msra.mxu0 0.0
        %2499 = vmatpush.msra.mxu0 0.0
        %2500 = vmatpush.msra.mxu0 0.0
        %2501 = vmatpush.msra.mxu0 0.0
        %2502 = vmatpush.msra.mxu0 0.0
        %2503 = vmatpush.msra.mxu0 0.0
        %2504 = vmatpush.msra.mxu0 0.0
        %v2505 = vand.u32 %v2332, 4294901760
        %v2506 = vsub.f32 %v2332, %v2505
        %v2507 = vand.u32 %v2506, 4294901760
        %2508 = vmatpush.msra.mxu0 %v2507
        %v2509 = vand.u32 %v2331, 4294901760
        %v2510 = vsub.f32 %v2331, %v2509
        %v2511 = vand.u32 %v2510, 4294901760
        %2512 = vmatpush.msra.mxu0 %v2511
        %v2513 = vand.u32 %v2330, 4294901760
        %v2514 = vsub.f32 %v2330, %v2513
        %v2515 = vand.u32 %v2514, 4294901760
        %2516 = vmatpush.msra.mxu0 %v2515
        %v2517 = vand.u32 %v2329, 4294901760
        %v2518 = vsub.f32 %v2329, %v2517
        %v2519 = vand.u32 %v2518, 4294901760
        %2520 = vmatpush.msra.mxu0 %v2519
        %v2521 = vand.u32 %v2338, 4294901760
        %2522 = vmatmul.f32.gmra.mxu0 %v2521
        %v2523 = vpop.f32.mrf.mxu0
        %v2524 = vadd.f32 %v2485, %v2523
        %v2525 = vand.u32 %v2341, 4294901760
        %2526 = vmatmul.f32.gmra.mxu0 %v2525
        %v2527 = vpop.f32.mrf.mxu0
        %v2528 = vadd.f32 %v2491, %v2527
        %2529 = vdwg.mxu0
        %2530 = vmatpush.msra.mxu0 0.0
        %2531 = vmatpush.msra.mxu0 0.0
        %2532 = vmatpush.msra.mxu0 0.0
        %2533 = vmatpush.msra.mxu0 0.0
        %2534 = vmatpush.msra.mxu0 0.0
        %2535 = vmatpush.msra.mxu0 0.0
        %2536 = vmatpush.msra.mxu0 0.0
        %2537 = vmatpush.msra.mxu0 0.0
        %2538 = vmatpush.msra.mxu0 0.0
        %2539 = vmatpush.msra.mxu0 0.0
        %2540 = vmatpush.msra.mxu0 0.0
        %2541 = vmatpush.msra.mxu0 0.0
        %v2542 = vand.u32 %v2332, 4294901760
        %2543 = vmatpush.msra.mxu0 %v2542
        %v2544 = vand.u32 %v2331, 4294901760
        %2545 = vmatpush.msra.mxu0 %v2544
        %v2546 = vand.u32 %v2330, 4294901760
        %2547 = vmatpush.msra.mxu0 %v2546
        %v2548 = vand.u32 %v2329, 4294901760
        %2549 = vmatpush.msra.mxu0 %v2548
        %v2550 = vand.u32 %v2338, 4294901760
        %2551 = vmatmul.f32.gmra.mxu0 %v2550
        %v2552 = vpop.f32.mrf.mxu0
        %v2553 = vadd.f32 %v2524, %v2552
        %v2554 = vand.u32 %v2341, 4294901760
        %2555 = vmatmul.f32.gmra.mxu0 %v2554
        %v2556 = vpop.f32.mrf.mxu0
        %v2557 = vadd.f32 %v2528, %v2556
        %2558 = vdwg.mxu0
        %2559 = vmatpush.msra.mxu0 0.0
        %2560 = vmatpush.msra.mxu0 0.0
        %2561 = vmatpush.msra.mxu0 0.0
        %2562 = vmatpush.msra.mxu0 0.0
        %2563 = vmatpush.msra.mxu0 0.0
        %2564 = vmatpush.msra.mxu0 0.0
        %2565 = vmatpush.msra.mxu0 0.0
        %2566 = vmatpush.msra.mxu0 0.0
        %2567 = vmatpush.msra.mxu0 0.0
        %2568 = vmatpush.msra.mxu0 0.0
        %2569 = vmatpush.msra.mxu0 0.0
        %2570 = vmatpush.msra.mxu0 0.0
        %2571 = vmatpush.msra.mxu0 0.0
        %2572 = vmatpush.msra.mxu0 0.0
        %v2573 = vand.u32 %v2328, 4294901760
        %2574 = vmatpush.msra.mxu0 %v2573
        %v2575 = vand.u32 %v2327, 4294901760
        %2576 = vmatpush.msra.mxu0 %v2575
        %v2577 = vand.u32 %v950, 4294901760
        %v2578 = vsub.f32 %v950, %v2577
        %v2579 = vand.u32 %v2578, 4294901760
        %v2580 = vsub.f32 %v2578, %v2579
        %v2581 = vand.u32 %v2580, 4294901760
        %2582 = vmatmul.f32.gmra.mxu0 %v2581
        %v2583 = vpop.f32.mrf.mxu0
        %v2584 = vadd.f32 0.0, %v2583
        %v2585 = vand.u32 %v950, 4294901760
        %v2586 = vsub.f32 %v950, %v2585
        %v2587 = vand.u32 %v2586, 4294901760
        %v2588 = vsub.f32 %v2586, %v2587
        %v2589 = vand.u32 %v2588, 4294901760
        %2590 = vmatmul.f32.gmra.mxu0 %v2589
        %v2591 = vpop.f32.mrf.mxu0
        %v2592 = vadd.f32 0.0, %v2591
        %v2593 = vand.u32 %v953, 4294901760
        %v2594 = vsub.f32 %v953, %v2593
        %v2595 = vand.u32 %v2594, 4294901760
        %v2596 = vsub.f32 %v2594, %v2595
        %v2597 = vand.u32 %v2596, 4294901760
        %2598 = vmatmul.f32.gmra.mxu0 %v2597
        %v2599 = vpop.f32.mrf.mxu0
        %v2600 = vadd.f32 0.0, %v2599
        %v2601 = vand.u32 %v956, 4294901760
        %v2602 = vsub.f32 %v956, %v2601
        %v2603 = vand.u32 %v2602, 4294901760
        %v2604 = vsub.f32 %v2602, %v2603
        %v2605 = vand.u32 %v2604, 4294901760
        %2606 = vmatmul.f32.gmra.mxu0 %v2605
        %v2607 = vpop.f32.mrf.mxu0
        %v2608 = vadd.f32 0.0, %v2607
        %v2609 = vand.u32 %v959, 4294901760
        %v2610 = vsub.f32 %v959, %v2609
        %v2611 = vand.u32 %v2610, 4294901760
        %v2612 = vsub.f32 %v2610, %v2611
        %v2613 = vand.u32 %v2612, 4294901760
        %2614 = vmatmul.f32.gmra.mxu0 %v2613
        %v2615 = vpop.f32.mrf.mxu0
        %v2616 = vadd.f32 0.0, %v2615
        %v2617 = vand.u32 %v962, 4294901760
        %v2618 = vsub.f32 %v962, %v2617
        %v2619 = vand.u32 %v2618, 4294901760
        %v2620 = vsub.f32 %v2618, %v2619
        %v2621 = vand.u32 %v2620, 4294901760
        %2622 = vmatmul.f32.gmra.mxu0 %v2621
        %v2623 = vpop.f32.mrf.mxu0
        %v2624 = vadd.f32 0.0, %v2623
        %v2625 = vand.u32 %v965, 4294901760
        %v2626 = vsub.f32 %v965, %v2625
        %v2627 = vand.u32 %v2626, 4294901760
        %v2628 = vsub.f32 %v2626, %v2627
        %v2629 = vand.u32 %v2628, 4294901760
        %2630 = vmatmul.f32.gmra.mxu0 %v2629
        %v2631 = vpop.f32.mrf.mxu0
        %v2632 = vadd.f32 0.0, %v2631
        %v2633 = vand.u32 %v968, 4294901760
        %v2634 = vsub.f32 %v968, %v2633
        %v2635 = vand.u32 %v2634, 4294901760
        %v2636 = vsub.f32 %v2634, %v2635
        %v2637 = vand.u32 %v2636, 4294901760
        %2638 = vmatmul.f32.gmra.mxu0 %v2637
        %v2639 = vpop.f32.mrf.mxu0
        %v2640 = vadd.f32 0.0, %v2639
        %2641 = vdwg.mxu0
        %2642 = vmatpush.msra.mxu0 0.0
        %2643 = vmatpush.msra.mxu0 0.0
        %2644 = vmatpush.msra.mxu0 0.0
        %2645 = vmatpush.msra.mxu0 0.0
        %2646 = vmatpush.msra.mxu0 0.0
        %2647 = vmatpush.msra.mxu0 0.0
        %2648 = vmatpush.msra.mxu0 0.0
        %2649 = vmatpush.msra.mxu0 0.0
        %2650 = vmatpush.msra.mxu0 0.0
        %2651 = vmatpush.msra.mxu0 0.0
        %2652 = vmatpush.msra.mxu0 0.0
        %2653 = vmatpush.msra.mxu0 0.0
        %2654 = vmatpush.msra.mxu0 0.0
        %2655 = vmatpush.msra.mxu0 0.0
        %v2656 = vand.u32 %v2328, 4294901760
        %v2657 = vsub.f32 %v2328, %v2656
        %v2658 = vand.u32 %v2657, 4294901760
        %v2659 = vsub.f32 %v2657, %v2658
        %v2660 = vand.u32 %v2659, 4294901760
        %2661 = vmatpush.msra.mxu0 %v2660
        %v2662 = vand.u32 %v2327, 4294901760
        %v2663 = vsub.f32 %v2327, %v2662
        %v2664 = vand.u32 %v2663, 4294901760
        %v2665 = vsub.f32 %v2663, %v2664
        %v2666 = vand.u32 %v2665, 4294901760
        %2667 = vmatpush.msra.mxu0 %v2666
        %v2668 = vand.u32 %v950, 4294901760
        %2669 = vmatmul.f32.gmra.mxu0 %v2668
        %v2670 = vpop.f32.mrf.mxu0
        %v2671 = vadd.f32 %v2584, %v2670
        %v2672 = vand.u32 %v950, 4294901760
        %2673 = vmatmul.f32.gmra.mxu0 %v2672
        %v2674 = vpop.f32.mrf.mxu0
        %v2675 = vadd.f32 %v2592, %v2674
        %v2676 = vand.u32 %v953, 4294901760
        %2677 = vmatmul.f32.gmra.mxu0 %v2676
        %v2678 = vpop.f32.mrf.mxu0
        %v2679 = vadd.f32 %v2600, %v2678
        %v2680 = vand.u32 %v956, 4294901760
        %2681 = vmatmul.f32.gmra.mxu0 %v2680
        %v2682 = vpop.f32.mrf.mxu0
        %v2683 = vadd.f32 %v2608, %v2682
        %v2684 = vand.u32 %v959, 4294901760
        %2685 = vmatmul.f32.gmra.mxu0 %v2684
        %v2686 = vpop.f32.mrf.mxu0
        %v2687 = vadd.f32 %v2616, %v2686
        %v2688 = vand.u32 %v962, 4294901760
        %2689 = vmatmul.f32.gmra.mxu0 %v2688
        %v2690 = vpop.f32.mrf.mxu0
        %v2691 = vadd.f32 %v2624, %v2690
        %v2692 = vand.u32 %v965, 4294901760
        %2693 = vmatmul.f32.gmra.mxu0 %v2692
        %v2694 = vpop.f32.mrf.mxu0
        %v2695 = vadd.f32 %v2632, %v2694
        %v2696 = vand.u32 %v968, 4294901760
        %2697 = vmatmul.f32.gmra.mxu0 %v2696
        %v2698 = vpop.f32.mrf.mxu0
        %v2699 = vadd.f32 %v2640, %v2698
        %2700 = vdwg.mxu0
        %2701 = vmatpush.msra.mxu0 0.0
        %2702 = vmatpush.msra.mxu0 0.0
        %2703 = vmatpush.msra.mxu0 0.0
        %2704 = vmatpush.msra.mxu0 0.0
        %2705 = vmatpush.msra.mxu0 0.0
        %2706 = vmatpush.msra.mxu0 0.0
        %2707 = vmatpush.msra.mxu0 0.0
        %2708 = vmatpush.msra.mxu0 0.0
        %2709 = vmatpush.msra.mxu0 0.0
        %2710 = vmatpush.msra.mxu0 0.0
        %2711 = vmatpush.msra.mxu0 0.0
        %2712 = vmatpush.msra.mxu0 0.0
        %2713 = vmatpush.msra.mxu0 0.0
        %2714 = vmatpush.msra.mxu0 0.0
        %v2715 = vand.u32 %v2328, 4294901760
        %v2716 = vsub.f32 %v2328, %v2715
        %2717 = vmatpush.msra.mxu0 %v2716
        %v2718 = vand.u32 %v2327, 4294901760
        %v2719 = vsub.f32 %v2327, %v2718
        %2720 = vmatpush.msra.mxu0 %v2719
        %v2721 = vand.u32 %v950, 4294901760
        %v2722 = vsub.f32 %v950, %v2721
        %2723 = vmatmul.f32.gmra.mxu0 %v2722
        %v2724 = vpop.f32.mrf.mxu0
        %v2725 = vadd.f32 %v2671, %v2724
        %v2726 = vand.u32 %v950, 4294901760
        %v2727 = vsub.f32 %v950, %v2726
        %2728 = vmatmul.f32.gmra.mxu0 %v2727
        %v2729 = vpop.f32.mrf.mxu0
        %v2730 = vadd.f32 %v2675, %v2729
        %v2731 = vand.u32 %v953, 4294901760
        %v2732 = vsub.f32 %v953, %v2731
        %2733 = vmatmul.f32.gmra.mxu0 %v2732
        %v2734 = vpop.f32.mrf.mxu0
        %v2735 = vadd.f32 %v2679, %v2734
        %v2736 = vand.u32 %v956, 4294901760
        %v2737 = vsub.f32 %v956, %v2736
        %2738 = vmatmul.f32.gmra.mxu0 %v2737
        %v2739 = vpop.f32.mrf.mxu0
        %v2740 = vadd.f32 %v2683, %v2739
        %v2741 = vand.u32 %v959, 4294901760
        %v2742 = vsub.f32 %v959, %v2741
        %2743 = vmatmul.f32.gmra.mxu0 %v2742
        %v2744 = vpop.f32.mrf.mxu0
        %v2745 = vadd.f32 %v2687, %v2744
        %v2746 = vand.u32 %v962, 4294901760
        %v2747 = vsub.f32 %v962, %v2746
        %2748 = vmatmul.f32.gmra.mxu0 %v2747
        %v2749 = vpop.f32.mrf.mxu0
        %v2750 = vadd.f32 %v2691, %v2749
        %v2751 = vand.u32 %v965, 4294901760
        %v2752 = vsub.f32 %v965, %v2751
        %2753 = vmatmul.f32.gmra.mxu0 %v2752
        %v2754 = vpop.f32.mrf.mxu0
        %v2755 = vadd.f32 %v2695, %v2754
        %v2756 = vand.u32 %v968, 4294901760
        %v2757 = vsub.f32 %v968, %v2756
        %2758 = vmatmul.f32.gmra.mxu0 %v2757
        %v2759 = vpop.f32.mrf.mxu0
        %v2760 = vadd.f32 %v2699, %v2759
        %2761 = vdwg.mxu0
        %2762 = vmatpush.msra.mxu0 0.0
        %2763 = vmatpush.msra.mxu0 0.0
        %2764 = vmatpush.msra.mxu0 0.0
        %2765 = vmatpush.msra.mxu0 0.0
        %2766 = vmatpush.msra.mxu0 0.0
        %2767 = vmatpush.msra.mxu0 0.0
        %2768 = vmatpush.msra.mxu0 0.0
        %2769 = vmatpush.msra.mxu0 0.0
        %2770 = vmatpush.msra.mxu0 0.0
        %2771 = vmatpush.msra.mxu0 0.0
        %2772 = vmatpush.msra.mxu0 0.0
        %2773 = vmatpush.msra.mxu0 0.0
        %2774 = vmatpush.msra.mxu0 0.0
        %2775 = vmatpush.msra.mxu0 0.0
        %v2776 = vand.u32 %v2328, 4294901760
        %2777 = vmatpush.msra.mxu0 %v2776
        %v2778 = vand.u32 %v2327, 4294901760
        %2779 = vmatpush.msra.mxu0 %v2778
        %v2780 = vand.u32 %v950, 4294901760
        %v2781 = vsub.f32 %v950, %v2780
        %v2782 = vand.u32 %v2781, 4294901760
        %2783 = vmatmul.f32.gmra.mxu0 %v2782
        %v2784 = vpop.f32.mrf.mxu0
        %v2785 = vadd.f32 %v2725, %v2784
        %v2786 = vand.u32 %v950, 4294901760
        %v2787 = vsub.f32 %v950, %v2786
        %v2788 = vand.u32 %v2787, 4294901760
        %2789 = vmatmul.f32.gmra.mxu0 %v2788
        %v2790 = vpop.f32.mrf.mxu0
        %v2791 = vadd.f32 %v2730, %v2790
        %v2792 = vand.u32 %v953, 4294901760
        %v2793 = vsub.f32 %v953, %v2792
        %v2794 = vand.u32 %v2793, 4294901760
        %2795 = vmatmul.f32.gmra.mxu0 %v2794
        %v2796 = vpop.f32.mrf.mxu0
        %v2797 = vadd.f32 %v2735, %v2796
        %v2798 = vand.u32 %v956, 4294901760
        %v2799 = vsub.f32 %v956, %v2798
        %v2800 = vand.u32 %v2799, 4294901760
        %2801 = vmatmul.f32.gmra.mxu0 %v2800
        %v2802 = vpop.f32.mrf.mxu0
        %v2803 = vadd.f32 %v2740, %v2802
        %v2804 = vand.u32 %v959, 4294901760
        %v2805 = vsub.f32 %v959, %v2804
        %v2806 = vand.u32 %v2805, 4294901760
        %2807 = vmatmul.f32.gmra.mxu0 %v2806
        %v2808 = vpop.f32.mrf.mxu0
        %v2809 = vadd.f32 %v2745, %v2808
        %v2810 = vand.u32 %v962, 4294901760
        %v2811 = vsub.f32 %v962, %v2810
        %v2812 = vand.u32 %v2811, 4294901760
        %2813 = vmatmul.f32.gmra.mxu0 %v2812
        %v2814 = vpop.f32.mrf.mxu0
        %v2815 = vadd.f32 %v2750, %v2814
        %v2816 = vand.u32 %v965, 4294901760
        %v2817 = vsub.f32 %v965, %v2816
        %v2818 = vand.u32 %v2817, 4294901760
        %2819 = vmatmul.f32.gmra.mxu0 %v2818
        %v2820 = vpop.f32.mrf.mxu0
        %v2821 = vadd.f32 %v2755, %v2820
        %v2822 = vand.u32 %v968, 4294901760
        %v2823 = vsub.f32 %v968, %v2822
        %v2824 = vand.u32 %v2823, 4294901760
        %2825 = vmatmul.f32.gmra.mxu0 %v2824
        %v2826 = vpop.f32.mrf.mxu0
        %v2827 = vadd.f32 %v2760, %v2826
        %2828 = vdwg.mxu0
        %2829 = vmatpush.msra.mxu0 0.0
        %2830 = vmatpush.msra.mxu0 0.0
        %2831 = vmatpush.msra.mxu0 0.0
        %2832 = vmatpush.msra.mxu0 0.0
        %2833 = vmatpush.msra.mxu0 0.0
        %2834 = vmatpush.msra.mxu0 0.0
        %2835 = vmatpush.msra.mxu0 0.0
        %2836 = vmatpush.msra.mxu0 0.0
        %2837 = vmatpush.msra.mxu0 0.0
        %2838 = vmatpush.msra.mxu0 0.0
        %2839 = vmatpush.msra.mxu0 0.0
        %2840 = vmatpush.msra.mxu0 0.0
        %2841 = vmatpush.msra.mxu0 0.0
        %2842 = vmatpush.msra.mxu0 0.0
        %v2843 = vand.u32 %v2328, 4294901760
        %v2844 = vsub.f32 %v2328, %v2843
        %v2845 = vand.u32 %v2844, 4294901760
        %2846 = vmatpush.msra.mxu0 %v2845
        %v2847 = vand.u32 %v2327, 4294901760
        %v2848 = vsub.f32 %v2327, %v2847
        %v2849 = vand.u32 %v2848, 4294901760
        %2850 = vmatpush.msra.mxu0 %v2849
        %v2851 = vand.u32 %v950, 4294901760
        %2852 = vmatmul.f32.gmra.mxu0 %v2851
        %v2853 = vpop.f32.mrf.mxu0
        %v2854 = vadd.f32 %v2785, %v2853
        %v2855 = vand.u32 %v950, 4294901760
        %2856 = vmatmul.f32.gmra.mxu0 %v2855
        %v2857 = vpop.f32.mrf.mxu0
        %v2858 = vadd.f32 %v2791, %v2857
        %v2859 = vand.u32 %v953, 4294901760
        %2860 = vmatmul.f32.gmra.mxu0 %v2859
        %v2861 = vpop.f32.mrf.mxu0
        %v2862 = vadd.f32 %v2797, %v2861
        %v2863 = vand.u32 %v956, 4294901760
        %2864 = vmatmul.f32.gmra.mxu0 %v2863
        %v2865 = vpop.f32.mrf.mxu0
        %v2866 = vadd.f32 %v2803, %v2865
        %v2867 = vand.u32 %v959, 4294901760
        %2868 = vmatmul.f32.gmra.mxu0 %v2867
        %v2869 = vpop.f32.mrf.mxu0
        %v2870 = vadd.f32 %v2809, %v2869
        %v2871 = vand.u32 %v962, 4294901760
        %2872 = vmatmul.f32.gmra.mxu0 %v2871
        %v2873 = vpop.f32.mrf.mxu0
        %v2874 = vadd.f32 %v2815, %v2873
        %v2875 = vand.u32 %v965, 4294901760
        %2876 = vmatmul.f32.gmra.mxu0 %v2875
        %v2877 = vpop.f32.mrf.mxu0
        %v2878 = vadd.f32 %v2821, %v2877
        %v2879 = vand.u32 %v968, 4294901760
        %2880 = vmatmul.f32.gmra.mxu0 %v2879
        %v2881 = vpop.f32.mrf.mxu0
        %v2882 = vadd.f32 %v2827, %v2881
        %2883 = vdwg.mxu0
        %2884 = vmatpush.msra.mxu0 0.0
        %2885 = vmatpush.msra.mxu0 0.0
        %2886 = vmatpush.msra.mxu0 0.0
        %2887 = vmatpush.msra.mxu0 0.0
        %2888 = vmatpush.msra.mxu0 0.0
        %2889 = vmatpush.msra.mxu0 0.0
        %2890 = vmatpush.msra.mxu0 0.0
        %2891 = vmatpush.msra.mxu0 0.0
        %2892 = vmatpush.msra.mxu0 0.0
        %2893 = vmatpush.msra.mxu0 0.0
        %2894 = vmatpush.msra.mxu0 0.0
        %2895 = vmatpush.msra.mxu0 0.0
        %2896 = vmatpush.msra.mxu0 0.0
        %2897 = vmatpush.msra.mxu0 0.0
        %v2898 = vand.u32 %v2328, 4294901760
        %2899 = vmatpush.msra.mxu0 %v2898
        %v2900 = vand.u32 %v2327, 4294901760
        %2901 = vmatpush.msra.mxu0 %v2900
        %v2902 = vand.u32 %v950, 4294901760
        %2903 = vmatmul.f32.gmra.mxu0 %v2902
        %v2904 = vpop.f32.mrf.mxu0
        %v2905 = vadd.f32 %v2854, %v2904
        %v2906 = vand.u32 %v950, 4294901760
        %2907 = vmatmul.f32.gmra.mxu0 %v2906
        %v2908 = vpop.f32.mrf.mxu0
        %v2909 = vadd.f32 %v2858, %v2908
        %v2910 = vand.u32 %v953, 4294901760
        %2911 = vmatmul.f32.gmra.mxu0 %v2910
        %v2912 = vpop.f32.mrf.mxu0
        %v2913 = vadd.f32 %v2862, %v2912
        %v2914 = vand.u32 %v956, 4294901760
        %2915 = vmatmul.f32.gmra.mxu0 %v2914
        %v2916 = vpop.f32.mrf.mxu0
        %v2917 = vadd.f32 %v2866, %v2916
        %v2918 = vand.u32 %v959, 4294901760
        %2919 = vmatmul.f32.gmra.mxu0 %v2918
        %v2920 = vpop.f32.mrf.mxu0
        %v2921 = vadd.f32 %v2870, %v2920
        %v2922 = vand.u32 %v962, 4294901760
        %2923 = vmatmul.f32.gmra.mxu0 %v2922
        %v2924 = vpop.f32.mrf.mxu0
        %v2925 = vadd.f32 %v2874, %v2924
        %v2926 = vand.u32 %v965, 4294901760
        %2927 = vmatmul.f32.gmra.mxu0 %v2926
        %v2928 = vpop.f32.mrf.mxu0
        %v2929 = vadd.f32 %v2878, %v2928
        %v2930 = vand.u32 %v968, 4294901760
        %2931 = vmatmul.f32.gmra.mxu0 %v2930
        %v2932 = vpop.f32.mrf.mxu0
        %v2933 = vadd.f32 %v2882, %v2932
        %2934 = vdwg.mxu0
        %v2935 = vld [vmem:[%s11] sm:$0x1]
        %v2936 = vld [vmem:[%s10] sm:$0xff]
        %v2937 = vld [vmem:[%s10 + $0x8] sm:$0xff]
        %v2938 = vld [vmem:[%s10 + $0x10] sm:$0xff]
        %v2939 = vld [vmem:[%s10 + $0x18] sm:$0xff]
        %v2941 = vsel %vm2102, %v2905, 0
        %v2944 = vsel %vm2102, %v2909, 0
        %2946 = vmatpush.msra.mxu0 0.0
        %2947 = vmatpush.msra.mxu0 0.0
        %2948 = vmatpush.msra.mxu0 0.0
        %2949 = vmatpush.msra.mxu0 0.0
        %2950 = vmatpush.msra.mxu0 0.0
        %2951 = vmatpush.msra.mxu0 0.0
        %2952 = vmatpush.msra.mxu0 0.0
        %2953 = vmatpush.msra.mxu0 0.0
        %2954 = vmatpush.msra.mxu0 0.0
        %2955 = vmatpush.msra.mxu0 0.0
        %2956 = vmatpush.msra.mxu0 0.0
        %2957 = vmatpush.msra.mxu0 0.0
        %v2958 = vand.u32 %v2939, 4294901760
        %2959 = vmatpush.msra.mxu0 %v2958
        %v2960 = vand.u32 %v2938, 4294901760
        %2961 = vmatpush.msra.mxu0 %v2960
        %v2962 = vand.u32 %v2937, 4294901760
        %2963 = vmatpush.msra.mxu0 %v2962
        %v2964 = vand.u32 %v2936, 4294901760
        %2965 = vmatpush.msra.mxu0 %v2964
        %v2966 = vand.u32 %v2941, 4294901760
        %v2967 = vsub.f32 %v2941, %v2966
        %v2968 = vand.u32 %v2967, 4294901760
        %v2969 = vsub.f32 %v2967, %v2968
        %v2970 = vand.u32 %v2969, 4294901760
        %2971 = vmatmul.f32.gmra.mxu0 %v2970
        %v2972 = vpop.f32.mrf.mxu0
        %v2973 = vadd.f32 0.0, %v2972
        %v2974 = vand.u32 %v2944, 4294901760
        %v2975 = vsub.f32 %v2944, %v2974
        %v2976 = vand.u32 %v2975, 4294901760
        %v2977 = vsub.f32 %v2975, %v2976
        %v2978 = vand.u32 %v2977, 4294901760
        %2979 = vmatmul.f32.gmra.mxu0 %v2978
        %v2980 = vpop.f32.mrf.mxu0
        %v2981 = vadd.f32 0.0, %v2980
        %2982 = vdwg.mxu0
        %2983 = vmatpush.msra.mxu0 0.0
        %2984 = vmatpush.msra.mxu0 0.0
        %2985 = vmatpush.msra.mxu0 0.0
        %2986 = vmatpush.msra.mxu0 0.0
        %2987 = vmatpush.msra.mxu0 0.0
        %2988 = vmatpush.msra.mxu0 0.0
        %2989 = vmatpush.msra.mxu0 0.0
        %2990 = vmatpush.msra.mxu0 0.0
        %2991 = vmatpush.msra.mxu0 0.0
        %2992 = vmatpush.msra.mxu0 0.0
        %2993 = vmatpush.msra.mxu0 0.0
        %2994 = vmatpush.msra.mxu0 0.0
        %v2995 = vand.u32 %v2939, 4294901760
        %v2996 = vsub.f32 %v2939, %v2995
        %v2997 = vand.u32 %v2996, 4294901760
        %v2998 = vsub.f32 %v2996, %v2997
        %v2999 = vand.u32 %v2998, 4294901760
        %3000 = vmatpush.msra.mxu0 %v2999
        %v3001 = vand.u32 %v2938, 4294901760
        %v3002 = vsub.f32 %v2938, %v3001
        %v3003 = vand.u32 %v3002, 4294901760
        %v3004 = vsub.f32 %v3002, %v3003
        %v3005 = vand.u32 %v3004, 4294901760
        %3006 = vmatpush.msra.mxu0 %v3005
        %v3007 = vand.u32 %v2937, 4294901760
        %v3008 = vsub.f32 %v2937, %v3007
        %v3009 = vand.u32 %v3008, 4294901760
        %v3010 = vsub.f32 %v3008, %v3009
        %v3011 = vand.u32 %v3010, 4294901760
        %3012 = vmatpush.msra.mxu0 %v3011
        %v3013 = vand.u32 %v2936, 4294901760
        %v3014 = vsub.f32 %v2936, %v3013
        %v3015 = vand.u32 %v3014, 4294901760
        %v3016 = vsub.f32 %v3014, %v3015
        %v3017 = vand.u32 %v3016, 4294901760
        %3018 = vmatpush.msra.mxu0 %v3017
        %v3019 = vand.u32 %v2941, 4294901760
        %3020 = vmatmul.f32.gmra.mxu0 %v3019
        %v3021 = vpop.f32.mrf.mxu0
        %v3022 = vadd.f32 %v2973, %v3021
        %v3023 = vand.u32 %v2944, 4294901760
        %3024 = vmatmul.f32.gmra.mxu0 %v3023
        %v3025 = vpop.f32.mrf.mxu0
        %v3026 = vadd.f32 %v2981, %v3025
        %3027 = vdwg.mxu0
        %3028 = vmatpush.msra.mxu0 0.0
        %3029 = vmatpush.msra.mxu0 0.0
        %3030 = vmatpush.msra.mxu0 0.0
        %3031 = vmatpush.msra.mxu0 0.0
        %3032 = vmatpush.msra.mxu0 0.0
        %3033 = vmatpush.msra.mxu0 0.0
        %3034 = vmatpush.msra.mxu0 0.0
        %3035 = vmatpush.msra.mxu0 0.0
        %3036 = vmatpush.msra.mxu0 0.0
        %3037 = vmatpush.msra.mxu0 0.0
        %3038 = vmatpush.msra.mxu0 0.0
        %3039 = vmatpush.msra.mxu0 0.0
        %v3040 = vand.u32 %v2939, 4294901760
        %v3041 = vsub.f32 %v2939, %v3040
        %3042 = vmatpush.msra.mxu0 %v3041
        %v3043 = vand.u32 %v2938, 4294901760
        %v3044 = vsub.f32 %v2938, %v3043
        %3045 = vmatpush.msra.mxu0 %v3044
        %v3046 = vand.u32 %v2937, 4294901760
        %v3047 = vsub.f32 %v2937, %v3046
        %3048 = vmatpush.msra.mxu0 %v3047
        %v3049 = vand.u32 %v2936, 4294901760
        %v3050 = vsub.f32 %v2936, %v3049
        %3051 = vmatpush.msra.mxu0 %v3050
        %v3052 = vand.u32 %v2941, 4294901760
        %v3053 = vsub.f32 %v2941, %v3052
        %3054 = vmatmul.f32.gmra.mxu0 %v3053
        %v3055 = vpop.f32.mrf.mxu0
        %v3056 = vadd.f32 %v3022, %v3055
        %v3057 = vand.u32 %v2944, 4294901760
        %v3058 = vsub.f32 %v2944, %v3057
        %3059 = vmatmul.f32.gmra.mxu0 %v3058
        %v3060 = vpop.f32.mrf.mxu0
        %v3061 = vadd.f32 %v3026, %v3060
        %3062 = vdwg.mxu0
        %3063 = vmatpush.msra.mxu0 0.0
        %3064 = vmatpush.msra.mxu0 0.0
        %3065 = vmatpush.msra.mxu0 0.0
        %3066 = vmatpush.msra.mxu0 0.0
        %3067 = vmatpush.msra.mxu0 0.0
        %3068 = vmatpush.msra.mxu0 0.0
        %3069 = vmatpush.msra.mxu0 0.0
        %3070 = vmatpush.msra.mxu0 0.0
        %3071 = vmatpush.msra.mxu0 0.0
        %3072 = vmatpush.msra.mxu0 0.0
        %3073 = vmatpush.msra.mxu0 0.0
        %3074 = vmatpush.msra.mxu0 0.0
        %v3075 = vand.u32 %v2939, 4294901760
        %3076 = vmatpush.msra.mxu0 %v3075
        %v3077 = vand.u32 %v2938, 4294901760
        %3078 = vmatpush.msra.mxu0 %v3077
        %v3079 = vand.u32 %v2937, 4294901760
        %3080 = vmatpush.msra.mxu0 %v3079
        %v3081 = vand.u32 %v2936, 4294901760
        %3082 = vmatpush.msra.mxu0 %v3081
        %v3083 = vand.u32 %v2941, 4294901760
        %v3084 = vsub.f32 %v2941, %v3083
        %v3085 = vand.u32 %v3084, 4294901760
        %3086 = vmatmul.f32.gmra.mxu0 %v3085
        %v3087 = vpop.f32.mrf.mxu0
        %v3088 = vadd.f32 %v3056, %v3087
        %v3089 = vand.u32 %v2944, 4294901760
        %v3090 = vsub.f32 %v2944, %v3089
        %v3091 = vand.u32 %v3090, 4294901760
        %3092 = vmatmul.f32.gmra.mxu0 %v3091
        %v3093 = vpop.f32.mrf.mxu0
        %v3094 = vadd.f32 %v3061, %v3093
        %3095 = vdwg.mxu0
        %3096 = vmatpush.msra.mxu0 0.0
        %3097 = vmatpush.msra.mxu0 0.0
        %3098 = vmatpush.msra.mxu0 0.0
        %3099 = vmatpush.msra.mxu0 0.0
        %3100 = vmatpush.msra.mxu0 0.0
        %3101 = vmatpush.msra.mxu0 0.0
        %3102 = vmatpush.msra.mxu0 0.0
        %3103 = vmatpush.msra.mxu0 0.0
        %3104 = vmatpush.msra.mxu0 0.0
        %3105 = vmatpush.msra.mxu0 0.0
        %3106 = vmatpush.msra.mxu0 0.0
        %3107 = vmatpush.msra.mxu0 0.0
        %v3108 = vand.u32 %v2939, 4294901760
        %v3109 = vsub.f32 %v2939, %v3108
        %v3110 = vand.u32 %v3109, 4294901760
        %3111 = vmatpush.msra.mxu0 %v3110
        %v3112 = vand.u32 %v2938, 4294901760
        %v3113 = vsub.f32 %v2938, %v3112
        %v3114 = vand.u32 %v3113, 4294901760
        %3115 = vmatpush.msra.mxu0 %v3114
        %v3116 = vand.u32 %v2937, 4294901760
        %v3117 = vsub.f32 %v2937, %v3116
        %v3118 = vand.u32 %v3117, 4294901760
        %3119 = vmatpush.msra.mxu0 %v3118
        %v3120 = vand.u32 %v2936, 4294901760
        %v3121 = vsub.f32 %v2936, %v3120
        %v3122 = vand.u32 %v3121, 4294901760
        %3123 = vmatpush.msra.mxu0 %v3122
        %v3124 = vand.u32 %v2941, 4294901760
        %3125 = vmatmul.f32.gmra.mxu0 %v3124
        %v3126 = vpop.f32.mrf.mxu0
        %v3127 = vadd.f32 %v3088, %v3126
        %v3128 = vand.u32 %v2944, 4294901760
        %3129 = vmatmul.f32.gmra.mxu0 %v3128
        %v3130 = vpop.f32.mrf.mxu0
        %v3131 = vadd.f32 %v3094, %v3130
        %3132 = vdwg.mxu0
        %3133 = vmatpush.msra.mxu0 0.0
        %3134 = vmatpush.msra.mxu0 0.0
        %3135 = vmatpush.msra.mxu0 0.0
        %3136 = vmatpush.msra.mxu0 0.0
        %3137 = vmatpush.msra.mxu0 0.0
        %3138 = vmatpush.msra.mxu0 0.0
        %3139 = vmatpush.msra.mxu0 0.0
        %3140 = vmatpush.msra.mxu0 0.0
        %3141 = vmatpush.msra.mxu0 0.0
        %3142 = vmatpush.msra.mxu0 0.0
        %3143 = vmatpush.msra.mxu0 0.0
        %3144 = vmatpush.msra.mxu0 0.0
        %v3145 = vand.u32 %v2939, 4294901760
        %3146 = vmatpush.msra.mxu0 %v3145
        %v3147 = vand.u32 %v2938, 4294901760
        %3148 = vmatpush.msra.mxu0 %v3147
        %v3149 = vand.u32 %v2937, 4294901760
        %3150 = vmatpush.msra.mxu0 %v3149
        %v3151 = vand.u32 %v2936, 4294901760
        %3152 = vmatpush.msra.mxu0 %v3151
        %v3153 = vand.u32 %v2941, 4294901760
        %3154 = vmatmul.f32.gmra.mxu0 %v3153
        %v3155 = vpop.f32.mrf.mxu0
        %v3156 = vadd.f32 %v3127, %v3155
        %v3157 = vand.u32 %v2944, 4294901760
        %3158 = vmatmul.f32.gmra.mxu0 %v3157
        %v3159 = vpop.f32.mrf.mxu0
        %v3160 = vadd.f32 %v3131, %v3159
        %3161 = vdwg.mxu0
        %v3163 = vperm.slane %v2935, 0
        %v3165 = vadd.f32 %v3163, %v3156
        %v3166 = vadd.f32 %v3163, %v3160
        %v3167 = vld [vmem:[%s10 + $0x20] sm:$0xff]
        %v3168 = vld [vmem:[%s10 + $0x28] sm:$0xff]
        %v3169 = vld [vmem:[%s10 + $0x30] sm:$0xff]
        %v3170 = vld [vmem:[%s10 + $0x38] sm:$0xff]
        %v3172 = vsel %vm2102, %v2913, 0
        %v3175 = vsel %vm2102, %v2917, 0
        %3177 = vmatpush.msra.mxu0 0.0
        %3178 = vmatpush.msra.mxu0 0.0
        %3179 = vmatpush.msra.mxu0 0.0
        %3180 = vmatpush.msra.mxu0 0.0
        %3181 = vmatpush.msra.mxu0 0.0
        %3182 = vmatpush.msra.mxu0 0.0
        %3183 = vmatpush.msra.mxu0 0.0
        %3184 = vmatpush.msra.mxu0 0.0
        %3185 = vmatpush.msra.mxu0 0.0
        %3186 = vmatpush.msra.mxu0 0.0
        %3187 = vmatpush.msra.mxu0 0.0
        %3188 = vmatpush.msra.mxu0 0.0
        %v3189 = vand.u32 %v3170, 4294901760
        %3190 = vmatpush.msra.mxu0 %v3189
        %v3191 = vand.u32 %v3169, 4294901760
        %3192 = vmatpush.msra.mxu0 %v3191
        %v3193 = vand.u32 %v3168, 4294901760
        %3194 = vmatpush.msra.mxu0 %v3193
        %v3195 = vand.u32 %v3167, 4294901760
        %3196 = vmatpush.msra.mxu0 %v3195
        %v3197 = vand.u32 %v3172, 4294901760
        %v3198 = vsub.f32 %v3172, %v3197
        %v3199 = vand.u32 %v3198, 4294901760
        %v3200 = vsub.f32 %v3198, %v3199
        %v3201 = vand.u32 %v3200, 4294901760
        %3202 = vmatmul.f32.gmra.mxu0 %v3201
        %v3203 = vpop.f32.mrf.mxu0
        %v3204 = vadd.f32 0.0, %v3203
        %v3205 = vand.u32 %v3175, 4294901760
        %v3206 = vsub.f32 %v3175, %v3205
        %v3207 = vand.u32 %v3206, 4294901760
        %v3208 = vsub.f32 %v3206, %v3207
        %v3209 = vand.u32 %v3208, 4294901760
        %3210 = vmatmul.f32.gmra.mxu0 %v3209
        %v3211 = vpop.f32.mrf.mxu0
        %v3212 = vadd.f32 0.0, %v3211
        %3213 = vdwg.mxu0
        %3214 = vmatpush.msra.mxu0 0.0
        %3215 = vmatpush.msra.mxu0 0.0
        %3216 = vmatpush.msra.mxu0 0.0
        %3217 = vmatpush.msra.mxu0 0.0
        %3218 = vmatpush.msra.mxu0 0.0
        %3219 = vmatpush.msra.mxu0 0.0
        %3220 = vmatpush.msra.mxu0 0.0
        %3221 = vmatpush.msra.mxu0 0.0
        %3222 = vmatpush.msra.mxu0 0.0
        %3223 = vmatpush.msra.mxu0 0.0
        %3224 = vmatpush.msra.mxu0 0.0
        %3225 = vmatpush.msra.mxu0 0.0
        %v3226 = vand.u32 %v3170, 4294901760
        %v3227 = vsub.f32 %v3170, %v3226
        %v3228 = vand.u32 %v3227, 4294901760
        %v3229 = vsub.f32 %v3227, %v3228
        %v3230 = vand.u32 %v3229, 4294901760
        %3231 = vmatpush.msra.mxu0 %v3230
        %v3232 = vand.u32 %v3169, 4294901760
        %v3233 = vsub.f32 %v3169, %v3232
        %v3234 = vand.u32 %v3233, 4294901760
        %v3235 = vsub.f32 %v3233, %v3234
        %v3236 = vand.u32 %v3235, 4294901760
        %3237 = vmatpush.msra.mxu0 %v3236
        %v3238 = vand.u32 %v3168, 4294901760
        %v3239 = vsub.f32 %v3168, %v3238
        %v3240 = vand.u32 %v3239, 4294901760
        %v3241 = vsub.f32 %v3239, %v3240
        %v3242 = vand.u32 %v3241, 4294901760
        %3243 = vmatpush.msra.mxu0 %v3242
        %v3244 = vand.u32 %v3167, 4294901760
        %v3245 = vsub.f32 %v3167, %v3244
        %v3246 = vand.u32 %v3245, 4294901760
        %v3247 = vsub.f32 %v3245, %v3246
        %v3248 = vand.u32 %v3247, 4294901760
        %3249 = vmatpush.msra.mxu0 %v3248
        %v3250 = vand.u32 %v3172, 4294901760
        %3251 = vmatmul.f32.gmra.mxu0 %v3250
        %v3252 = vpop.f32.mrf.mxu0
        %v3253 = vadd.f32 %v3204, %v3252
        %v3254 = vand.u32 %v3175, 4294901760
        %3255 = vmatmul.f32.gmra.mxu0 %v3254
        %v3256 = vpop.f32.mrf.mxu0
        %v3257 = vadd.f32 %v3212, %v3256
        %3258 = vdwg.mxu0
        %3259 = vmatpush.msra.mxu0 0.0
        %3260 = vmatpush.msra.mxu0 0.0
        %3261 = vmatpush.msra.mxu0 0.0
        %3262 = vmatpush.msra.mxu0 0.0
        %3263 = vmatpush.msra.mxu0 0.0
        %3264 = vmatpush.msra.mxu0 0.0
        %3265 = vmatpush.msra.mxu0 0.0
        %3266 = vmatpush.msra.mxu0 0.0
        %3267 = vmatpush.msra.mxu0 0.0
        %3268 = vmatpush.msra.mxu0 0.0
        %3269 = vmatpush.msra.mxu0 0.0
        %3270 = vmatpush.msra.mxu0 0.0
        %v3271 = vand.u32 %v3170, 4294901760
        %v3272 = vsub.f32 %v3170, %v3271
        %3273 = vmatpush.msra.mxu0 %v3272
        %v3274 = vand.u32 %v3169, 4294901760
        %v3275 = vsub.f32 %v3169, %v3274
        %3276 = vmatpush.msra.mxu0 %v3275
        %v3277 = vand.u32 %v3168, 4294901760
        %v3278 = vsub.f32 %v3168, %v3277
        %3279 = vmatpush.msra.mxu0 %v3278
        %v3280 = vand.u32 %v3167, 4294901760
        %v3281 = vsub.f32 %v3167, %v3280
        %3282 = vmatpush.msra.mxu0 %v3281
        %v3283 = vand.u32 %v3172, 4294901760
        %v3284 = vsub.f32 %v3172, %v3283
        %3285 = vmatmul.f32.gmra.mxu0 %v3284
        %v3286 = vpop.f32.mrf.mxu0
        %v3287 = vadd.f32 %v3253, %v3286
        %v3288 = vand.u32 %v3175, 4294901760
        %v3289 = vsub.f32 %v3175, %v3288
        %3290 = vmatmul.f32.gmra.mxu0 %v3289
        %v3291 = vpop.f32.mrf.mxu0
        %v3292 = vadd.f32 %v3257, %v3291
        %3293 = vdwg.mxu0
        %3294 = vmatpush.msra.mxu0 0.0
        %3295 = vmatpush.msra.mxu0 0.0
        %3296 = vmatpush.msra.mxu0 0.0
        %3297 = vmatpush.msra.mxu0 0.0
        %3298 = vmatpush.msra.mxu0 0.0
        %3299 = vmatpush.msra.mxu0 0.0
        %3300 = vmatpush.msra.mxu0 0.0
        %3301 = vmatpush.msra.mxu0 0.0
        %3302 = vmatpush.msra.mxu0 0.0
        %3303 = vmatpush.msra.mxu0 0.0
        %3304 = vmatpush.msra.mxu0 0.0
        %3305 = vmatpush.msra.mxu0 0.0
        %v3306 = vand.u32 %v3170, 4294901760
        %3307 = vmatpush.msra.mxu0 %v3306
        %v3308 = vand.u32 %v3169, 4294901760
        %3309 = vmatpush.msra.mxu0 %v3308
        %v3310 = vand.u32 %v3168, 4294901760
        %3311 = vmatpush.msra.mxu0 %v3310
        %v3312 = vand.u32 %v3167, 4294901760
        %3313 = vmatpush.msra.mxu0 %v3312
        %v3314 = vand.u32 %v3172, 4294901760
        %v3315 = vsub.f32 %v3172, %v3314
        %v3316 = vand.u32 %v3315, 4294901760
        %3317 = vmatmul.f32.gmra.mxu0 %v3316
        %v3318 = vpop.f32.mrf.mxu0
        %v3319 = vadd.f32 %v3287, %v3318
        %v3320 = vand.u32 %v3175, 4294901760
        %v3321 = vsub.f32 %v3175, %v3320
        %v3322 = vand.u32 %v3321, 4294901760
        %3323 = vmatmul.f32.gmra.mxu0 %v3322
        %v3324 = vpop.f32.mrf.mxu0
        %v3325 = vadd.f32 %v3292, %v3324
        %3326 = vdwg.mxu0
        %3327 = vmatpush.msra.mxu0 0.0
        %3328 = vmatpush.msra.mxu0 0.0
        %3329 = vmatpush.msra.mxu0 0.0
        %3330 = vmatpush.msra.mxu0 0.0
        %3331 = vmatpush.msra.mxu0 0.0
        %3332 = vmatpush.msra.mxu0 0.0
        %3333 = vmatpush.msra.mxu0 0.0
        %3334 = vmatpush.msra.mxu0 0.0
        %3335 = vmatpush.msra.mxu0 0.0
        %3336 = vmatpush.msra.mxu0 0.0
        %3337 = vmatpush.msra.mxu0 0.0
        %3338 = vmatpush.msra.mxu0 0.0
        %v3339 = vand.u32 %v3170, 4294901760
        %v3340 = vsub.f32 %v3170, %v3339
        %v3341 = vand.u32 %v3340, 4294901760
        %3342 = vmatpush.msra.mxu0 %v3341
        %v3343 = vand.u32 %v3169, 4294901760
        %v3344 = vsub.f32 %v3169, %v3343
        %v3345 = vand.u32 %v3344, 4294901760
        %3346 = vmatpush.msra.mxu0 %v3345
        %v3347 = vand.u32 %v3168, 4294901760
        %v3348 = vsub.f32 %v3168, %v3347
        %v3349 = vand.u32 %v3348, 4294901760
        %3350 = vmatpush.msra.mxu0 %v3349
        %v3351 = vand.u32 %v3167, 4294901760
        %v3352 = vsub.f32 %v3167, %v3351
        %v3353 = vand.u32 %v3352, 4294901760
        %3354 = vmatpush.msra.mxu0 %v3353
        %v3355 = vand.u32 %v3172, 4294901760
        %3356 = vmatmul.f32.gmra.mxu0 %v3355
        %v3357 = vpop.f32.mrf.mxu0
        %v3358 = vadd.f32 %v3319, %v3357
        %v3359 = vand.u32 %v3175, 4294901760
        %3360 = vmatmul.f32.gmra.mxu0 %v3359
        %v3361 = vpop.f32.mrf.mxu0
        %v3362 = vadd.f32 %v3325, %v3361
        %3363 = vdwg.mxu0
        %3364 = vmatpush.msra.mxu0 0.0
        %3365 = vmatpush.msra.mxu0 0.0
        %3366 = vmatpush.msra.mxu0 0.0
        %3367 = vmatpush.msra.mxu0 0.0
        %3368 = vmatpush.msra.mxu0 0.0
        %3369 = vmatpush.msra.mxu0 0.0
        %3370 = vmatpush.msra.mxu0 0.0
        %3371 = vmatpush.msra.mxu0 0.0
        %3372 = vmatpush.msra.mxu0 0.0
        %3373 = vmatpush.msra.mxu0 0.0
        %3374 = vmatpush.msra.mxu0 0.0
        %3375 = vmatpush.msra.mxu0 0.0
        %v3376 = vand.u32 %v3170, 4294901760
        %3377 = vmatpush.msra.mxu0 %v3376
        %v3378 = vand.u32 %v3169, 4294901760
        %3379 = vmatpush.msra.mxu0 %v3378
        %v3380 = vand.u32 %v3168, 4294901760
        %3381 = vmatpush.msra.mxu0 %v3380
        %v3382 = vand.u32 %v3167, 4294901760
        %3383 = vmatpush.msra.mxu0 %v3382
        %v3384 = vand.u32 %v3172, 4294901760
        %3385 = vmatmul.f32.gmra.mxu0 %v3384
        %v3386 = vpop.f32.mrf.mxu0
        %v3387 = vadd.f32 %v3358, %v3386
        %v3388 = vand.u32 %v3175, 4294901760
        %3389 = vmatmul.f32.gmra.mxu0 %v3388
        %v3390 = vpop.f32.mrf.mxu0
        %v3391 = vadd.f32 %v3362, %v3390
        %3392 = vdwg.mxu0
        %v3393 = vadd.f32 %v3165, %v3387
        %v3394 = vadd.f32 %v3166, %v3391
        %v3395 = vld [vmem:[%s10 + $0x40] sm:$0xff]
        %v3396 = vld [vmem:[%s10 + $0x48] sm:$0xff]
        %v3397 = vld [vmem:[%s10 + $0x50] sm:$0xff]
        %v3398 = vld [vmem:[%s10 + $0x58] sm:$0xff]
        %v3400 = vsel %vm2102, %v2921, 0
        %v3403 = vsel %vm2102, %v2925, 0
        %3405 = vmatpush.msra.mxu0 0.0
        %3406 = vmatpush.msra.mxu0 0.0
        %3407 = vmatpush.msra.mxu0 0.0
        %3408 = vmatpush.msra.mxu0 0.0
        %3409 = vmatpush.msra.mxu0 0.0
        %3410 = vmatpush.msra.mxu0 0.0
        %3411 = vmatpush.msra.mxu0 0.0
        %3412 = vmatpush.msra.mxu0 0.0
        %3413 = vmatpush.msra.mxu0 0.0
        %3414 = vmatpush.msra.mxu0 0.0
        %3415 = vmatpush.msra.mxu0 0.0
        %3416 = vmatpush.msra.mxu0 0.0
        %v3417 = vand.u32 %v3398, 4294901760
        %3418 = vmatpush.msra.mxu0 %v3417
        %v3419 = vand.u32 %v3397, 4294901760
        %3420 = vmatpush.msra.mxu0 %v3419
        %v3421 = vand.u32 %v3396, 4294901760
        %3422 = vmatpush.msra.mxu0 %v3421
        %v3423 = vand.u32 %v3395, 4294901760
        %3424 = vmatpush.msra.mxu0 %v3423
        %v3425 = vand.u32 %v3400, 4294901760
        %v3426 = vsub.f32 %v3400, %v3425
        %v3427 = vand.u32 %v3426, 4294901760
        %v3428 = vsub.f32 %v3426, %v3427
        %v3429 = vand.u32 %v3428, 4294901760
        %3430 = vmatmul.f32.gmra.mxu0 %v3429
        %v3431 = vpop.f32.mrf.mxu0
        %v3432 = vadd.f32 0.0, %v3431
        %v3433 = vand.u32 %v3403, 4294901760
        %v3434 = vsub.f32 %v3403, %v3433
        %v3435 = vand.u32 %v3434, 4294901760
        %v3436 = vsub.f32 %v3434, %v3435
        %v3437 = vand.u32 %v3436, 4294901760
        %3438 = vmatmul.f32.gmra.mxu0 %v3437
        %v3439 = vpop.f32.mrf.mxu0
        %v3440 = vadd.f32 0.0, %v3439
        %3441 = vdwg.mxu0
        %3442 = vmatpush.msra.mxu0 0.0
        %3443 = vmatpush.msra.mxu0 0.0
        %3444 = vmatpush.msra.mxu0 0.0
        %3445 = vmatpush.msra.mxu0 0.0
        %3446 = vmatpush.msra.mxu0 0.0
        %3447 = vmatpush.msra.mxu0 0.0
        %3448 = vmatpush.msra.mxu0 0.0
        %3449 = vmatpush.msra.mxu0 0.0
        %3450 = vmatpush.msra.mxu0 0.0
        %3451 = vmatpush.msra.mxu0 0.0
        %3452 = vmatpush.msra.mxu0 0.0
        %3453 = vmatpush.msra.mxu0 0.0
        %v3454 = vand.u32 %v3398, 4294901760
        %v3455 = vsub.f32 %v3398, %v3454
        %v3456 = vand.u32 %v3455, 4294901760
        %v3457 = vsub.f32 %v3455, %v3456
        %v3458 = vand.u32 %v3457, 4294901760
        %3459 = vmatpush.msra.mxu0 %v3458
        %v3460 = vand.u32 %v3397, 4294901760
        %v3461 = vsub.f32 %v3397, %v3460
        %v3462 = vand.u32 %v3461, 4294901760
        %v3463 = vsub.f32 %v3461, %v3462
        %v3464 = vand.u32 %v3463, 4294901760
        %3465 = vmatpush.msra.mxu0 %v3464
        %v3466 = vand.u32 %v3396, 4294901760
        %v3467 = vsub.f32 %v3396, %v3466
        %v3468 = vand.u32 %v3467, 4294901760
        %v3469 = vsub.f32 %v3467, %v3468
        %v3470 = vand.u32 %v3469, 4294901760
        %3471 = vmatpush.msra.mxu0 %v3470
        %v3472 = vand.u32 %v3395, 4294901760
        %v3473 = vsub.f32 %v3395, %v3472
        %v3474 = vand.u32 %v3473, 4294901760
        %v3475 = vsub.f32 %v3473, %v3474
        %v3476 = vand.u32 %v3475, 4294901760
        %3477 = vmatpush.msra.mxu0 %v3476
        %v3478 = vand.u32 %v3400, 4294901760
        %3479 = vmatmul.f32.gmra.mxu0 %v3478
        %v3480 = vpop.f32.mrf.mxu0
        %v3481 = vadd.f32 %v3432, %v3480
        %v3482 = vand.u32 %v3403, 4294901760
        %3483 = vmatmul.f32.gmra.mxu0 %v3482
        %v3484 = vpop.f32.mrf.mxu0
        %v3485 = vadd.f32 %v3440, %v3484
        %3486 = vdwg.mxu0
        %3487 = vmatpush.msra.mxu0 0.0
        %3488 = vmatpush.msra.mxu0 0.0
        %3489 = vmatpush.msra.mxu0 0.0
        %3490 = vmatpush.msra.mxu0 0.0
        %3491 = vmatpush.msra.mxu0 0.0
        %3492 = vmatpush.msra.mxu0 0.0
        %3493 = vmatpush.msra.mxu0 0.0
        %3494 = vmatpush.msra.mxu0 0.0
        %3495 = vmatpush.msra.mxu0 0.0
        %3496 = vmatpush.msra.mxu0 0.0
        %3497 = vmatpush.msra.mxu0 0.0
        %3498 = vmatpush.msra.mxu0 0.0
        %v3499 = vand.u32 %v3398, 4294901760
        %v3500 = vsub.f32 %v3398, %v3499
        %3501 = vmatpush.msra.mxu0 %v3500
        %v3502 = vand.u32 %v3397, 4294901760
        %v3503 = vsub.f32 %v3397, %v3502
        %3504 = vmatpush.msra.mxu0 %v3503
        %v3505 = vand.u32 %v3396, 4294901760
        %v3506 = vsub.f32 %v3396, %v3505
        %3507 = vmatpush.msra.mxu0 %v3506
        %v3508 = vand.u32 %v3395, 4294901760
        %v3509 = vsub.f32 %v3395, %v3508
        %3510 = vmatpush.msra.mxu0 %v3509
        %v3511 = vand.u32 %v3400, 4294901760
        %v3512 = vsub.f32 %v3400, %v3511
        %3513 = vmatmul.f32.gmra.mxu0 %v3512
        %v3514 = vpop.f32.mrf.mxu0
        %v3515 = vadd.f32 %v3481, %v3514
        %v3516 = vand.u32 %v3403, 4294901760
        %v3517 = vsub.f32 %v3403, %v3516
        %3518 = vmatmul.f32.gmra.mxu0 %v3517
        %v3519 = vpop.f32.mrf.mxu0
        %v3520 = vadd.f32 %v3485, %v3519
        %3521 = vdwg.mxu0
        %3522 = vmatpush.msra.mxu0 0.0
        %3523 = vmatpush.msra.mxu0 0.0
        %3524 = vmatpush.msra.mxu0 0.0
        %3525 = vmatpush.msra.mxu0 0.0
        %3526 = vmatpush.msra.mxu0 0.0
        %3527 = vmatpush.msra.mxu0 0.0
        %3528 = vmatpush.msra.mxu0 0.0
        %3529 = vmatpush.msra.mxu0 0.0
        %3530 = vmatpush.msra.mxu0 0.0
        %3531 = vmatpush.msra.mxu0 0.0
        %3532 = vmatpush.msra.mxu0 0.0
        %3533 = vmatpush.msra.mxu0 0.0
        %v3534 = vand.u32 %v3398, 4294901760
        %3535 = vmatpush.msra.mxu0 %v3534
        %v3536 = vand.u32 %v3397, 4294901760
        %3537 = vmatpush.msra.mxu0 %v3536
        %v3538 = vand.u32 %v3396, 4294901760
        %3539 = vmatpush.msra.mxu0 %v3538
        %v3540 = vand.u32 %v3395, 4294901760
        %3541 = vmatpush.msra.mxu0 %v3540
        %v3542 = vand.u32 %v3400, 4294901760
        %v3543 = vsub.f32 %v3400, %v3542
        %v3544 = vand.u32 %v3543, 4294901760
        %3545 = vmatmul.f32.gmra.mxu0 %v3544
        %v3546 = vpop.f32.mrf.mxu0
        %v3547 = vadd.f32 %v3515, %v3546
        %v3548 = vand.u32 %v3403, 4294901760
        %v3549 = vsub.f32 %v3403, %v3548
        %v3550 = vand.u32 %v3549, 4294901760
        %3551 = vmatmul.f32.gmra.mxu0 %v3550
        %v3552 = vpop.f32.mrf.mxu0
        %v3553 = vadd.f32 %v3520, %v3552
        %3554 = vdwg.mxu0
        %3555 = vmatpush.msra.mxu0 0.0
        %3556 = vmatpush.msra.mxu0 0.0
        %3557 = vmatpush.msra.mxu0 0.0
        %3558 = vmatpush.msra.mxu0 0.0
        %3559 = vmatpush.msra.mxu0 0.0
        %3560 = vmatpush.msra.mxu0 0.0
        %3561 = vmatpush.msra.mxu0 0.0
        %3562 = vmatpush.msra.mxu0 0.0
        %3563 = vmatpush.msra.mxu0 0.0
        %3564 = vmatpush.msra.mxu0 0.0
        %3565 = vmatpush.msra.mxu0 0.0
        %3566 = vmatpush.msra.mxu0 0.0
        %v3567 = vand.u32 %v3398, 4294901760
        %v3568 = vsub.f32 %v3398, %v3567
        %v3569 = vand.u32 %v3568, 4294901760
        %3570 = vmatpush.msra.mxu0 %v3569
        %v3571 = vand.u32 %v3397, 4294901760
        %v3572 = vsub.f32 %v3397, %v3571
        %v3573 = vand.u32 %v3572, 4294901760
        %3574 = vmatpush.msra.mxu0 %v3573
        %v3575 = vand.u32 %v3396, 4294901760
        %v3576 = vsub.f32 %v3396, %v3575
        %v3577 = vand.u32 %v3576, 4294901760
        %3578 = vmatpush.msra.mxu0 %v3577
        %v3579 = vand.u32 %v3395, 4294901760
        %v3580 = vsub.f32 %v3395, %v3579
        %v3581 = vand.u32 %v3580, 4294901760
        %3582 = vmatpush.msra.mxu0 %v3581
        %v3583 = vand.u32 %v3400, 4294901760
        %3584 = vmatmul.f32.gmra.mxu0 %v3583
        %v3585 = vpop.f32.mrf.mxu0
        %v3586 = vadd.f32 %v3547, %v3585
        %v3587 = vand.u32 %v3403, 4294901760
        %3588 = vmatmul.f32.gmra.mxu0 %v3587
        %v3589 = vpop.f32.mrf.mxu0
        %v3590 = vadd.f32 %v3553, %v3589
        %3591 = vdwg.mxu0
        %3592 = vmatpush.msra.mxu0 0.0
        %3593 = vmatpush.msra.mxu0 0.0
        %3594 = vmatpush.msra.mxu0 0.0
        %3595 = vmatpush.msra.mxu0 0.0
        %3596 = vmatpush.msra.mxu0 0.0
        %3597 = vmatpush.msra.mxu0 0.0
        %3598 = vmatpush.msra.mxu0 0.0
        %3599 = vmatpush.msra.mxu0 0.0
        %3600 = vmatpush.msra.mxu0 0.0
        %3601 = vmatpush.msra.mxu0 0.0
        %3602 = vmatpush.msra.mxu0 0.0
        %3603 = vmatpush.msra.mxu0 0.0
        %v3604 = vand.u32 %v3398, 4294901760
        %3605 = vmatpush.msra.mxu0 %v3604
        %v3606 = vand.u32 %v3397, 4294901760
        %3607 = vmatpush.msra.mxu0 %v3606
        %v3608 = vand.u32 %v3396, 4294901760
        %3609 = vmatpush.msra.mxu0 %v3608
        %v3610 = vand.u32 %v3395, 4294901760
        %3611 = vmatpush.msra.mxu0 %v3610
        %v3612 = vand.u32 %v3400, 4294901760
        %3613 = vmatmul.f32.gmra.mxu0 %v3612
        %v3614 = vpop.f32.mrf.mxu0
        %v3615 = vadd.f32 %v3586, %v3614
        %v3616 = vand.u32 %v3403, 4294901760
        %3617 = vmatmul.f32.gmra.mxu0 %v3616
        %v3618 = vpop.f32.mrf.mxu0
        %v3619 = vadd.f32 %v3590, %v3618
        %3620 = vdwg.mxu0
        %v3621 = vadd.f32 %v3393, %v3615
        %v3622 = vadd.f32 %v3394, %v3619
        %v3623 = vld [vmem:[%s10 + $0x60] sm:$0xff]
        %v3624 = vld [vmem:[%s10 + $0x68] sm:$0xff]
        %v3625 = vld [vmem:[%s10 + $0x70] sm:$0xff]
        %v3626 = vld [vmem:[%s10 + $0x78] sm:$0xff]
        %v3628 = vsel %vm2102, %v2929, 0
        %v3631 = vsel %vm2102, %v2933, 0
        %3633 = vmatpush.msra.mxu0 0.0
        %3634 = vmatpush.msra.mxu0 0.0
        %3635 = vmatpush.msra.mxu0 0.0
        %3636 = vmatpush.msra.mxu0 0.0
        %3637 = vmatpush.msra.mxu0 0.0
        %3638 = vmatpush.msra.mxu0 0.0
        %3639 = vmatpush.msra.mxu0 0.0
        %3640 = vmatpush.msra.mxu0 0.0
        %3641 = vmatpush.msra.mxu0 0.0
        %3642 = vmatpush.msra.mxu0 0.0
        %3643 = vmatpush.msra.mxu0 0.0
        %3644 = vmatpush.msra.mxu0 0.0
        %v3645 = vand.u32 %v3626, 4294901760
        %3646 = vmatpush.msra.mxu0 %v3645
        %v3647 = vand.u32 %v3625, 4294901760
        %3648 = vmatpush.msra.mxu0 %v3647
        %v3649 = vand.u32 %v3624, 4294901760
        %3650 = vmatpush.msra.mxu0 %v3649
        %v3651 = vand.u32 %v3623, 4294901760
        %3652 = vmatpush.msra.mxu0 %v3651
        %v3653 = vand.u32 %v3628, 4294901760
        %v3654 = vsub.f32 %v3628, %v3653
        %v3655 = vand.u32 %v3654, 4294901760
        %v3656 = vsub.f32 %v3654, %v3655
        %v3657 = vand.u32 %v3656, 4294901760
        %3658 = vmatmul.f32.gmra.mxu0 %v3657
        %v3659 = vpop.f32.mrf.mxu0
        %v3660 = vadd.f32 0.0, %v3659
        %v3661 = vand.u32 %v3631, 4294901760
        %v3662 = vsub.f32 %v3631, %v3661
        %v3663 = vand.u32 %v3662, 4294901760
        %v3664 = vsub.f32 %v3662, %v3663
        %v3665 = vand.u32 %v3664, 4294901760
        %3666 = vmatmul.f32.gmra.mxu0 %v3665
        %v3667 = vpop.f32.mrf.mxu0
        %v3668 = vadd.f32 0.0, %v3667
        %3669 = vdwg.mxu0
        %3670 = vmatpush.msra.mxu0 0.0
        %3671 = vmatpush.msra.mxu0 0.0
        %3672 = vmatpush.msra.mxu0 0.0
        %3673 = vmatpush.msra.mxu0 0.0
        %3674 = vmatpush.msra.mxu0 0.0
        %3675 = vmatpush.msra.mxu0 0.0
        %3676 = vmatpush.msra.mxu0 0.0
        %3677 = vmatpush.msra.mxu0 0.0
        %3678 = vmatpush.msra.mxu0 0.0
        %3679 = vmatpush.msra.mxu0 0.0
        %3680 = vmatpush.msra.mxu0 0.0
        %3681 = vmatpush.msra.mxu0 0.0
        %v3682 = vand.u32 %v3626, 4294901760
        %v3683 = vsub.f32 %v3626, %v3682
        %v3684 = vand.u32 %v3683, 4294901760
        %v3685 = vsub.f32 %v3683, %v3684
        %v3686 = vand.u32 %v3685, 4294901760
        %3687 = vmatpush.msra.mxu0 %v3686
        %v3688 = vand.u32 %v3625, 4294901760
        %v3689 = vsub.f32 %v3625, %v3688
        %v3690 = vand.u32 %v3689, 4294901760
        %v3691 = vsub.f32 %v3689, %v3690
        %v3692 = vand.u32 %v3691, 4294901760
        %3693 = vmatpush.msra.mxu0 %v3692
        %v3694 = vand.u32 %v3624, 4294901760
        %v3695 = vsub.f32 %v3624, %v3694
        %v3696 = vand.u32 %v3695, 4294901760
        %v3697 = vsub.f32 %v3695, %v3696
        %v3698 = vand.u32 %v3697, 4294901760
        %3699 = vmatpush.msra.mxu0 %v3698
        %v3700 = vand.u32 %v3623, 4294901760
        %v3701 = vsub.f32 %v3623, %v3700
        %v3702 = vand.u32 %v3701, 4294901760
        %v3703 = vsub.f32 %v3701, %v3702
        %v3704 = vand.u32 %v3703, 4294901760
        %3705 = vmatpush.msra.mxu0 %v3704
        %v3706 = vand.u32 %v3628, 4294901760
        %3707 = vmatmul.f32.gmra.mxu0 %v3706
        %v3708 = vpop.f32.mrf.mxu0
        %v3709 = vadd.f32 %v3660, %v3708
        %v3710 = vand.u32 %v3631, 4294901760
        %3711 = vmatmul.f32.gmra.mxu0 %v3710
        %v3712 = vpop.f32.mrf.mxu0
        %v3713 = vadd.f32 %v3668, %v3712
        %3714 = vdwg.mxu0
        %3715 = vmatpush.msra.mxu0 0.0
        %3716 = vmatpush.msra.mxu0 0.0
        %3717 = vmatpush.msra.mxu0 0.0
        %3718 = vmatpush.msra.mxu0 0.0
        %3719 = vmatpush.msra.mxu0 0.0
        %3720 = vmatpush.msra.mxu0 0.0
        %3721 = vmatpush.msra.mxu0 0.0
        %3722 = vmatpush.msra.mxu0 0.0
        %3723 = vmatpush.msra.mxu0 0.0
        %3724 = vmatpush.msra.mxu0 0.0
        %3725 = vmatpush.msra.mxu0 0.0
        %3726 = vmatpush.msra.mxu0 0.0
        %v3727 = vand.u32 %v3626, 4294901760
        %v3728 = vsub.f32 %v3626, %v3727
        %3729 = vmatpush.msra.mxu0 %v3728
        %v3730 = vand.u32 %v3625, 4294901760
        %v3731 = vsub.f32 %v3625, %v3730
        %3732 = vmatpush.msra.mxu0 %v3731
        %v3733 = vand.u32 %v3624, 4294901760
        %v3734 = vsub.f32 %v3624, %v3733
        %3735 = vmatpush.msra.mxu0 %v3734
        %v3736 = vand.u32 %v3623, 4294901760
        %v3737 = vsub.f32 %v3623, %v3736
        %3738 = vmatpush.msra.mxu0 %v3737
        %v3739 = vand.u32 %v3628, 4294901760
        %v3740 = vsub.f32 %v3628, %v3739
        %3741 = vmatmul.f32.gmra.mxu0 %v3740
        %v3742 = vpop.f32.mrf.mxu0
        %v3743 = vadd.f32 %v3709, %v3742
        %v3744 = vand.u32 %v3631, 4294901760
        %v3745 = vsub.f32 %v3631, %v3744
        %3746 = vmatmul.f32.gmra.mxu0 %v3745
        %v3747 = vpop.f32.mrf.mxu0
        %v3748 = vadd.f32 %v3713, %v3747
        %3749 = vdwg.mxu0
        %3750 = vmatpush.msra.mxu0 0.0
        %3751 = vmatpush.msra.mxu0 0.0
        %3752 = vmatpush.msra.mxu0 0.0
        %3753 = vmatpush.msra.mxu0 0.0
        %3754 = vmatpush.msra.mxu0 0.0
        %3755 = vmatpush.msra.mxu0 0.0
        %3756 = vmatpush.msra.mxu0 0.0
        %3757 = vmatpush.msra.mxu0 0.0
        %3758 = vmatpush.msra.mxu0 0.0
        %3759 = vmatpush.msra.mxu0 0.0
        %3760 = vmatpush.msra.mxu0 0.0
        %3761 = vmatpush.msra.mxu0 0.0
        %v3762 = vand.u32 %v3626, 4294901760
        %3763 = vmatpush.msra.mxu0 %v3762
        %v3764 = vand.u32 %v3625, 4294901760
        %3765 = vmatpush.msra.mxu0 %v3764
        %v3766 = vand.u32 %v3624, 4294901760
        %3767 = vmatpush.msra.mxu0 %v3766
        %v3768 = vand.u32 %v3623, 4294901760
        %3769 = vmatpush.msra.mxu0 %v3768
        %v3770 = vand.u32 %v3628, 4294901760
        %v3771 = vsub.f32 %v3628, %v3770
        %v3772 = vand.u32 %v3771, 4294901760
        %3773 = vmatmul.f32.gmra.mxu0 %v3772
        %v3774 = vpop.f32.mrf.mxu0
        %v3775 = vadd.f32 %v3743, %v3774
        %v3776 = vand.u32 %v3631, 4294901760
        %v3777 = vsub.f32 %v3631, %v3776
        %v3778 = vand.u32 %v3777, 4294901760
        %3779 = vmatmul.f32.gmra.mxu0 %v3778
        %v3780 = vpop.f32.mrf.mxu0
        %v3781 = vadd.f32 %v3748, %v3780
        %3782 = vdwg.mxu0
        %3783 = vmatpush.msra.mxu0 0.0
        %3784 = vmatpush.msra.mxu0 0.0
        %3785 = vmatpush.msra.mxu0 0.0
        %3786 = vmatpush.msra.mxu0 0.0
        %3787 = vmatpush.msra.mxu0 0.0
        %3788 = vmatpush.msra.mxu0 0.0
        %3789 = vmatpush.msra.mxu0 0.0
        %3790 = vmatpush.msra.mxu0 0.0
        %3791 = vmatpush.msra.mxu0 0.0
        %3792 = vmatpush.msra.mxu0 0.0
        %3793 = vmatpush.msra.mxu0 0.0
        %3794 = vmatpush.msra.mxu0 0.0
        %v3795 = vand.u32 %v3626, 4294901760
        %v3796 = vsub.f32 %v3626, %v3795
        %v3797 = vand.u32 %v3796, 4294901760
        %3798 = vmatpush.msra.mxu0 %v3797
        %v3799 = vand.u32 %v3625, 4294901760
        %v3800 = vsub.f32 %v3625, %v3799
        %v3801 = vand.u32 %v3800, 4294901760
        %3802 = vmatpush.msra.mxu0 %v3801
        %v3803 = vand.u32 %v3624, 4294901760
        %v3804 = vsub.f32 %v3624, %v3803
        %v3805 = vand.u32 %v3804, 4294901760
        %3806 = vmatpush.msra.mxu0 %v3805
        %v3807 = vand.u32 %v3623, 4294901760
        %v3808 = vsub.f32 %v3623, %v3807
        %v3809 = vand.u32 %v3808, 4294901760
        %3810 = vmatpush.msra.mxu0 %v3809
        %v3811 = vand.u32 %v3628, 4294901760
        %3812 = vmatmul.f32.gmra.mxu0 %v3811
        %v3813 = vpop.f32.mrf.mxu0
        %v3814 = vadd.f32 %v3775, %v3813
        %v3815 = vand.u32 %v3631, 4294901760
        %3816 = vmatmul.f32.gmra.mxu0 %v3815
        %v3817 = vpop.f32.mrf.mxu0
        %v3818 = vadd.f32 %v3781, %v3817
        %3819 = vdwg.mxu0
        %3820 = vmatpush.msra.mxu0 0.0
        %3821 = vmatpush.msra.mxu0 0.0
        %3822 = vmatpush.msra.mxu0 0.0
        %3823 = vmatpush.msra.mxu0 0.0
        %3824 = vmatpush.msra.mxu0 0.0
        %3825 = vmatpush.msra.mxu0 0.0
        %3826 = vmatpush.msra.mxu0 0.0
        %3827 = vmatpush.msra.mxu0 0.0
        %3828 = vmatpush.msra.mxu0 0.0
        %3829 = vmatpush.msra.mxu0 0.0
        %3830 = vmatpush.msra.mxu0 0.0
        %3831 = vmatpush.msra.mxu0 0.0
        %v3832 = vand.u32 %v3626, 4294901760
        %3833 = vmatpush.msra.mxu0 %v3832
        %v3834 = vand.u32 %v3625, 4294901760
        %3835 = vmatpush.msra.mxu0 %v3834
        %v3836 = vand.u32 %v3624, 4294901760
        %3837 = vmatpush.msra.mxu0 %v3836
        %v3838 = vand.u32 %v3623, 4294901760
        %3839 = vmatpush.msra.mxu0 %v3838
        %v3840 = vand.u32 %v3628, 4294901760
        %3841 = vmatmul.f32.gmra.mxu0 %v3840
        %v3842 = vpop.f32.mrf.mxu0
        %v3843 = vadd.f32 %v3814, %v3842
        %v3844 = vand.u32 %v3631, 4294901760
        %3845 = vmatmul.f32.gmra.mxu0 %v3844
        %v3846 = vpop.f32.mrf.mxu0
        %v3847 = vadd.f32 %v3818, %v3846
        %3848 = vdwg.mxu0
        %v3849 = vadd.f32 %v3621, %v3843
        %v3850 = vadd.f32 %v3622, %v3847
        %v3851 = vld [vmem:[%s12] sm:$0xff]
        %v3852 = vld [vmem:[%s12 + $0x8] sm:$0xff]
        %v3853 = vld [vmem:[%s12 + $0x10] sm:$0xff]
        %v3854 = vld [vmem:[%s12 + $0x18] sm:$0xff]
        %v3855 = vld [vmem:[%s13] sm:$0x1]
        %v3857 = vperm.slane %v3855, 0
        %v3860 = vsel %vm2102, %v3849, 0
        %v3863 = vsel %vm2102, %v3850, 0
        %3865 = vmatpush.msra.mxu0 0.0
        %3866 = vmatpush.msra.mxu0 0.0
        %3867 = vmatpush.msra.mxu0 0.0
        %3868 = vmatpush.msra.mxu0 0.0
        %3869 = vmatpush.msra.mxu0 0.0
        %3870 = vmatpush.msra.mxu0 0.0
        %3871 = vmatpush.msra.mxu0 0.0
        %3872 = vmatpush.msra.mxu0 0.0
        %3873 = vmatpush.msra.mxu0 0.0
        %3874 = vmatpush.msra.mxu0 0.0
        %3875 = vmatpush.msra.mxu0 0.0
        %3876 = vmatpush.msra.mxu0 0.0
        %v3877 = vand.u32 %v3854, 4294901760
        %3878 = vmatpush.msra.mxu0 %v3877
        %v3879 = vand.u32 %v3853, 4294901760
        %3880 = vmatpush.msra.mxu0 %v3879
        %v3881 = vand.u32 %v3852, 4294901760
        %3882 = vmatpush.msra.mxu0 %v3881
        %v3883 = vand.u32 %v3851, 4294901760
        %3884 = vmatpush.msra.mxu0 %v3883
        %v3885 = vand.u32 %v3860, 4294901760
        %v3886 = vsub.f32 %v3860, %v3885
        %v3887 = vand.u32 %v3886, 4294901760
        %v3888 = vsub.f32 %v3886, %v3887
        %v3889 = vand.u32 %v3888, 4294901760
        %3890 = vmatmul.f32.gmra.mxu0 %v3889
        %v3891 = vpop.f32.mrf.mxu0
        %v3892 = vadd.f32 %v3857, %v3891
        %v3893 = vand.u32 %v3863, 4294901760
        %v3894 = vsub.f32 %v3863, %v3893
        %v3895 = vand.u32 %v3894, 4294901760
        %v3896 = vsub.f32 %v3894, %v3895
        %v3897 = vand.u32 %v3896, 4294901760
        %3898 = vmatmul.f32.gmra.mxu0 %v3897
        %v3899 = vpop.f32.mrf.mxu0
        %v3900 = vadd.f32 %v3857, %v3899
        %3901 = vdwg.mxu0
        %3902 = vmatpush.msra.mxu0 0.0
        %3903 = vmatpush.msra.mxu0 0.0
        %3904 = vmatpush.msra.mxu0 0.0
        %3905 = vmatpush.msra.mxu0 0.0
        %3906 = vmatpush.msra.mxu0 0.0
        %3907 = vmatpush.msra.mxu0 0.0
        %3908 = vmatpush.msra.mxu0 0.0
        %3909 = vmatpush.msra.mxu0 0.0
        %3910 = vmatpush.msra.mxu0 0.0
        %3911 = vmatpush.msra.mxu0 0.0
        %3912 = vmatpush.msra.mxu0 0.0
        %3913 = vmatpush.msra.mxu0 0.0
        %v3914 = vand.u32 %v3854, 4294901760
        %v3915 = vsub.f32 %v3854, %v3914
        %v3916 = vand.u32 %v3915, 4294901760
        %v3917 = vsub.f32 %v3915, %v3916
        %v3918 = vand.u32 %v3917, 4294901760
        %3919 = vmatpush.msra.mxu0 %v3918
        %v3920 = vand.u32 %v3853, 4294901760
        %v3921 = vsub.f32 %v3853, %v3920
        %v3922 = vand.u32 %v3921, 4294901760
        %v3923 = vsub.f32 %v3921, %v3922
        %v3924 = vand.u32 %v3923, 4294901760
        %3925 = vmatpush.msra.mxu0 %v3924
        %v3926 = vand.u32 %v3852, 4294901760
        %v3927 = vsub.f32 %v3852, %v3926
        %v3928 = vand.u32 %v3927, 4294901760
        %v3929 = vsub.f32 %v3927, %v3928
        %v3930 = vand.u32 %v3929, 4294901760
        %3931 = vmatpush.msra.mxu0 %v3930
        %v3932 = vand.u32 %v3851, 4294901760
        %v3933 = vsub.f32 %v3851, %v3932
        %v3934 = vand.u32 %v3933, 4294901760
        %v3935 = vsub.f32 %v3933, %v3934
        %v3936 = vand.u32 %v3935, 4294901760
        %3937 = vmatpush.msra.mxu0 %v3936
        %v3938 = vand.u32 %v3860, 4294901760
        %3939 = vmatmul.f32.gmra.mxu0 %v3938
        %v3940 = vpop.f32.mrf.mxu0
        %v3941 = vadd.f32 %v3892, %v3940
        %v3942 = vand.u32 %v3863, 4294901760
        %3943 = vmatmul.f32.gmra.mxu0 %v3942
        %v3944 = vpop.f32.mrf.mxu0
        %v3945 = vadd.f32 %v3900, %v3944
        %3946 = vdwg.mxu0
        %3947 = vmatpush.msra.mxu0 0.0
        %3948 = vmatpush.msra.mxu0 0.0
        %3949 = vmatpush.msra.mxu0 0.0
        %3950 = vmatpush.msra.mxu0 0.0
        %3951 = vmatpush.msra.mxu0 0.0
        %3952 = vmatpush.msra.mxu0 0.0
        %3953 = vmatpush.msra.mxu0 0.0
        %3954 = vmatpush.msra.mxu0 0.0
        %3955 = vmatpush.msra.mxu0 0.0
        %3956 = vmatpush.msra.mxu0 0.0
        %3957 = vmatpush.msra.mxu0 0.0
        %3958 = vmatpush.msra.mxu0 0.0
        %v3959 = vand.u32 %v3854, 4294901760
        %v3960 = vsub.f32 %v3854, %v3959
        %3961 = vmatpush.msra.mxu0 %v3960
        %v3962 = vand.u32 %v3853, 4294901760
        %v3963 = vsub.f32 %v3853, %v3962
        %3964 = vmatpush.msra.mxu0 %v3963
        %v3965 = vand.u32 %v3852, 4294901760
        %v3966 = vsub.f32 %v3852, %v3965
        %3967 = vmatpush.msra.mxu0 %v3966
        %v3968 = vand.u32 %v3851, 4294901760
        %v3969 = vsub.f32 %v3851, %v3968
        %3970 = vmatpush.msra.mxu0 %v3969
        %v3971 = vand.u32 %v3860, 4294901760
        %v3972 = vsub.f32 %v3860, %v3971
        %3973 = vmatmul.f32.gmra.mxu0 %v3972
        %v3974 = vpop.f32.mrf.mxu0
        %v3975 = vadd.f32 %v3941, %v3974
        %v3976 = vand.u32 %v3863, 4294901760
        %v3977 = vsub.f32 %v3863, %v3976
        %3978 = vmatmul.f32.gmra.mxu0 %v3977
        %v3979 = vpop.f32.mrf.mxu0
        %v3980 = vadd.f32 %v3945, %v3979
        %3981 = vdwg.mxu0
        %3982 = vmatpush.msra.mxu0 0.0
        %3983 = vmatpush.msra.mxu0 0.0
        %3984 = vmatpush.msra.mxu0 0.0
        %3985 = vmatpush.msra.mxu0 0.0
        %3986 = vmatpush.msra.mxu0 0.0
        %3987 = vmatpush.msra.mxu0 0.0
        %3988 = vmatpush.msra.mxu0 0.0
        %3989 = vmatpush.msra.mxu0 0.0
        %3990 = vmatpush.msra.mxu0 0.0
        %3991 = vmatpush.msra.mxu0 0.0
        %3992 = vmatpush.msra.mxu0 0.0
        %3993 = vmatpush.msra.mxu0 0.0
        %v3994 = vand.u32 %v3854, 4294901760
        %3995 = vmatpush.msra.mxu0 %v3994
        %v3996 = vand.u32 %v3853, 4294901760
        %3997 = vmatpush.msra.mxu0 %v3996
        %v3998 = vand.u32 %v3852, 4294901760
        %3999 = vmatpush.msra.mxu0 %v3998
        %v4000 = vand.u32 %v3851, 4294901760
        %4001 = vmatpush.msra.mxu0 %v4000
        %v4002 = vand.u32 %v3860, 4294901760
        %v4003 = vsub.f32 %v3860, %v4002
        %v4004 = vand.u32 %v4003, 4294901760
        %4005 = vmatmul.f32.gmra.mxu0 %v4004
        %v4006 = vpop.f32.mrf.mxu0
        %v4007 = vadd.f32 %v3975, %v4006
        %v4008 = vand.u32 %v3863, 4294901760
        %v4009 = vsub.f32 %v3863, %v4008
        %v4010 = vand.u32 %v4009, 4294901760
        %4011 = vmatmul.f32.gmra.mxu0 %v4010
        %v4012 = vpop.f32.mrf.mxu0
        %v4013 = vadd.f32 %v3980, %v4012
        %4014 = vdwg.mxu0
        %4015 = vmatpush.msra.mxu0 0.0
        %4016 = vmatpush.msra.mxu0 0.0
        %4017 = vmatpush.msra.mxu0 0.0
        %4018 = vmatpush.msra.mxu0 0.0
        %4019 = vmatpush.msra.mxu0 0.0
        %4020 = vmatpush.msra.mxu0 0.0
        %4021 = vmatpush.msra.mxu0 0.0
        %4022 = vmatpush.msra.mxu0 0.0
        %4023 = vmatpush.msra.mxu0 0.0
        %4024 = vmatpush.msra.mxu0 0.0
        %4025 = vmatpush.msra.mxu0 0.0
        %4026 = vmatpush.msra.mxu0 0.0
        %v4027 = vand.u32 %v3854, 4294901760
        %v4028 = vsub.f32 %v3854, %v4027
        %v4029 = vand.u32 %v4028, 4294901760
        %4030 = vmatpush.msra.mxu0 %v4029
        %v4031 = vand.u32 %v3853, 4294901760
        %v4032 = vsub.f32 %v3853, %v4031
        %v4033 = vand.u32 %v4032, 4294901760
        %4034 = vmatpush.msra.mxu0 %v4033
        %v4035 = vand.u32 %v3852, 4294901760
        %v4036 = vsub.f32 %v3852, %v4035
        %v4037 = vand.u32 %v4036, 4294901760
        %4038 = vmatpush.msra.mxu0 %v4037
        %v4039 = vand.u32 %v3851, 4294901760
        %v4040 = vsub.f32 %v3851, %v4039
        %v4041 = vand.u32 %v4040, 4294901760
        %4042 = vmatpush.msra.mxu0 %v4041
        %v4043 = vand.u32 %v3860, 4294901760
        %4044 = vmatmul.f32.gmra.mxu0 %v4043
        %v4045 = vpop.f32.mrf.mxu0
        %v4046 = vadd.f32 %v4007, %v4045
        %v4047 = vand.u32 %v3863, 4294901760
        %4048 = vmatmul.f32.gmra.mxu0 %v4047
        %v4049 = vpop.f32.mrf.mxu0
        %v4050 = vadd.f32 %v4013, %v4049
        %4051 = vdwg.mxu0
        %4052 = vmatpush.msra.mxu0 0.0
        %4053 = vmatpush.msra.mxu0 0.0
        %4054 = vmatpush.msra.mxu0 0.0
        %4055 = vmatpush.msra.mxu0 0.0
        %4056 = vmatpush.msra.mxu0 0.0
        %4057 = vmatpush.msra.mxu0 0.0
        %4058 = vmatpush.msra.mxu0 0.0
        %4059 = vmatpush.msra.mxu0 0.0
        %4060 = vmatpush.msra.mxu0 0.0
        %4061 = vmatpush.msra.mxu0 0.0
        %4062 = vmatpush.msra.mxu0 0.0
        %4063 = vmatpush.msra.mxu0 0.0
        %v4064 = vand.u32 %v3854, 4294901760
        %4065 = vmatpush.msra.mxu0 %v4064
        %v4066 = vand.u32 %v3853, 4294901760
        %4067 = vmatpush.msra.mxu0 %v4066
        %v4068 = vand.u32 %v3852, 4294901760
        %4069 = vmatpush.msra.mxu0 %v4068
        %v4070 = vand.u32 %v3851, 4294901760
        %4071 = vmatpush.msra.mxu0 %v4070
        %v4072 = vand.u32 %v3860, 4294901760
        %4073 = vmatmul.f32.gmra.mxu0 %v4072
        %v4074 = vpop.f32.mrf.mxu0
        %v4075 = vadd.f32 %v4046, %v4074
        %v4076 = vand.u32 %v3863, 4294901760
        %4077 = vmatmul.f32.gmra.mxu0 %v4076
        %v4078 = vpop.f32.mrf.mxu0
        %v4079 = vadd.f32 %v4050, %v4078
        %4080 = vdwg.mxu0
        %v4081 = vadd.f32 %v4075, %v2553
        %v4082 = vadd.f32 %v4079, %v2557
        %v4083 = vmax.f32 %v4081, 0.0
        %v4084 = vmax.f32 %v4082, 0.0
        %4085 = vmatpush.msra.mxu0 0.0
        %4086 = vmatpush.msra.mxu0 0.0
        %4087 = vmatpush.msra.mxu0 0.0
        %4088 = vmatpush.msra.mxu0 0.0
        %4089 = vmatpush.msra.mxu0 0.0
        %4090 = vmatpush.msra.mxu0 0.0
        %4091 = vmatpush.msra.mxu0 0.0
        %4092 = vmatpush.msra.mxu0 0.0
        %4093 = vmatpush.msra.mxu0 0.0
        %4094 = vmatpush.msra.mxu0 0.0
        %4095 = vmatpush.msra.mxu0 0.0
        %4096 = vmatpush.msra.mxu0 0.0
        %4097 = vmatpush.msra.mxu0 0.0
        %4098 = vmatpush.msra.mxu0 0.0
        %v4099 = vand.u32 %v4084, 4294901760
        %4100 = vmatpush.msra.mxu0 %v4099
        %v4101 = vand.u32 %v4083, 4294901760
        %4102 = vmatpush.msra.mxu0 %v4101
        %v4103 = vand.u32 %v950, 4294901760
        %v4104 = vsub.f32 %v950, %v4103
        %v4105 = vand.u32 %v4104, 4294901760
        %v4106 = vsub.f32 %v4104, %v4105
        %v4107 = vand.u32 %v4106, 4294901760
        %4108 = vmatmul.f32.gmra.mxu0 %v4107
        %v4109 = vpop.f32.mrf.mxu0
        %v4110 = vadd.f32 0.0, %v4109
        %v4111 = vand.u32 %v950, 4294901760
        %v4112 = vsub.f32 %v950, %v4111
        %v4113 = vand.u32 %v4112, 4294901760
        %v4114 = vsub.f32 %v4112, %v4113
        %v4115 = vand.u32 %v4114, 4294901760
        %4116 = vmatmul.f32.gmra.mxu0 %v4115
        %v4117 = vpop.f32.mrf.mxu0
        %v4118 = vadd.f32 0.0, %v4117
        %v4119 = vand.u32 %v953, 4294901760
        %v4120 = vsub.f32 %v953, %v4119
        %v4121 = vand.u32 %v4120, 4294901760
        %v4122 = vsub.f32 %v4120, %v4121
        %v4123 = vand.u32 %v4122, 4294901760
        %4124 = vmatmul.f32.gmra.mxu0 %v4123
        %v4125 = vpop.f32.mrf.mxu0
        %v4126 = vadd.f32 0.0, %v4125
        %v4127 = vand.u32 %v956, 4294901760
        %v4128 = vsub.f32 %v956, %v4127
        %v4129 = vand.u32 %v4128, 4294901760
        %v4130 = vsub.f32 %v4128, %v4129
        %v4131 = vand.u32 %v4130, 4294901760
        %4132 = vmatmul.f32.gmra.mxu0 %v4131
        %v4133 = vpop.f32.mrf.mxu0
        %v4134 = vadd.f32 0.0, %v4133
        %v4135 = vand.u32 %v959, 4294901760
        %v4136 = vsub.f32 %v959, %v4135
        %v4137 = vand.u32 %v4136, 4294901760
        %v4138 = vsub.f32 %v4136, %v4137
        %v4139 = vand.u32 %v4138, 4294901760
        %4140 = vmatmul.f32.gmra.mxu0 %v4139
        %v4141 = vpop.f32.mrf.mxu0
        %v4142 = vadd.f32 0.0, %v4141
        %v4143 = vand.u32 %v962, 4294901760
        %v4144 = vsub.f32 %v962, %v4143
        %v4145 = vand.u32 %v4144, 4294901760
        %v4146 = vsub.f32 %v4144, %v4145
        %v4147 = vand.u32 %v4146, 4294901760
        %4148 = vmatmul.f32.gmra.mxu0 %v4147
        %v4149 = vpop.f32.mrf.mxu0
        %v4150 = vadd.f32 0.0, %v4149
        %v4151 = vand.u32 %v965, 4294901760
        %v4152 = vsub.f32 %v965, %v4151
        %v4153 = vand.u32 %v4152, 4294901760
        %v4154 = vsub.f32 %v4152, %v4153
        %v4155 = vand.u32 %v4154, 4294901760
        %4156 = vmatmul.f32.gmra.mxu0 %v4155
        %v4157 = vpop.f32.mrf.mxu0
        %v4158 = vadd.f32 0.0, %v4157
        %v4159 = vand.u32 %v968, 4294901760
        %v4160 = vsub.f32 %v968, %v4159
        %v4161 = vand.u32 %v4160, 4294901760
        %v4162 = vsub.f32 %v4160, %v4161
        %v4163 = vand.u32 %v4162, 4294901760
        %4164 = vmatmul.f32.gmra.mxu0 %v4163
        %v4165 = vpop.f32.mrf.mxu0
        %v4166 = vadd.f32 0.0, %v4165
        %4167 = vdwg.mxu0
        %4168 = vmatpush.msra.mxu0 0.0
        %4169 = vmatpush.msra.mxu0 0.0
        %4170 = vmatpush.msra.mxu0 0.0
        %4171 = vmatpush.msra.mxu0 0.0
        %4172 = vmatpush.msra.mxu0 0.0
        %4173 = vmatpush.msra.mxu0 0.0
        %4174 = vmatpush.msra.mxu0 0.0
        %4175 = vmatpush.msra.mxu0 0.0
        %4176 = vmatpush.msra.mxu0 0.0
        %4177 = vmatpush.msra.mxu0 0.0
        %4178 = vmatpush.msra.mxu0 0.0
        %4179 = vmatpush.msra.mxu0 0.0
        %4180 = vmatpush.msra.mxu0 0.0
        %4181 = vmatpush.msra.mxu0 0.0
        %v4182 = vand.u32 %v4084, 4294901760
        %v4183 = vsub.f32 %v4084, %v4182
        %v4184 = vand.u32 %v4183, 4294901760
        %v4185 = vsub.f32 %v4183, %v4184
        %v4186 = vand.u32 %v4185, 4294901760
        %4187 = vmatpush.msra.mxu0 %v4186
        %v4188 = vand.u32 %v4083, 4294901760
        %v4189 = vsub.f32 %v4083, %v4188
        %v4190 = vand.u32 %v4189, 4294901760
        %v4191 = vsub.f32 %v4189, %v4190
        %v4192 = vand.u32 %v4191, 4294901760
        %4193 = vmatpush.msra.mxu0 %v4192
        %v4194 = vand.u32 %v950, 4294901760
        %4195 = vmatmul.f32.gmra.mxu0 %v4194
        %v4196 = vpop.f32.mrf.mxu0
        %v4197 = vadd.f32 %v4110, %v4196
        %v4198 = vand.u32 %v950, 4294901760
        %4199 = vmatmul.f32.gmra.mxu0 %v4198
        %v4200 = vpop.f32.mrf.mxu0
        %v4201 = vadd.f32 %v4118, %v4200
        %v4202 = vand.u32 %v953, 4294901760
        %4203 = vmatmul.f32.gmra.mxu0 %v4202
        %v4204 = vpop.f32.mrf.mxu0
        %v4205 = vadd.f32 %v4126, %v4204
        %v4206 = vand.u32 %v956, 4294901760
        %4207 = vmatmul.f32.gmra.mxu0 %v4206
        %v4208 = vpop.f32.mrf.mxu0
        %v4209 = vadd.f32 %v4134, %v4208
        %v4210 = vand.u32 %v959, 4294901760
        %4211 = vmatmul.f32.gmra.mxu0 %v4210
        %v4212 = vpop.f32.mrf.mxu0
        %v4213 = vadd.f32 %v4142, %v4212
        %v4214 = vand.u32 %v962, 4294901760
        %4215 = vmatmul.f32.gmra.mxu0 %v4214
        %v4216 = vpop.f32.mrf.mxu0
        %v4217 = vadd.f32 %v4150, %v4216
        %v4218 = vand.u32 %v965, 4294901760
        %4219 = vmatmul.f32.gmra.mxu0 %v4218
        %v4220 = vpop.f32.mrf.mxu0
        %v4221 = vadd.f32 %v4158, %v4220
        %v4222 = vand.u32 %v968, 4294901760
        %4223 = vmatmul.f32.gmra.mxu0 %v4222
        %v4224 = vpop.f32.mrf.mxu0
        %v4225 = vadd.f32 %v4166, %v4224
        %4226 = vdwg.mxu0
        %4227 = vmatpush.msra.mxu0 0.0
        %4228 = vmatpush.msra.mxu0 0.0
        %4229 = vmatpush.msra.mxu0 0.0
        %4230 = vmatpush.msra.mxu0 0.0
        %4231 = vmatpush.msra.mxu0 0.0
        %4232 = vmatpush.msra.mxu0 0.0
        %4233 = vmatpush.msra.mxu0 0.0
        %4234 = vmatpush.msra.mxu0 0.0
        %4235 = vmatpush.msra.mxu0 0.0
        %4236 = vmatpush.msra.mxu0 0.0
        %4237 = vmatpush.msra.mxu0 0.0
        %4238 = vmatpush.msra.mxu0 0.0
        %4239 = vmatpush.msra.mxu0 0.0
        %4240 = vmatpush.msra.mxu0 0.0
        %v4241 = vand.u32 %v4084, 4294901760
        %v4242 = vsub.f32 %v4084, %v4241
        %4243 = vmatpush.msra.mxu0 %v4242
        %v4244 = vand.u32 %v4083, 4294901760
        %v4245 = vsub.f32 %v4083, %v4244
        %4246 = vmatpush.msra.mxu0 %v4245
        %v4247 = vand.u32 %v950, 4294901760
        %v4248 = vsub.f32 %v950, %v4247
        %4249 = vmatmul.f32.gmra.mxu0 %v4248
        %v4250 = vpop.f32.mrf.mxu0
        %v4251 = vadd.f32 %v4197, %v4250
        %v4252 = vand.u32 %v950, 4294901760
        %v4253 = vsub.f32 %v950, %v4252
        %4254 = vmatmul.f32.gmra.mxu0 %v4253
        %v4255 = vpop.f32.mrf.mxu0
        %v4256 = vadd.f32 %v4201, %v4255
        %v4257 = vand.u32 %v953, 4294901760
        %v4258 = vsub.f32 %v953, %v4257
        %4259 = vmatmul.f32.gmra.mxu0 %v4258
        %v4260 = vpop.f32.mrf.mxu0
        %v4261 = vadd.f32 %v4205, %v4260
        %v4262 = vand.u32 %v956, 4294901760
        %v4263 = vsub.f32 %v956, %v4262
        %4264 = vmatmul.f32.gmra.mxu0 %v4263
        %v4265 = vpop.f32.mrf.mxu0
        %v4266 = vadd.f32 %v4209, %v4265
        %v4267 = vand.u32 %v959, 4294901760
        %v4268 = vsub.f32 %v959, %v4267
        %4269 = vmatmul.f32.gmra.mxu0 %v4268
        %v4270 = vpop.f32.mrf.mxu0
        %v4271 = vadd.f32 %v4213, %v4270
        %v4272 = vand.u32 %v962, 4294901760
        %v4273 = vsub.f32 %v962, %v4272
        %4274 = vmatmul.f32.gmra.mxu0 %v4273
        %v4275 = vpop.f32.mrf.mxu0
        %v4276 = vadd.f32 %v4217, %v4275
        %v4277 = vand.u32 %v965, 4294901760
        %v4278 = vsub.f32 %v965, %v4277
        %4279 = vmatmul.f32.gmra.mxu0 %v4278
        %v4280 = vpop.f32.mrf.mxu0
        %v4281 = vadd.f32 %v4221, %v4280
        %v4282 = vand.u32 %v968, 4294901760
        %v4283 = vsub.f32 %v968, %v4282
        %4284 = vmatmul.f32.gmra.mxu0 %v4283
        %v4285 = vpop.f32.mrf.mxu0
        %v4286 = vadd.f32 %v4225, %v4285
        %4287 = vdwg.mxu0
        %4288 = vmatpush.msra.mxu0 0.0
        %4289 = vmatpush.msra.mxu0 0.0
        %4290 = vmatpush.msra.mxu0 0.0
        %4291 = vmatpush.msra.mxu0 0.0
        %4292 = vmatpush.msra.mxu0 0.0
        %4293 = vmatpush.msra.mxu0 0.0
        %4294 = vmatpush.msra.mxu0 0.0
        %4295 = vmatpush.msra.mxu0 0.0
        %4296 = vmatpush.msra.mxu0 0.0
        %4297 = vmatpush.msra.mxu0 0.0
        %4298 = vmatpush.msra.mxu0 0.0
        %4299 = vmatpush.msra.mxu0 0.0
        %4300 = vmatpush.msra.mxu0 0.0
        %4301 = vmatpush.msra.mxu0 0.0
        %v4302 = vand.u32 %v4084, 4294901760
        %4303 = vmatpush.msra.mxu0 %v4302
        %v4304 = vand.u32 %v4083, 4294901760
        %4305 = vmatpush.msra.mxu0 %v4304
        %v4306 = vand.u32 %v950, 4294901760
        %v4307 = vsub.f32 %v950, %v4306
        %v4308 = vand.u32 %v4307, 4294901760
        %4309 = vmatmul.f32.gmra.mxu0 %v4308
        %v4310 = vpop.f32.mrf.mxu0
        %v4311 = vadd.f32 %v4251, %v4310
        %v4312 = vand.u32 %v950, 4294901760
        %v4313 = vsub.f32 %v950, %v4312
        %v4314 = vand.u32 %v4313, 4294901760
        %4315 = vmatmul.f32.gmra.mxu0 %v4314
        %v4316 = vpop.f32.mrf.mxu0
        %v4317 = vadd.f32 %v4256, %v4316
        %v4318 = vand.u32 %v953, 4294901760
        %v4319 = vsub.f32 %v953, %v4318
        %v4320 = vand.u32 %v4319, 4294901760
        %4321 = vmatmul.f32.gmra.mxu0 %v4320
        %v4322 = vpop.f32.mrf.mxu0
        %v4323 = vadd.f32 %v4261, %v4322
        %v4324 = vand.u32 %v956, 4294901760
        %v4325 = vsub.f32 %v956, %v4324
        %v4326 = vand.u32 %v4325, 4294901760
        %4327 = vmatmul.f32.gmra.mxu0 %v4326
        %v4328 = vpop.f32.mrf.mxu0
        %v4329 = vadd.f32 %v4266, %v4328
        %v4330 = vand.u32 %v959, 4294901760
        %v4331 = vsub.f32 %v959, %v4330
        %v4332 = vand.u32 %v4331, 4294901760
        %4333 = vmatmul.f32.gmra.mxu0 %v4332
        %v4334 = vpop.f32.mrf.mxu0
        %v4335 = vadd.f32 %v4271, %v4334
        %v4336 = vand.u32 %v962, 4294901760
        %v4337 = vsub.f32 %v962, %v4336
        %v4338 = vand.u32 %v4337, 4294901760
        %4339 = vmatmul.f32.gmra.mxu0 %v4338
        %v4340 = vpop.f32.mrf.mxu0
        %v4341 = vadd.f32 %v4276, %v4340
        %v4342 = vand.u32 %v965, 4294901760
        %v4343 = vsub.f32 %v965, %v4342
        %v4344 = vand.u32 %v4343, 4294901760
        %4345 = vmatmul.f32.gmra.mxu0 %v4344
        %v4346 = vpop.f32.mrf.mxu0
        %v4347 = vadd.f32 %v4281, %v4346
        %v4348 = vand.u32 %v968, 4294901760
        %v4349 = vsub.f32 %v968, %v4348
        %v4350 = vand.u32 %v4349, 4294901760
        %4351 = vmatmul.f32.gmra.mxu0 %v4350
        %v4352 = vpop.f32.mrf.mxu0
        %v4353 = vadd.f32 %v4286, %v4352
        %4354 = vdwg.mxu0
        %4355 = vmatpush.msra.mxu0 0.0
        %4356 = vmatpush.msra.mxu0 0.0
        %4357 = vmatpush.msra.mxu0 0.0
        %4358 = vmatpush.msra.mxu0 0.0
        %4359 = vmatpush.msra.mxu0 0.0
        %4360 = vmatpush.msra.mxu0 0.0
        %4361 = vmatpush.msra.mxu0 0.0
        %4362 = vmatpush.msra.mxu0 0.0
        %4363 = vmatpush.msra.mxu0 0.0
        %4364 = vmatpush.msra.mxu0 0.0
        %4365 = vmatpush.msra.mxu0 0.0
        %4366 = vmatpush.msra.mxu0 0.0
        %4367 = vmatpush.msra.mxu0 0.0
        %4368 = vmatpush.msra.mxu0 0.0
        %v4369 = vand.u32 %v4084, 4294901760
        %v4370 = vsub.f32 %v4084, %v4369
        %v4371 = vand.u32 %v4370, 4294901760
        %4372 = vmatpush.msra.mxu0 %v4371
        %v4373 = vand.u32 %v4083, 4294901760
        %v4374 = vsub.f32 %v4083, %v4373
        %v4375 = vand.u32 %v4374, 4294901760
        %4376 = vmatpush.msra.mxu0 %v4375
        %v4377 = vand.u32 %v950, 4294901760
        %4378 = vmatmul.f32.gmra.mxu0 %v4377
        %v4379 = vpop.f32.mrf.mxu0
        %v4380 = vadd.f32 %v4311, %v4379
        %v4381 = vand.u32 %v950, 4294901760
        %4382 = vmatmul.f32.gmra.mxu0 %v4381
        %v4383 = vpop.f32.mrf.mxu0
        %v4384 = vadd.f32 %v4317, %v4383
        %v4385 = vand.u32 %v953, 4294901760
        %4386 = vmatmul.f32.gmra.mxu0 %v4385
        %v4387 = vpop.f32.mrf.mxu0
        %v4388 = vadd.f32 %v4323, %v4387
        %v4389 = vand.u32 %v956, 4294901760
        %4390 = vmatmul.f32.gmra.mxu0 %v4389
        %v4391 = vpop.f32.mrf.mxu0
        %v4392 = vadd.f32 %v4329, %v4391
        %v4393 = vand.u32 %v959, 4294901760
        %4394 = vmatmul.f32.gmra.mxu0 %v4393
        %v4395 = vpop.f32.mrf.mxu0
        %v4396 = vadd.f32 %v4335, %v4395
        %v4397 = vand.u32 %v962, 4294901760
        %4398 = vmatmul.f32.gmra.mxu0 %v4397
        %v4399 = vpop.f32.mrf.mxu0
        %v4400 = vadd.f32 %v4341, %v4399
        %v4401 = vand.u32 %v965, 4294901760
        %4402 = vmatmul.f32.gmra.mxu0 %v4401
        %v4403 = vpop.f32.mrf.mxu0
        %v4404 = vadd.f32 %v4347, %v4403
        %v4405 = vand.u32 %v968, 4294901760
        %4406 = vmatmul.f32.gmra.mxu0 %v4405
        %v4407 = vpop.f32.mrf.mxu0
        %v4408 = vadd.f32 %v4353, %v4407
        %4409 = vdwg.mxu0
        %4410 = vmatpush.msra.mxu0 0.0
        %4411 = vmatpush.msra.mxu0 0.0
        %4412 = vmatpush.msra.mxu0 0.0
        %4413 = vmatpush.msra.mxu0 0.0
        %4414 = vmatpush.msra.mxu0 0.0
        %4415 = vmatpush.msra.mxu0 0.0
        %4416 = vmatpush.msra.mxu0 0.0
        %4417 = vmatpush.msra.mxu0 0.0
        %4418 = vmatpush.msra.mxu0 0.0
        %4419 = vmatpush.msra.mxu0 0.0
        %4420 = vmatpush.msra.mxu0 0.0
        %4421 = vmatpush.msra.mxu0 0.0
        %4422 = vmatpush.msra.mxu0 0.0
        %4423 = vmatpush.msra.mxu0 0.0
        %v4424 = vand.u32 %v4084, 4294901760
        %4425 = vmatpush.msra.mxu0 %v4424
        %v4426 = vand.u32 %v4083, 4294901760
        %4427 = vmatpush.msra.mxu0 %v4426
        %v4428 = vand.u32 %v950, 4294901760
        %4429 = vmatmul.f32.gmra.mxu0 %v4428
        %v4430 = vpop.f32.mrf.mxu0
        %v4431 = vadd.f32 %v4380, %v4430
        %v4432 = vand.u32 %v950, 4294901760
        %4433 = vmatmul.f32.gmra.mxu0 %v4432
        %v4434 = vpop.f32.mrf.mxu0
        %v4435 = vadd.f32 %v4384, %v4434
        %v4436 = vand.u32 %v953, 4294901760
        %4437 = vmatmul.f32.gmra.mxu0 %v4436
        %v4438 = vpop.f32.mrf.mxu0
        %v4439 = vadd.f32 %v4388, %v4438
        %v4440 = vand.u32 %v956, 4294901760
        %4441 = vmatmul.f32.gmra.mxu0 %v4440
        %v4442 = vpop.f32.mrf.mxu0
        %v4443 = vadd.f32 %v4392, %v4442
        %v4444 = vand.u32 %v959, 4294901760
        %4445 = vmatmul.f32.gmra.mxu0 %v4444
        %v4446 = vpop.f32.mrf.mxu0
        %v4447 = vadd.f32 %v4396, %v4446
        %v4448 = vand.u32 %v962, 4294901760
        %4449 = vmatmul.f32.gmra.mxu0 %v4448
        %v4450 = vpop.f32.mrf.mxu0
        %v4451 = vadd.f32 %v4400, %v4450
        %v4452 = vand.u32 %v965, 4294901760
        %4453 = vmatmul.f32.gmra.mxu0 %v4452
        %v4454 = vpop.f32.mrf.mxu0
        %v4455 = vadd.f32 %v4404, %v4454
        %v4456 = vand.u32 %v968, 4294901760
        %4457 = vmatmul.f32.gmra.mxu0 %v4456
        %v4458 = vpop.f32.mrf.mxu0
        %v4459 = vadd.f32 %v4408, %v4458
        %4460 = vdwg.mxu0
        %v4461 = vld [vmem:[%s15] sm:$0x1]
        %v4462 = vld [vmem:[%s14] sm:$0xff]
        %v4463 = vld [vmem:[%s14 + $0x8] sm:$0xff]
        %v4464 = vld [vmem:[%s14 + $0x10] sm:$0xff]
        %v4465 = vld [vmem:[%s14 + $0x18] sm:$0xff]
        %v4467 = vsel %vm2102, %v4431, 0
        %v4470 = vsel %vm2102, %v4435, 0
        %4472 = vmatpush.msra.mxu0 0.0
        %4473 = vmatpush.msra.mxu0 0.0
        %4474 = vmatpush.msra.mxu0 0.0
        %4475 = vmatpush.msra.mxu0 0.0
        %4476 = vmatpush.msra.mxu0 0.0
        %4477 = vmatpush.msra.mxu0 0.0
        %4478 = vmatpush.msra.mxu0 0.0
        %4479 = vmatpush.msra.mxu0 0.0
        %4480 = vmatpush.msra.mxu0 0.0
        %4481 = vmatpush.msra.mxu0 0.0
        %4482 = vmatpush.msra.mxu0 0.0
        %4483 = vmatpush.msra.mxu0 0.0
        %v4484 = vand.u32 %v4465, 4294901760
        %4485 = vmatpush.msra.mxu0 %v4484
        %v4486 = vand.u32 %v4464, 4294901760
        %4487 = vmatpush.msra.mxu0 %v4486
        %v4488 = vand.u32 %v4463, 4294901760
        %4489 = vmatpush.msra.mxu0 %v4488
        %v4490 = vand.u32 %v4462, 4294901760
        %4491 = vmatpush.msra.mxu0 %v4490
        %v4492 = vand.u32 %v4467, 4294901760
        %v4493 = vsub.f32 %v4467, %v4492
        %v4494 = vand.u32 %v4493, 4294901760
        %v4495 = vsub.f32 %v4493, %v4494
        %v4496 = vand.u32 %v4495, 4294901760
        %4497 = vmatmul.f32.gmra.mxu0 %v4496
        %v4498 = vpop.f32.mrf.mxu0
        %v4499 = vadd.f32 0.0, %v4498
        %v4500 = vand.u32 %v4470, 4294901760
        %v4501 = vsub.f32 %v4470, %v4500
        %v4502 = vand.u32 %v4501, 4294901760
        %v4503 = vsub.f32 %v4501, %v4502
        %v4504 = vand.u32 %v4503, 4294901760
        %4505 = vmatmul.f32.gmra.mxu0 %v4504
        %v4506 = vpop.f32.mrf.mxu0
        %v4507 = vadd.f32 0.0, %v4506
        %4508 = vdwg.mxu0
        %4509 = vmatpush.msra.mxu0 0.0
        %4510 = vmatpush.msra.mxu0 0.0
        %4511 = vmatpush.msra.mxu0 0.0
        %4512 = vmatpush.msra.mxu0 0.0
        %4513 = vmatpush.msra.mxu0 0.0
        %4514 = vmatpush.msra.mxu0 0.0
        %4515 = vmatpush.msra.mxu0 0.0
        %4516 = vmatpush.msra.mxu0 0.0
        %4517 = vmatpush.msra.mxu0 0.0
        %4518 = vmatpush.msra.mxu0 0.0
        %4519 = vmatpush.msra.mxu0 0.0
        %4520 = vmatpush.msra.mxu0 0.0
        %v4521 = vand.u32 %v4465, 4294901760
        %v4522 = vsub.f32 %v4465, %v4521
        %v4523 = vand.u32 %v4522, 4294901760
        %v4524 = vsub.f32 %v4522, %v4523
        %v4525 = vand.u32 %v4524, 4294901760
        %4526 = vmatpush.msra.mxu0 %v4525
        %v4527 = vand.u32 %v4464, 4294901760
        %v4528 = vsub.f32 %v4464, %v4527
        %v4529 = vand.u32 %v4528, 4294901760
        %v4530 = vsub.f32 %v4528, %v4529
        %v4531 = vand.u32 %v4530, 4294901760
        %4532 = vmatpush.msra.mxu0 %v4531
        %v4533 = vand.u32 %v4463, 4294901760
        %v4534 = vsub.f32 %v4463, %v4533
        %v4535 = vand.u32 %v4534, 4294901760
        %v4536 = vsub.f32 %v4534, %v4535
        %v4537 = vand.u32 %v4536, 4294901760
        %4538 = vmatpush.msra.mxu0 %v4537
        %v4539 = vand.u32 %v4462, 4294901760
        %v4540 = vsub.f32 %v4462, %v4539
        %v4541 = vand.u32 %v4540, 4294901760
        %v4542 = vsub.f32 %v4540, %v4541
        %v4543 = vand.u32 %v4542, 4294901760
        %4544 = vmatpush.msra.mxu0 %v4543
        %v4545 = vand.u32 %v4467, 4294901760
        %4546 = vmatmul.f32.gmra.mxu0 %v4545
        %v4547 = vpop.f32.mrf.mxu0
        %v4548 = vadd.f32 %v4499, %v4547
        %v4549 = vand.u32 %v4470, 4294901760
        %4550 = vmatmul.f32.gmra.mxu0 %v4549
        %v4551 = vpop.f32.mrf.mxu0
        %v4552 = vadd.f32 %v4507, %v4551
        %4553 = vdwg.mxu0
        %4554 = vmatpush.msra.mxu0 0.0
        %4555 = vmatpush.msra.mxu0 0.0
        %4556 = vmatpush.msra.mxu0 0.0
        %4557 = vmatpush.msra.mxu0 0.0
        %4558 = vmatpush.msra.mxu0 0.0
        %4559 = vmatpush.msra.mxu0 0.0
        %4560 = vmatpush.msra.mxu0 0.0
        %4561 = vmatpush.msra.mxu0 0.0
        %4562 = vmatpush.msra.mxu0 0.0
        %4563 = vmatpush.msra.mxu0 0.0
        %4564 = vmatpush.msra.mxu0 0.0
        %4565 = vmatpush.msra.mxu0 0.0
        %v4566 = vand.u32 %v4465, 4294901760
        %v4567 = vsub.f32 %v4465, %v4566
        %4568 = vmatpush.msra.mxu0 %v4567
        %v4569 = vand.u32 %v4464, 4294901760
        %v4570 = vsub.f32 %v4464, %v4569
        %4571 = vmatpush.msra.mxu0 %v4570
        %v4572 = vand.u32 %v4463, 4294901760
        %v4573 = vsub.f32 %v4463, %v4572
        %4574 = vmatpush.msra.mxu0 %v4573
        %v4575 = vand.u32 %v4462, 4294901760
        %v4576 = vsub.f32 %v4462, %v4575
        %4577 = vmatpush.msra.mxu0 %v4576
        %v4578 = vand.u32 %v4467, 4294901760
        %v4579 = vsub.f32 %v4467, %v4578
        %4580 = vmatmul.f32.gmra.mxu0 %v4579
        %v4581 = vpop.f32.mrf.mxu0
        %v4582 = vadd.f32 %v4548, %v4581
        %v4583 = vand.u32 %v4470, 4294901760
        %v4584 = vsub.f32 %v4470, %v4583
        %4585 = vmatmul.f32.gmra.mxu0 %v4584
        %v4586 = vpop.f32.mrf.mxu0
        %v4587 = vadd.f32 %v4552, %v4586
        %4588 = vdwg.mxu0
        %4589 = vmatpush.msra.mxu0 0.0
        %4590 = vmatpush.msra.mxu0 0.0
        %4591 = vmatpush.msra.mxu0 0.0
        %4592 = vmatpush.msra.mxu0 0.0
        %4593 = vmatpush.msra.mxu0 0.0
        %4594 = vmatpush.msra.mxu0 0.0
        %4595 = vmatpush.msra.mxu0 0.0
        %4596 = vmatpush.msra.mxu0 0.0
        %4597 = vmatpush.msra.mxu0 0.0
        %4598 = vmatpush.msra.mxu0 0.0
        %4599 = vmatpush.msra.mxu0 0.0
        %4600 = vmatpush.msra.mxu0 0.0
        %v4601 = vand.u32 %v4465, 4294901760
        %4602 = vmatpush.msra.mxu0 %v4601
        %v4603 = vand.u32 %v4464, 4294901760
        %4604 = vmatpush.msra.mxu0 %v4603
        %v4605 = vand.u32 %v4463, 4294901760
        %4606 = vmatpush.msra.mxu0 %v4605
        %v4607 = vand.u32 %v4462, 4294901760
        %4608 = vmatpush.msra.mxu0 %v4607
        %v4609 = vand.u32 %v4467, 4294901760
        %v4610 = vsub.f32 %v4467, %v4609
        %v4611 = vand.u32 %v4610, 4294901760
        %4612 = vmatmul.f32.gmra.mxu0 %v4611
        %v4613 = vpop.f32.mrf.mxu0
        %v4614 = vadd.f32 %v4582, %v4613
        %v4615 = vand.u32 %v4470, 4294901760
        %v4616 = vsub.f32 %v4470, %v4615
        %v4617 = vand.u32 %v4616, 4294901760
        %4618 = vmatmul.f32.gmra.mxu0 %v4617
        %v4619 = vpop.f32.mrf.mxu0
        %v4620 = vadd.f32 %v4587, %v4619
        %4621 = vdwg.mxu0
        %4622 = vmatpush.msra.mxu0 0.0
        %4623 = vmatpush.msra.mxu0 0.0
        %4624 = vmatpush.msra.mxu0 0.0
        %4625 = vmatpush.msra.mxu0 0.0
        %4626 = vmatpush.msra.mxu0 0.0
        %4627 = vmatpush.msra.mxu0 0.0
        %4628 = vmatpush.msra.mxu0 0.0
        %4629 = vmatpush.msra.mxu0 0.0
        %4630 = vmatpush.msra.mxu0 0.0
        %4631 = vmatpush.msra.mxu0 0.0
        %4632 = vmatpush.msra.mxu0 0.0
        %4633 = vmatpush.msra.mxu0 0.0
        %v4634 = vand.u32 %v4465, 4294901760
        %v4635 = vsub.f32 %v4465, %v4634
        %v4636 = vand.u32 %v4635, 4294901760
        %4637 = vmatpush.msra.mxu0 %v4636
        %v4638 = vand.u32 %v4464, 4294901760
        %v4639 = vsub.f32 %v4464, %v4638
        %v4640 = vand.u32 %v4639, 4294901760
        %4641 = vmatpush.msra.mxu0 %v4640
        %v4642 = vand.u32 %v4463, 4294901760
        %v4643 = vsub.f32 %v4463, %v4642
        %v4644 = vand.u32 %v4643, 4294901760
        %4645 = vmatpush.msra.mxu0 %v4644
        %v4646 = vand.u32 %v4462, 4294901760
        %v4647 = vsub.f32 %v4462, %v4646
        %v4648 = vand.u32 %v4647, 4294901760
        %4649 = vmatpush.msra.mxu0 %v4648
        %v4650 = vand.u32 %v4467, 4294901760
        %4651 = vmatmul.f32.gmra.mxu0 %v4650
        %v4652 = vpop.f32.mrf.mxu0
        %v4653 = vadd.f32 %v4614, %v4652
        %v4654 = vand.u32 %v4470, 4294901760
        %4655 = vmatmul.f32.gmra.mxu0 %v4654
        %v4656 = vpop.f32.mrf.mxu0
        %v4657 = vadd.f32 %v4620, %v4656
        %4658 = vdwg.mxu0
        %4659 = vmatpush.msra.mxu0 0.0
        %4660 = vmatpush.msra.mxu0 0.0
        %4661 = vmatpush.msra.mxu0 0.0
        %4662 = vmatpush.msra.mxu0 0.0
        %4663 = vmatpush.msra.mxu0 0.0
        %4664 = vmatpush.msra.mxu0 0.0
        %4665 = vmatpush.msra.mxu0 0.0
        %4666 = vmatpush.msra.mxu0 0.0
        %4667 = vmatpush.msra.mxu0 0.0
        %4668 = vmatpush.msra.mxu0 0.0
        %4669 = vmatpush.msra.mxu0 0.0
        %4670 = vmatpush.msra.mxu0 0.0
        %v4671 = vand.u32 %v4465, 4294901760
        %4672 = vmatpush.msra.mxu0 %v4671
        %v4673 = vand.u32 %v4464, 4294901760
        %4674 = vmatpush.msra.mxu0 %v4673
        %v4675 = vand.u32 %v4463, 4294901760
        %4676 = vmatpush.msra.mxu0 %v4675
        %v4677 = vand.u32 %v4462, 4294901760
        %4678 = vmatpush.msra.mxu0 %v4677
        %v4679 = vand.u32 %v4467, 4294901760
        %4680 = vmatmul.f32.gmra.mxu0 %v4679
        %v4681 = vpop.f32.mrf.mxu0
        %v4682 = vadd.f32 %v4653, %v4681
        %v4683 = vand.u32 %v4470, 4294901760
        %4684 = vmatmul.f32.gmra.mxu0 %v4683
        %v4685 = vpop.f32.mrf.mxu0
        %v4686 = vadd.f32 %v4657, %v4685
        %4687 = vdwg.mxu0
        %v4689 = vperm.slane %v4461, 0
        %v4691 = vadd.f32 %v4689, %v4682
        %v4692 = vadd.f32 %v4689, %v4686
        %v4693 = vld [vmem:[%s14 + $0x20] sm:$0xff]
        %v4694 = vld [vmem:[%s14 + $0x28] sm:$0xff]
        %v4695 = vld [vmem:[%s14 + $0x30] sm:$0xff]
        %v4696 = vld [vmem:[%s14 + $0x38] sm:$0xff]
        %v4698 = vsel %vm2102, %v4439, 0
        %v4701 = vsel %vm2102, %v4443, 0
        %4703 = vmatpush.msra.mxu0 0.0
        %4704 = vmatpush.msra.mxu0 0.0
        %4705 = vmatpush.msra.mxu0 0.0
        %4706 = vmatpush.msra.mxu0 0.0
        %4707 = vmatpush.msra.mxu0 0.0
        %4708 = vmatpush.msra.mxu0 0.0
        %4709 = vmatpush.msra.mxu0 0.0
        %4710 = vmatpush.msra.mxu0 0.0
        %4711 = vmatpush.msra.mxu0 0.0
        %4712 = vmatpush.msra.mxu0 0.0
        %4713 = vmatpush.msra.mxu0 0.0
        %4714 = vmatpush.msra.mxu0 0.0
        %v4715 = vand.u32 %v4696, 4294901760
        %4716 = vmatpush.msra.mxu0 %v4715
        %v4717 = vand.u32 %v4695, 4294901760
        %4718 = vmatpush.msra.mxu0 %v4717
        %v4719 = vand.u32 %v4694, 4294901760
        %4720 = vmatpush.msra.mxu0 %v4719
        %v4721 = vand.u32 %v4693, 4294901760
        %4722 = vmatpush.msra.mxu0 %v4721
        %v4723 = vand.u32 %v4698, 4294901760
        %v4724 = vsub.f32 %v4698, %v4723
        %v4725 = vand.u32 %v4724, 4294901760
        %v4726 = vsub.f32 %v4724, %v4725
        %v4727 = vand.u32 %v4726, 4294901760
        %4728 = vmatmul.f32.gmra.mxu0 %v4727
        %v4729 = vpop.f32.mrf.mxu0
        %v4730 = vadd.f32 0.0, %v4729
        %v4731 = vand.u32 %v4701, 4294901760
        %v4732 = vsub.f32 %v4701, %v4731
        %v4733 = vand.u32 %v4732, 4294901760
        %v4734 = vsub.f32 %v4732, %v4733
        %v4735 = vand.u32 %v4734, 4294901760
        %4736 = vmatmul.f32.gmra.mxu0 %v4735
        %v4737 = vpop.f32.mrf.mxu0
        %v4738 = vadd.f32 0.0, %v4737
        %4739 = vdwg.mxu0
        %4740 = vmatpush.msra.mxu0 0.0
        %4741 = vmatpush.msra.mxu0 0.0
        %4742 = vmatpush.msra.mxu0 0.0
        %4743 = vmatpush.msra.mxu0 0.0
        %4744 = vmatpush.msra.mxu0 0.0
        %4745 = vmatpush.msra.mxu0 0.0
        %4746 = vmatpush.msra.mxu0 0.0
        %4747 = vmatpush.msra.mxu0 0.0
        %4748 = vmatpush.msra.mxu0 0.0
        %4749 = vmatpush.msra.mxu0 0.0
        %4750 = vmatpush.msra.mxu0 0.0
        %4751 = vmatpush.msra.mxu0 0.0
        %v4752 = vand.u32 %v4696, 4294901760
        %v4753 = vsub.f32 %v4696, %v4752
        %v4754 = vand.u32 %v4753, 4294901760
        %v4755 = vsub.f32 %v4753, %v4754
        %v4756 = vand.u32 %v4755, 4294901760
        %4757 = vmatpush.msra.mxu0 %v4756
        %v4758 = vand.u32 %v4695, 4294901760
        %v4759 = vsub.f32 %v4695, %v4758
        %v4760 = vand.u32 %v4759, 4294901760
        %v4761 = vsub.f32 %v4759, %v4760
        %v4762 = vand.u32 %v4761, 4294901760
        %4763 = vmatpush.msra.mxu0 %v4762
        %v4764 = vand.u32 %v4694, 4294901760
        %v4765 = vsub.f32 %v4694, %v4764
        %v4766 = vand.u32 %v4765, 4294901760
        %v4767 = vsub.f32 %v4765, %v4766
        %v4768 = vand.u32 %v4767, 4294901760
        %4769 = vmatpush.msra.mxu0 %v4768
        %v4770 = vand.u32 %v4693, 4294901760
        %v4771 = vsub.f32 %v4693, %v4770
        %v4772 = vand.u32 %v4771, 4294901760
        %v4773 = vsub.f32 %v4771, %v4772
        %v4774 = vand.u32 %v4773, 4294901760
        %4775 = vmatpush.msra.mxu0 %v4774
        %v4776 = vand.u32 %v4698, 4294901760
        %4777 = vmatmul.f32.gmra.mxu0 %v4776
        %v4778 = vpop.f32.mrf.mxu0
        %v4779 = vadd.f32 %v4730, %v4778
        %v4780 = vand.u32 %v4701, 4294901760
        %4781 = vmatmul.f32.gmra.mxu0 %v4780
        %v4782 = vpop.f32.mrf.mxu0
        %v4783 = vadd.f32 %v4738, %v4782
        %4784 = vdwg.mxu0
        %4785 = vmatpush.msra.mxu0 0.0
        %4786 = vmatpush.msra.mxu0 0.0
        %4787 = vmatpush.msra.mxu0 0.0
        %4788 = vmatpush.msra.mxu0 0.0
        %4789 = vmatpush.msra.mxu0 0.0
        %4790 = vmatpush.msra.mxu0 0.0
        %4791 = vmatpush.msra.mxu0 0.0
        %4792 = vmatpush.msra.mxu0 0.0
        %4793 = vmatpush.msra.mxu0 0.0
        %4794 = vmatpush.msra.mxu0 0.0
        %4795 = vmatpush.msra.mxu0 0.0
        %4796 = vmatpush.msra.mxu0 0.0
        %v4797 = vand.u32 %v4696, 4294901760
        %v4798 = vsub.f32 %v4696, %v4797
        %4799 = vmatpush.msra.mxu0 %v4798
        %v4800 = vand.u32 %v4695, 4294901760
        %v4801 = vsub.f32 %v4695, %v4800
        %4802 = vmatpush.msra.mxu0 %v4801
        %v4803 = vand.u32 %v4694, 4294901760
        %v4804 = vsub.f32 %v4694, %v4803
        %4805 = vmatpush.msra.mxu0 %v4804
        %v4806 = vand.u32 %v4693, 4294901760
        %v4807 = vsub.f32 %v4693, %v4806
        %4808 = vmatpush.msra.mxu0 %v4807
        %v4809 = vand.u32 %v4698, 4294901760
        %v4810 = vsub.f32 %v4698, %v4809
        %4811 = vmatmul.f32.gmra.mxu0 %v4810
        %v4812 = vpop.f32.mrf.mxu0
        %v4813 = vadd.f32 %v4779, %v4812
        %v4814 = vand.u32 %v4701, 4294901760
        %v4815 = vsub.f32 %v4701, %v4814
        %4816 = vmatmul.f32.gmra.mxu0 %v4815
        %v4817 = vpop.f32.mrf.mxu0
        %v4818 = vadd.f32 %v4783, %v4817
        %4819 = vdwg.mxu0
        %4820 = vmatpush.msra.mxu0 0.0
        %4821 = vmatpush.msra.mxu0 0.0
        %4822 = vmatpush.msra.mxu0 0.0
        %4823 = vmatpush.msra.mxu0 0.0
        %4824 = vmatpush.msra.mxu0 0.0
        %4825 = vmatpush.msra.mxu0 0.0
        %4826 = vmatpush.msra.mxu0 0.0
        %4827 = vmatpush.msra.mxu0 0.0
        %4828 = vmatpush.msra.mxu0 0.0
        %4829 = vmatpush.msra.mxu0 0.0
        %4830 = vmatpush.msra.mxu0 0.0
        %4831 = vmatpush.msra.mxu0 0.0
        %v4832 = vand.u32 %v4696, 4294901760
        %4833 = vmatpush.msra.mxu0 %v4832
        %v4834 = vand.u32 %v4695, 4294901760
        %4835 = vmatpush.msra.mxu0 %v4834
        %v4836 = vand.u32 %v4694, 4294901760
        %4837 = vmatpush.msra.mxu0 %v4836
        %v4838 = vand.u32 %v4693, 4294901760
        %4839 = vmatpush.msra.mxu0 %v4838
        %v4840 = vand.u32 %v4698, 4294901760
        %v4841 = vsub.f32 %v4698, %v4840
        %v4842 = vand.u32 %v4841, 4294901760
        %4843 = vmatmul.f32.gmra.mxu0 %v4842
        %v4844 = vpop.f32.mrf.mxu0
        %v4845 = vadd.f32 %v4813, %v4844
        %v4846 = vand.u32 %v4701, 4294901760
        %v4847 = vsub.f32 %v4701, %v4846
        %v4848 = vand.u32 %v4847, 4294901760
        %4849 = vmatmul.f32.gmra.mxu0 %v4848
        %v4850 = vpop.f32.mrf.mxu0
        %v4851 = vadd.f32 %v4818, %v4850
        %4852 = vdwg.mxu0
        %4853 = vmatpush.msra.mxu0 0.0
        %4854 = vmatpush.msra.mxu0 0.0
        %4855 = vmatpush.msra.mxu0 0.0
        %4856 = vmatpush.msra.mxu0 0.0
        %4857 = vmatpush.msra.mxu0 0.0
        %4858 = vmatpush.msra.mxu0 0.0
        %4859 = vmatpush.msra.mxu0 0.0
        %4860 = vmatpush.msra.mxu0 0.0
        %4861 = vmatpush.msra.mxu0 0.0
        %4862 = vmatpush.msra.mxu0 0.0
        %4863 = vmatpush.msra.mxu0 0.0
        %4864 = vmatpush.msra.mxu0 0.0
        %v4865 = vand.u32 %v4696, 4294901760
        %v4866 = vsub.f32 %v4696, %v4865
        %v4867 = vand.u32 %v4866, 4294901760
        %4868 = vmatpush.msra.mxu0 %v4867
        %v4869 = vand.u32 %v4695, 4294901760
        %v4870 = vsub.f32 %v4695, %v4869
        %v4871 = vand.u32 %v4870, 4294901760
        %4872 = vmatpush.msra.mxu0 %v4871
        %v4873 = vand.u32 %v4694, 4294901760
        %v4874 = vsub.f32 %v4694, %v4873
        %v4875 = vand.u32 %v4874, 4294901760
        %4876 = vmatpush.msra.mxu0 %v4875
        %v4877 = vand.u32 %v4693, 4294901760
        %v4878 = vsub.f32 %v4693, %v4877
        %v4879 = vand.u32 %v4878, 4294901760
        %4880 = vmatpush.msra.mxu0 %v4879
        %v4881 = vand.u32 %v4698, 4294901760
        %4882 = vmatmul.f32.gmra.mxu0 %v4881
        %v4883 = vpop.f32.mrf.mxu0
        %v4884 = vadd.f32 %v4845, %v4883
        %v4885 = vand.u32 %v4701, 4294901760
        %4886 = vmatmul.f32.gmra.mxu0 %v4885
        %v4887 = vpop.f32.mrf.mxu0
        %v4888 = vadd.f32 %v4851, %v4887
        %4889 = vdwg.mxu0
        %4890 = vmatpush.msra.mxu0 0.0
        %4891 = vmatpush.msra.mxu0 0.0
        %4892 = vmatpush.msra.mxu0 0.0
        %4893 = vmatpush.msra.mxu0 0.0
        %4894 = vmatpush.msra.mxu0 0.0
        %4895 = vmatpush.msra.mxu0 0.0
        %4896 = vmatpush.msra.mxu0 0.0
        %4897 = vmatpush.msra.mxu0 0.0
        %4898 = vmatpush.msra.mxu0 0.0
        %4899 = vmatpush.msra.mxu0 0.0
        %4900 = vmatpush.msra.mxu0 0.0
        %4901 = vmatpush.msra.mxu0 0.0
        %v4902 = vand.u32 %v4696, 4294901760
        %4903 = vmatpush.msra.mxu0 %v4902
        %v4904 = vand.u32 %v4695, 4294901760
        %4905 = vmatpush.msra.mxu0 %v4904
        %v4906 = vand.u32 %v4694, 4294901760
        %4907 = vmatpush.msra.mxu0 %v4906
        %v4908 = vand.u32 %v4693, 4294901760
        %4909 = vmatpush.msra.mxu0 %v4908
        %v4910 = vand.u32 %v4698, 4294901760
        %4911 = vmatmul.f32.gmra.mxu0 %v4910
        %v4912 = vpop.f32.mrf.mxu0
        %v4913 = vadd.f32 %v4884, %v4912
        %v4914 = vand.u32 %v4701, 4294901760
        %4915 = vmatmul.f32.gmra.mxu0 %v4914
        %v4916 = vpop.f32.mrf.mxu0
        %v4917 = vadd.f32 %v4888, %v4916
        %4918 = vdwg.mxu0
        %v4919 = vadd.f32 %v4691, %v4913
        %v4920 = vadd.f32 %v4692, %v4917
        %v4921 = vld [vmem:[%s14 + $0x40] sm:$0xff]
        %v4922 = vld [vmem:[%s14 + $0x48] sm:$0xff]
        %v4923 = vld [vmem:[%s14 + $0x50] sm:$0xff]
        %v4924 = vld [vmem:[%s14 + $0x58] sm:$0xff]
        %v4926 = vsel %vm2102, %v4447, 0
        %v4929 = vsel %vm2102, %v4451, 0
        %4931 = vmatpush.msra.mxu0 0.0
        %4932 = vmatpush.msra.mxu0 0.0
        %4933 = vmatpush.msra.mxu0 0.0
        %4934 = vmatpush.msra.mxu0 0.0
        %4935 = vmatpush.msra.mxu0 0.0
        %4936 = vmatpush.msra.mxu0 0.0
        %4937 = vmatpush.msra.mxu0 0.0
        %4938 = vmatpush.msra.mxu0 0.0
        %4939 = vmatpush.msra.mxu0 0.0
        %4940 = vmatpush.msra.mxu0 0.0
        %4941 = vmatpush.msra.mxu0 0.0
        %4942 = vmatpush.msra.mxu0 0.0
        %v4943 = vand.u32 %v4924, 4294901760
        %4944 = vmatpush.msra.mxu0 %v4943
        %v4945 = vand.u32 %v4923, 4294901760
        %4946 = vmatpush.msra.mxu0 %v4945
        %v4947 = vand.u32 %v4922, 4294901760
        %4948 = vmatpush.msra.mxu0 %v4947
        %v4949 = vand.u32 %v4921, 4294901760
        %4950 = vmatpush.msra.mxu0 %v4949
        %v4951 = vand.u32 %v4926, 4294901760
        %v4952 = vsub.f32 %v4926, %v4951
        %v4953 = vand.u32 %v4952, 4294901760
        %v4954 = vsub.f32 %v4952, %v4953
        %v4955 = vand.u32 %v4954, 4294901760
        %4956 = vmatmul.f32.gmra.mxu0 %v4955
        %v4957 = vpop.f32.mrf.mxu0
        %v4958 = vadd.f32 0.0, %v4957
        %v4959 = vand.u32 %v4929, 4294901760
        %v4960 = vsub.f32 %v4929, %v4959
        %v4961 = vand.u32 %v4960, 4294901760
        %v4962 = vsub.f32 %v4960, %v4961
        %v4963 = vand.u32 %v4962, 4294901760
        %4964 = vmatmul.f32.gmra.mxu0 %v4963
        %v4965 = vpop.f32.mrf.mxu0
        %v4966 = vadd.f32 0.0, %v4965
        %4967 = vdwg.mxu0
        %4968 = vmatpush.msra.mxu0 0.0
        %4969 = vmatpush.msra.mxu0 0.0
        %4970 = vmatpush.msra.mxu0 0.0
        %4971 = vmatpush.msra.mxu0 0.0
        %4972 = vmatpush.msra.mxu0 0.0
        %4973 = vmatpush.msra.mxu0 0.0
        %4974 = vmatpush.msra.mxu0 0.0
        %4975 = vmatpush.msra.mxu0 0.0
        %4976 = vmatpush.msra.mxu0 0.0
        %4977 = vmatpush.msra.mxu0 0.0
        %4978 = vmatpush.msra.mxu0 0.0
        %4979 = vmatpush.msra.mxu0 0.0
        %v4980 = vand.u32 %v4924, 4294901760
        %v4981 = vsub.f32 %v4924, %v4980
        %v4982 = vand.u32 %v4981, 4294901760
        %v4983 = vsub.f32 %v4981, %v4982
        %v4984 = vand.u32 %v4983, 4294901760
        %4985 = vmatpush.msra.mxu0 %v4984
        %v4986 = vand.u32 %v4923, 4294901760
        %v4987 = vsub.f32 %v4923, %v4986
        %v4988 = vand.u32 %v4987, 4294901760
        %v4989 = vsub.f32 %v4987, %v4988
        %v4990 = vand.u32 %v4989, 4294901760
        %4991 = vmatpush.msra.mxu0 %v4990
        %v4992 = vand.u32 %v4922, 4294901760
        %v4993 = vsub.f32 %v4922, %v4992
        %v4994 = vand.u32 %v4993, 4294901760
        %v4995 = vsub.f32 %v4993, %v4994
        %v4996 = vand.u32 %v4995, 4294901760
        %4997 = vmatpush.msra.mxu0 %v4996
        %v4998 = vand.u32 %v4921, 4294901760
        %v4999 = vsub.f32 %v4921, %v4998
        %v5000 = vand.u32 %v4999, 4294901760
        %v5001 = vsub.f32 %v4999, %v5000
        %v5002 = vand.u32 %v5001, 4294901760
        %5003 = vmatpush.msra.mxu0 %v5002
        %v5004 = vand.u32 %v4926, 4294901760
        %5005 = vmatmul.f32.gmra.mxu0 %v5004
        %v5006 = vpop.f32.mrf.mxu0
        %v5007 = vadd.f32 %v4958, %v5006
        %v5008 = vand.u32 %v4929, 4294901760
        %5009 = vmatmul.f32.gmra.mxu0 %v5008
        %v5010 = vpop.f32.mrf.mxu0
        %v5011 = vadd.f32 %v4966, %v5010
        %5012 = vdwg.mxu0
        %5013 = vmatpush.msra.mxu0 0.0
        %5014 = vmatpush.msra.mxu0 0.0
        %5015 = vmatpush.msra.mxu0 0.0
        %5016 = vmatpush.msra.mxu0 0.0
        %5017 = vmatpush.msra.mxu0 0.0
        %5018 = vmatpush.msra.mxu0 0.0
        %5019 = vmatpush.msra.mxu0 0.0
        %5020 = vmatpush.msra.mxu0 0.0
        %5021 = vmatpush.msra.mxu0 0.0
        %5022 = vmatpush.msra.mxu0 0.0
        %5023 = vmatpush.msra.mxu0 0.0
        %5024 = vmatpush.msra.mxu0 0.0
        %v5025 = vand.u32 %v4924, 4294901760
        %v5026 = vsub.f32 %v4924, %v5025
        %5027 = vmatpush.msra.mxu0 %v5026
        %v5028 = vand.u32 %v4923, 4294901760
        %v5029 = vsub.f32 %v4923, %v5028
        %5030 = vmatpush.msra.mxu0 %v5029
        %v5031 = vand.u32 %v4922, 4294901760
        %v5032 = vsub.f32 %v4922, %v5031
        %5033 = vmatpush.msra.mxu0 %v5032
        %v5034 = vand.u32 %v4921, 4294901760
        %v5035 = vsub.f32 %v4921, %v5034
        %5036 = vmatpush.msra.mxu0 %v5035
        %v5037 = vand.u32 %v4926, 4294901760
        %v5038 = vsub.f32 %v4926, %v5037
        %5039 = vmatmul.f32.gmra.mxu0 %v5038
        %v5040 = vpop.f32.mrf.mxu0
        %v5041 = vadd.f32 %v5007, %v5040
        %v5042 = vand.u32 %v4929, 4294901760
        %v5043 = vsub.f32 %v4929, %v5042
        %5044 = vmatmul.f32.gmra.mxu0 %v5043
        %v5045 = vpop.f32.mrf.mxu0
        %v5046 = vadd.f32 %v5011, %v5045
        %5047 = vdwg.mxu0
        %5048 = vmatpush.msra.mxu0 0.0
        %5049 = vmatpush.msra.mxu0 0.0
        %5050 = vmatpush.msra.mxu0 0.0
        %5051 = vmatpush.msra.mxu0 0.0
        %5052 = vmatpush.msra.mxu0 0.0
        %5053 = vmatpush.msra.mxu0 0.0
        %5054 = vmatpush.msra.mxu0 0.0
        %5055 = vmatpush.msra.mxu0 0.0
        %5056 = vmatpush.msra.mxu0 0.0
        %5057 = vmatpush.msra.mxu0 0.0
        %5058 = vmatpush.msra.mxu0 0.0
        %5059 = vmatpush.msra.mxu0 0.0
        %v5060 = vand.u32 %v4924, 4294901760
        %5061 = vmatpush.msra.mxu0 %v5060
        %v5062 = vand.u32 %v4923, 4294901760
        %5063 = vmatpush.msra.mxu0 %v5062
        %v5064 = vand.u32 %v4922, 4294901760
        %5065 = vmatpush.msra.mxu0 %v5064
        %v5066 = vand.u32 %v4921, 4294901760
        %5067 = vmatpush.msra.mxu0 %v5066
        %v5068 = vand.u32 %v4926, 4294901760
        %v5069 = vsub.f32 %v4926, %v5068
        %v5070 = vand.u32 %v5069, 4294901760
        %5071 = vmatmul.f32.gmra.mxu0 %v5070
        %v5072 = vpop.f32.mrf.mxu0
        %v5073 = vadd.f32 %v5041, %v5072
        %v5074 = vand.u32 %v4929, 4294901760
        %v5075 = vsub.f32 %v4929, %v5074
        %v5076 = vand.u32 %v5075, 4294901760
        %5077 = vmatmul.f32.gmra.mxu0 %v5076
        %v5078 = vpop.f32.mrf.mxu0
        %v5079 = vadd.f32 %v5046, %v5078
        %5080 = vdwg.mxu0
        %5081 = vmatpush.msra.mxu0 0.0
        %5082 = vmatpush.msra.mxu0 0.0
        %5083 = vmatpush.msra.mxu0 0.0
        %5084 = vmatpush.msra.mxu0 0.0
        %5085 = vmatpush.msra.mxu0 0.0
        %5086 = vmatpush.msra.mxu0 0.0
        %5087 = vmatpush.msra.mxu0 0.0
        %5088 = vmatpush.msra.mxu0 0.0
        %5089 = vmatpush.msra.mxu0 0.0
        %5090 = vmatpush.msra.mxu0 0.0
        %5091 = vmatpush.msra.mxu0 0.0
        %5092 = vmatpush.msra.mxu0 0.0
        %v5093 = vand.u32 %v4924, 4294901760
        %v5094 = vsub.f32 %v4924, %v5093
        %v5095 = vand.u32 %v5094, 4294901760
        %5096 = vmatpush.msra.mxu0 %v5095
        %v5097 = vand.u32 %v4923, 4294901760
        %v5098 = vsub.f32 %v4923, %v5097
        %v5099 = vand.u32 %v5098, 4294901760
        %5100 = vmatpush.msra.mxu0 %v5099
        %v5101 = vand.u32 %v4922, 4294901760
        %v5102 = vsub.f32 %v4922, %v5101
        %v5103 = vand.u32 %v5102, 4294901760
        %5104 = vmatpush.msra.mxu0 %v5103
        %v5105 = vand.u32 %v4921, 4294901760
        %v5106 = vsub.f32 %v4921, %v5105
        %v5107 = vand.u32 %v5106, 4294901760
        %5108 = vmatpush.msra.mxu0 %v5107
        %v5109 = vand.u32 %v4926, 4294901760
        %5110 = vmatmul.f32.gmra.mxu0 %v5109
        %v5111 = vpop.f32.mrf.mxu0
        %v5112 = vadd.f32 %v5073, %v5111
        %v5113 = vand.u32 %v4929, 4294901760
        %5114 = vmatmul.f32.gmra.mxu0 %v5113
        %v5115 = vpop.f32.mrf.mxu0
        %v5116 = vadd.f32 %v5079, %v5115
        %5117 = vdwg.mxu0
        %5118 = vmatpush.msra.mxu0 0.0
        %5119 = vmatpush.msra.mxu0 0.0
        %5120 = vmatpush.msra.mxu0 0.0
        %5121 = vmatpush.msra.mxu0 0.0
        %5122 = vmatpush.msra.mxu0 0.0
        %5123 = vmatpush.msra.mxu0 0.0
        %5124 = vmatpush.msra.mxu0 0.0
        %5125 = vmatpush.msra.mxu0 0.0
        %5126 = vmatpush.msra.mxu0 0.0
        %5127 = vmatpush.msra.mxu0 0.0
        %5128 = vmatpush.msra.mxu0 0.0
        %5129 = vmatpush.msra.mxu0 0.0
        %v5130 = vand.u32 %v4924, 4294901760
        %5131 = vmatpush.msra.mxu0 %v5130
        %v5132 = vand.u32 %v4923, 4294901760
        %5133 = vmatpush.msra.mxu0 %v5132
        %v5134 = vand.u32 %v4922, 4294901760
        %5135 = vmatpush.msra.mxu0 %v5134
        %v5136 = vand.u32 %v4921, 4294901760
        %5137 = vmatpush.msra.mxu0 %v5136
        %v5138 = vand.u32 %v4926, 4294901760
        %5139 = vmatmul.f32.gmra.mxu0 %v5138
        %v5140 = vpop.f32.mrf.mxu0
        %v5141 = vadd.f32 %v5112, %v5140
        %v5142 = vand.u32 %v4929, 4294901760
        %5143 = vmatmul.f32.gmra.mxu0 %v5142
        %v5144 = vpop.f32.mrf.mxu0
        %v5145 = vadd.f32 %v5116, %v5144
        %5146 = vdwg.mxu0
        %v5147 = vadd.f32 %v4919, %v5141
        %v5148 = vadd.f32 %v4920, %v5145
        %v5149 = vld [vmem:[%s14 + $0x60] sm:$0xff]
        %v5150 = vld [vmem:[%s14 + $0x68] sm:$0xff]
        %v5151 = vld [vmem:[%s14 + $0x70] sm:$0xff]
        %v5152 = vld [vmem:[%s14 + $0x78] sm:$0xff]
        %v5154 = vsel %vm2102, %v4455, 0
        %v5157 = vsel %vm2102, %v4459, 0
        %5159 = vmatpush.msra.mxu0 0.0
        %5160 = vmatpush.msra.mxu0 0.0
        %5161 = vmatpush.msra.mxu0 0.0
        %5162 = vmatpush.msra.mxu0 0.0
        %5163 = vmatpush.msra.mxu0 0.0
        %5164 = vmatpush.msra.mxu0 0.0
        %5165 = vmatpush.msra.mxu0 0.0
        %5166 = vmatpush.msra.mxu0 0.0
        %5167 = vmatpush.msra.mxu0 0.0
        %5168 = vmatpush.msra.mxu0 0.0
        %5169 = vmatpush.msra.mxu0 0.0
        %5170 = vmatpush.msra.mxu0 0.0
        %v5171 = vand.u32 %v5152, 4294901760
        %5172 = vmatpush.msra.mxu0 %v5171
        %v5173 = vand.u32 %v5151, 4294901760
        %5174 = vmatpush.msra.mxu0 %v5173
        %v5175 = vand.u32 %v5150, 4294901760
        %5176 = vmatpush.msra.mxu0 %v5175
        %v5177 = vand.u32 %v5149, 4294901760
        %5178 = vmatpush.msra.mxu0 %v5177
        %v5179 = vand.u32 %v5154, 4294901760
        %v5180 = vsub.f32 %v5154, %v5179
        %v5181 = vand.u32 %v5180, 4294901760
        %v5182 = vsub.f32 %v5180, %v5181
        %v5183 = vand.u32 %v5182, 4294901760
        %5184 = vmatmul.f32.gmra.mxu0 %v5183
        %v5185 = vpop.f32.mrf.mxu0
        %v5186 = vadd.f32 0.0, %v5185
        %v5187 = vand.u32 %v5157, 4294901760
        %v5188 = vsub.f32 %v5157, %v5187
        %v5189 = vand.u32 %v5188, 4294901760
        %v5190 = vsub.f32 %v5188, %v5189
        %v5191 = vand.u32 %v5190, 4294901760
        %5192 = vmatmul.f32.gmra.mxu0 %v5191
        %v5193 = vpop.f32.mrf.mxu0
        %v5194 = vadd.f32 0.0, %v5193
        %5195 = vdwg.mxu0
        %5196 = vmatpush.msra.mxu0 0.0
        %5197 = vmatpush.msra.mxu0 0.0
        %5198 = vmatpush.msra.mxu0 0.0
        %5199 = vmatpush.msra.mxu0 0.0
        %5200 = vmatpush.msra.mxu0 0.0
        %5201 = vmatpush.msra.mxu0 0.0
        %5202 = vmatpush.msra.mxu0 0.0
        %5203 = vmatpush.msra.mxu0 0.0
        %5204 = vmatpush.msra.mxu0 0.0
        %5205 = vmatpush.msra.mxu0 0.0
        %5206 = vmatpush.msra.mxu0 0.0
        %5207 = vmatpush.msra.mxu0 0.0
        %v5208 = vand.u32 %v5152, 4294901760
        %v5209 = vsub.f32 %v5152, %v5208
        %v5210 = vand.u32 %v5209, 4294901760
        %v5211 = vsub.f32 %v5209, %v5210
        %v5212 = vand.u32 %v5211, 4294901760
        %5213 = vmatpush.msra.mxu0 %v5212
        %v5214 = vand.u32 %v5151, 4294901760
        %v5215 = vsub.f32 %v5151, %v5214
        %v5216 = vand.u32 %v5215, 4294901760
        %v5217 = vsub.f32 %v5215, %v5216
        %v5218 = vand.u32 %v5217, 4294901760
        %5219 = vmatpush.msra.mxu0 %v5218
        %v5220 = vand.u32 %v5150, 4294901760
        %v5221 = vsub.f32 %v5150, %v5220
        %v5222 = vand.u32 %v5221, 4294901760
        %v5223 = vsub.f32 %v5221, %v5222
        %v5224 = vand.u32 %v5223, 4294901760
        %5225 = vmatpush.msra.mxu0 %v5224
        %v5226 = vand.u32 %v5149, 4294901760
        %v5227 = vsub.f32 %v5149, %v5226
        %v5228 = vand.u32 %v5227, 4294901760
        %v5229 = vsub.f32 %v5227, %v5228
        %v5230 = vand.u32 %v5229, 4294901760
        %5231 = vmatpush.msra.mxu0 %v5230
        %v5232 = vand.u32 %v5154, 4294901760
        %5233 = vmatmul.f32.gmra.mxu0 %v5232
        %v5234 = vpop.f32.mrf.mxu0
        %v5235 = vadd.f32 %v5186, %v5234
        %v5236 = vand.u32 %v5157, 4294901760
        %5237 = vmatmul.f32.gmra.mxu0 %v5236
        %v5238 = vpop.f32.mrf.mxu0
        %v5239 = vadd.f32 %v5194, %v5238
        %5240 = vdwg.mxu0
        %5241 = vmatpush.msra.mxu0 0.0
        %5242 = vmatpush.msra.mxu0 0.0
        %5243 = vmatpush.msra.mxu0 0.0
        %5244 = vmatpush.msra.mxu0 0.0
        %5245 = vmatpush.msra.mxu0 0.0
        %5246 = vmatpush.msra.mxu0 0.0
        %5247 = vmatpush.msra.mxu0 0.0
        %5248 = vmatpush.msra.mxu0 0.0
        %5249 = vmatpush.msra.mxu0 0.0
        %5250 = vmatpush.msra.mxu0 0.0
        %5251 = vmatpush.msra.mxu0 0.0
        %5252 = vmatpush.msra.mxu0 0.0
        %v5253 = vand.u32 %v5152, 4294901760
        %v5254 = vsub.f32 %v5152, %v5253
        %5255 = vmatpush.msra.mxu0 %v5254
        %v5256 = vand.u32 %v5151, 4294901760
        %v5257 = vsub.f32 %v5151, %v5256
        %5258 = vmatpush.msra.mxu0 %v5257
        %v5259 = vand.u32 %v5150, 4294901760
        %v5260 = vsub.f32 %v5150, %v5259
        %5261 = vmatpush.msra.mxu0 %v5260
        %v5262 = vand.u32 %v5149, 4294901760
        %v5263 = vsub.f32 %v5149, %v5262
        %5264 = vmatpush.msra.mxu0 %v5263
        %v5265 = vand.u32 %v5154, 4294901760
        %v5266 = vsub.f32 %v5154, %v5265
        %5267 = vmatmul.f32.gmra.mxu0 %v5266
        %v5268 = vpop.f32.mrf.mxu0
        %v5269 = vadd.f32 %v5235, %v5268
        %v5270 = vand.u32 %v5157, 4294901760
        %v5271 = vsub.f32 %v5157, %v5270
        %5272 = vmatmul.f32.gmra.mxu0 %v5271
        %v5273 = vpop.f32.mrf.mxu0
        %v5274 = vadd.f32 %v5239, %v5273
        %5275 = vdwg.mxu0
        %5276 = vmatpush.msra.mxu0 0.0
        %5277 = vmatpush.msra.mxu0 0.0
        %5278 = vmatpush.msra.mxu0 0.0
        %5279 = vmatpush.msra.mxu0 0.0
        %5280 = vmatpush.msra.mxu0 0.0
        %5281 = vmatpush.msra.mxu0 0.0
        %5282 = vmatpush.msra.mxu0 0.0
        %5283 = vmatpush.msra.mxu0 0.0
        %5284 = vmatpush.msra.mxu0 0.0
        %5285 = vmatpush.msra.mxu0 0.0
        %5286 = vmatpush.msra.mxu0 0.0
        %5287 = vmatpush.msra.mxu0 0.0
        %v5288 = vand.u32 %v5152, 4294901760
        %5289 = vmatpush.msra.mxu0 %v5288
        %v5290 = vand.u32 %v5151, 4294901760
        %5291 = vmatpush.msra.mxu0 %v5290
        %v5292 = vand.u32 %v5150, 4294901760
        %5293 = vmatpush.msra.mxu0 %v5292
        %v5294 = vand.u32 %v5149, 4294901760
        %5295 = vmatpush.msra.mxu0 %v5294
        %v5296 = vand.u32 %v5154, 4294901760
        %v5297 = vsub.f32 %v5154, %v5296
        %v5298 = vand.u32 %v5297, 4294901760
        %5299 = vmatmul.f32.gmra.mxu0 %v5298
        %v5300 = vpop.f32.mrf.mxu0
        %v5301 = vadd.f32 %v5269, %v5300
        %v5302 = vand.u32 %v5157, 4294901760
        %v5303 = vsub.f32 %v5157, %v5302
        %v5304 = vand.u32 %v5303, 4294901760
        %5305 = vmatmul.f32.gmra.mxu0 %v5304
        %v5306 = vpop.f32.mrf.mxu0
        %v5307 = vadd.f32 %v5274, %v5306
        %5308 = vdwg.mxu0
        %5309 = vmatpush.msra.mxu0 0.0
        %5310 = vmatpush.msra.mxu0 0.0
        %5311 = vmatpush.msra.mxu0 0.0
        %5312 = vmatpush.msra.mxu0 0.0
        %5313 = vmatpush.msra.mxu0 0.0
        %5314 = vmatpush.msra.mxu0 0.0
        %5315 = vmatpush.msra.mxu0 0.0
        %5316 = vmatpush.msra.mxu0 0.0
        %5317 = vmatpush.msra.mxu0 0.0
        %5318 = vmatpush.msra.mxu0 0.0
        %5319 = vmatpush.msra.mxu0 0.0
        %5320 = vmatpush.msra.mxu0 0.0
        %v5321 = vand.u32 %v5152, 4294901760
        %v5322 = vsub.f32 %v5152, %v5321
        %v5323 = vand.u32 %v5322, 4294901760
        %5324 = vmatpush.msra.mxu0 %v5323
        %v5325 = vand.u32 %v5151, 4294901760
        %v5326 = vsub.f32 %v5151, %v5325
        %v5327 = vand.u32 %v5326, 4294901760
        %5328 = vmatpush.msra.mxu0 %v5327
        %v5329 = vand.u32 %v5150, 4294901760
        %v5330 = vsub.f32 %v5150, %v5329
        %v5331 = vand.u32 %v5330, 4294901760
        %5332 = vmatpush.msra.mxu0 %v5331
        %v5333 = vand.u32 %v5149, 4294901760
        %v5334 = vsub.f32 %v5149, %v5333
        %v5335 = vand.u32 %v5334, 4294901760
        %5336 = vmatpush.msra.mxu0 %v5335
        %v5337 = vand.u32 %v5154, 4294901760
        %5338 = vmatmul.f32.gmra.mxu0 %v5337
        %v5339 = vpop.f32.mrf.mxu0
        %v5340 = vadd.f32 %v5301, %v5339
        %v5341 = vand.u32 %v5157, 4294901760
        %5342 = vmatmul.f32.gmra.mxu0 %v5341
        %v5343 = vpop.f32.mrf.mxu0
        %v5344 = vadd.f32 %v5307, %v5343
        %5345 = vdwg.mxu0
        %5346 = vmatpush.msra.mxu0 0.0
        %5347 = vmatpush.msra.mxu0 0.0
        %5348 = vmatpush.msra.mxu0 0.0
        %5349 = vmatpush.msra.mxu0 0.0
        %5350 = vmatpush.msra.mxu0 0.0
        %5351 = vmatpush.msra.mxu0 0.0
        %5352 = vmatpush.msra.mxu0 0.0
        %5353 = vmatpush.msra.mxu0 0.0
        %5354 = vmatpush.msra.mxu0 0.0
        %5355 = vmatpush.msra.mxu0 0.0
        %5356 = vmatpush.msra.mxu0 0.0
        %5357 = vmatpush.msra.mxu0 0.0
        %v5358 = vand.u32 %v5152, 4294901760
        %5359 = vmatpush.msra.mxu0 %v5358
        %v5360 = vand.u32 %v5151, 4294901760
        %5361 = vmatpush.msra.mxu0 %v5360
        %v5362 = vand.u32 %v5150, 4294901760
        %5363 = vmatpush.msra.mxu0 %v5362
        %v5364 = vand.u32 %v5149, 4294901760
        %5365 = vmatpush.msra.mxu0 %v5364
        %v5366 = vand.u32 %v5154, 4294901760
        %5367 = vmatmul.f32.gmra.mxu0 %v5366
        %v5368 = vpop.f32.mrf.mxu0
        %v5369 = vadd.f32 %v5340, %v5368
        %v5370 = vand.u32 %v5157, 4294901760
        %5371 = vmatmul.f32.gmra.mxu0 %v5370
        %v5372 = vpop.f32.mrf.mxu0
        %v5373 = vadd.f32 %v5344, %v5372
        %5374 = vdwg.mxu0
        %v5375 = vadd.f32 %v5147, %v5369
        %v5376 = vadd.f32 %v5148, %v5373
        %v5377 = vld [vmem:[%s16] sm:$0xff]
        %v5378 = vld [vmem:[%s16 + $0x8] sm:$0xff]
        %v5379 = vld [vmem:[%s16 + $0x10] sm:$0xff]
        %v5380 = vld [vmem:[%s16 + $0x18] sm:$0xff]
        %v5381 = vld [vmem:[%s17] sm:$0x1]
        %v5383 = vperm.slane %v5381, 0
        %v5386 = vsel %vm2102, %v5375, 0
        %v5389 = vsel %vm2102, %v5376, 0
        %5391 = vmatpush.msra.mxu0 0.0
        %5392 = vmatpush.msra.mxu0 0.0
        %5393 = vmatpush.msra.mxu0 0.0
        %5394 = vmatpush.msra.mxu0 0.0
        %5395 = vmatpush.msra.mxu0 0.0
        %5396 = vmatpush.msra.mxu0 0.0
        %5397 = vmatpush.msra.mxu0 0.0
        %5398 = vmatpush.msra.mxu0 0.0
        %5399 = vmatpush.msra.mxu0 0.0
        %5400 = vmatpush.msra.mxu0 0.0
        %5401 = vmatpush.msra.mxu0 0.0
        %5402 = vmatpush.msra.mxu0 0.0
        %v5403 = vand.u32 %v5380, 4294901760
        %5404 = vmatpush.msra.mxu0 %v5403
        %v5405 = vand.u32 %v5379, 4294901760
        %5406 = vmatpush.msra.mxu0 %v5405
        %v5407 = vand.u32 %v5378, 4294901760
        %5408 = vmatpush.msra.mxu0 %v5407
        %v5409 = vand.u32 %v5377, 4294901760
        %5410 = vmatpush.msra.mxu0 %v5409
        %v5411 = vand.u32 %v5386, 4294901760
        %v5412 = vsub.f32 %v5386, %v5411
        %v5413 = vand.u32 %v5412, 4294901760
        %v5414 = vsub.f32 %v5412, %v5413
        %v5415 = vand.u32 %v5414, 4294901760
        %5416 = vmatmul.f32.gmra.mxu0 %v5415
        %v5417 = vpop.f32.mrf.mxu0
        %v5418 = vadd.f32 %v5383, %v5417
        %v5419 = vand.u32 %v5389, 4294901760
        %v5420 = vsub.f32 %v5389, %v5419
        %v5421 = vand.u32 %v5420, 4294901760
        %v5422 = vsub.f32 %v5420, %v5421
        %v5423 = vand.u32 %v5422, 4294901760
        %5424 = vmatmul.f32.gmra.mxu0 %v5423
        %v5425 = vpop.f32.mrf.mxu0
        %v5426 = vadd.f32 %v5383, %v5425
        %5427 = vdwg.mxu0
        %5428 = vmatpush.msra.mxu0 0.0
        %5429 = vmatpush.msra.mxu0 0.0
        %5430 = vmatpush.msra.mxu0 0.0
        %5431 = vmatpush.msra.mxu0 0.0
        %5432 = vmatpush.msra.mxu0 0.0
        %5433 = vmatpush.msra.mxu0 0.0
        %5434 = vmatpush.msra.mxu0 0.0
        %5435 = vmatpush.msra.mxu0 0.0
        %5436 = vmatpush.msra.mxu0 0.0
        %5437 = vmatpush.msra.mxu0 0.0
        %5438 = vmatpush.msra.mxu0 0.0
        %5439 = vmatpush.msra.mxu0 0.0
        %v5440 = vand.u32 %v5380, 4294901760
        %v5441 = vsub.f32 %v5380, %v5440
        %v5442 = vand.u32 %v5441, 4294901760
        %v5443 = vsub.f32 %v5441, %v5442
        %v5444 = vand.u32 %v5443, 4294901760
        %5445 = vmatpush.msra.mxu0 %v5444
        %v5446 = vand.u32 %v5379, 4294901760
        %v5447 = vsub.f32 %v5379, %v5446
        %v5448 = vand.u32 %v5447, 4294901760
        %v5449 = vsub.f32 %v5447, %v5448
        %v5450 = vand.u32 %v5449, 4294901760
        %5451 = vmatpush.msra.mxu0 %v5450
        %v5452 = vand.u32 %v5378, 4294901760
        %v5453 = vsub.f32 %v5378, %v5452
        %v5454 = vand.u32 %v5453, 4294901760
        %v5455 = vsub.f32 %v5453, %v5454
        %v5456 = vand.u32 %v5455, 4294901760
        %5457 = vmatpush.msra.mxu0 %v5456
        %v5458 = vand.u32 %v5377, 4294901760
        %v5459 = vsub.f32 %v5377, %v5458
        %v5460 = vand.u32 %v5459, 4294901760
        %v5461 = vsub.f32 %v5459, %v5460
        %v5462 = vand.u32 %v5461, 4294901760
        %5463 = vmatpush.msra.mxu0 %v5462
        %v5464 = vand.u32 %v5386, 4294901760
        %5465 = vmatmul.f32.gmra.mxu0 %v5464
        %v5466 = vpop.f32.mrf.mxu0
        %v5467 = vadd.f32 %v5418, %v5466
        %v5468 = vand.u32 %v5389, 4294901760
        %5469 = vmatmul.f32.gmra.mxu0 %v5468
        %v5470 = vpop.f32.mrf.mxu0
        %v5471 = vadd.f32 %v5426, %v5470
        %5472 = vdwg.mxu0
        %5473 = vmatpush.msra.mxu0 0.0
        %5474 = vmatpush.msra.mxu0 0.0
        %5475 = vmatpush.msra.mxu0 0.0
        %5476 = vmatpush.msra.mxu0 0.0
        %5477 = vmatpush.msra.mxu0 0.0
        %5478 = vmatpush.msra.mxu0 0.0
        %5479 = vmatpush.msra.mxu0 0.0
        %5480 = vmatpush.msra.mxu0 0.0
        %5481 = vmatpush.msra.mxu0 0.0
        %5482 = vmatpush.msra.mxu0 0.0
        %5483 = vmatpush.msra.mxu0 0.0
        %5484 = vmatpush.msra.mxu0 0.0
        %v5485 = vand.u32 %v5380, 4294901760
        %v5486 = vsub.f32 %v5380, %v5485
        %5487 = vmatpush.msra.mxu0 %v5486
        %v5488 = vand.u32 %v5379, 4294901760
        %v5489 = vsub.f32 %v5379, %v5488
        %5490 = vmatpush.msra.mxu0 %v5489
        %v5491 = vand.u32 %v5378, 4294901760
        %v5492 = vsub.f32 %v5378, %v5491
        %5493 = vmatpush.msra.mxu0 %v5492
        %v5494 = vand.u32 %v5377, 4294901760
        %v5495 = vsub.f32 %v5377, %v5494
        %5496 = vmatpush.msra.mxu0 %v5495
        %v5497 = vand.u32 %v5386, 4294901760
        %v5498 = vsub.f32 %v5386, %v5497
        %5499 = vmatmul.f32.gmra.mxu0 %v5498
        %v5500 = vpop.f32.mrf.mxu0
        %v5501 = vadd.f32 %v5467, %v5500
        %v5502 = vand.u32 %v5389, 4294901760
        %v5503 = vsub.f32 %v5389, %v5502
        %5504 = vmatmul.f32.gmra.mxu0 %v5503
        %v5505 = vpop.f32.mrf.mxu0
        %v5506 = vadd.f32 %v5471, %v5505
        %5507 = vdwg.mxu0
        %5508 = vmatpush.msra.mxu0 0.0
        %5509 = vmatpush.msra.mxu0 0.0
        %5510 = vmatpush.msra.mxu0 0.0
        %5511 = vmatpush.msra.mxu0 0.0
        %5512 = vmatpush.msra.mxu0 0.0
        %5513 = vmatpush.msra.mxu0 0.0
        %5514 = vmatpush.msra.mxu0 0.0
        %5515 = vmatpush.msra.mxu0 0.0
        %5516 = vmatpush.msra.mxu0 0.0
        %5517 = vmatpush.msra.mxu0 0.0
        %5518 = vmatpush.msra.mxu0 0.0
        %5519 = vmatpush.msra.mxu0 0.0
        %v5520 = vand.u32 %v5380, 4294901760
        %5521 = vmatpush.msra.mxu0 %v5520
        %v5522 = vand.u32 %v5379, 4294901760
        %5523 = vmatpush.msra.mxu0 %v5522
        %v5524 = vand.u32 %v5378, 4294901760
        %5525 = vmatpush.msra.mxu0 %v5524
        %v5526 = vand.u32 %v5377, 4294901760
        %5527 = vmatpush.msra.mxu0 %v5526
        %v5528 = vand.u32 %v5386, 4294901760
        %v5529 = vsub.f32 %v5386, %v5528
        %v5530 = vand.u32 %v5529, 4294901760
        %5531 = vmatmul.f32.gmra.mxu0 %v5530
        %v5532 = vpop.f32.mrf.mxu0
        %v5533 = vadd.f32 %v5501, %v5532
        %v5534 = vand.u32 %v5389, 4294901760
        %v5535 = vsub.f32 %v5389, %v5534
        %v5536 = vand.u32 %v5535, 4294901760
        %5537 = vmatmul.f32.gmra.mxu0 %v5536
        %v5538 = vpop.f32.mrf.mxu0
        %v5539 = vadd.f32 %v5506, %v5538
        %5540 = vdwg.mxu0
        %5541 = vmatpush.msra.mxu0 0.0
        %5542 = vmatpush.msra.mxu0 0.0
        %5543 = vmatpush.msra.mxu0 0.0
        %5544 = vmatpush.msra.mxu0 0.0
        %5545 = vmatpush.msra.mxu0 0.0
        %5546 = vmatpush.msra.mxu0 0.0
        %5547 = vmatpush.msra.mxu0 0.0
        %5548 = vmatpush.msra.mxu0 0.0
        %5549 = vmatpush.msra.mxu0 0.0
        %5550 = vmatpush.msra.mxu0 0.0
        %5551 = vmatpush.msra.mxu0 0.0
        %5552 = vmatpush.msra.mxu0 0.0
        %v5553 = vand.u32 %v5380, 4294901760
        %v5554 = vsub.f32 %v5380, %v5553
        %v5555 = vand.u32 %v5554, 4294901760
        %5556 = vmatpush.msra.mxu0 %v5555
        %v5557 = vand.u32 %v5379, 4294901760
        %v5558 = vsub.f32 %v5379, %v5557
        %v5559 = vand.u32 %v5558, 4294901760
        %5560 = vmatpush.msra.mxu0 %v5559
        %v5561 = vand.u32 %v5378, 4294901760
        %v5562 = vsub.f32 %v5378, %v5561
        %v5563 = vand.u32 %v5562, 4294901760
        %5564 = vmatpush.msra.mxu0 %v5563
        %v5565 = vand.u32 %v5377, 4294901760
        %v5566 = vsub.f32 %v5377, %v5565
        %v5567 = vand.u32 %v5566, 4294901760
        %5568 = vmatpush.msra.mxu0 %v5567
        %v5569 = vand.u32 %v5386, 4294901760
        %5570 = vmatmul.f32.gmra.mxu0 %v5569
        %v5571 = vpop.f32.mrf.mxu0
        %v5572 = vadd.f32 %v5533, %v5571
        %v5573 = vand.u32 %v5389, 4294901760
        %5574 = vmatmul.f32.gmra.mxu0 %v5573
        %v5575 = vpop.f32.mrf.mxu0
        %v5576 = vadd.f32 %v5539, %v5575
        %5577 = vdwg.mxu0
        %5578 = vmatpush.msra.mxu0 0.0
        %5579 = vmatpush.msra.mxu0 0.0
        %5580 = vmatpush.msra.mxu0 0.0
        %5581 = vmatpush.msra.mxu0 0.0
        %5582 = vmatpush.msra.mxu0 0.0
        %5583 = vmatpush.msra.mxu0 0.0
        %5584 = vmatpush.msra.mxu0 0.0
        %5585 = vmatpush.msra.mxu0 0.0
        %5586 = vmatpush.msra.mxu0 0.0
        %5587 = vmatpush.msra.mxu0 0.0
        %5588 = vmatpush.msra.mxu0 0.0
        %5589 = vmatpush.msra.mxu0 0.0
        %v5590 = vand.u32 %v5380, 4294901760
        %5591 = vmatpush.msra.mxu0 %v5590
        %v5592 = vand.u32 %v5379, 4294901760
        %5593 = vmatpush.msra.mxu0 %v5592
        %v5594 = vand.u32 %v5378, 4294901760
        %5595 = vmatpush.msra.mxu0 %v5594
        %v5596 = vand.u32 %v5377, 4294901760
        %5597 = vmatpush.msra.mxu0 %v5596
        %v5598 = vand.u32 %v5386, 4294901760
        %5599 = vmatmul.f32.gmra.mxu0 %v5598
        %v5600 = vpop.f32.mrf.mxu0
        %v5601 = vadd.f32 %v5572, %v5600
        %v5602 = vand.u32 %v5389, 4294901760
        %5603 = vmatmul.f32.gmra.mxu0 %v5602
        %v5604 = vpop.f32.mrf.mxu0
        %v5605 = vadd.f32 %v5576, %v5604
        %5606 = vdwg.mxu0
        %v5607 = vld [vmem:[%s18] sm:$0xff]
        %v5608 = vld [vmem:[%s18 + $0x8] sm:$0xff]
        %v5609 = vld [vmem:[%s18 + $0x10] sm:$0xff]
        %v5610 = vld [vmem:[%s18 + $0x18] sm:$0xff]
        %v5611 = vld [vmem:[%s19] sm:$0x1]
        %v5613 = vperm.slane %v5611, 0
        %v5616 = vsel %vm2102, %v5601, 0
        %v5619 = vsel %vm2102, %v5605, 0
        %5621 = vmatpush.msra.mxu0 0.0
        %5622 = vmatpush.msra.mxu0 0.0
        %5623 = vmatpush.msra.mxu0 0.0
        %5624 = vmatpush.msra.mxu0 0.0
        %5625 = vmatpush.msra.mxu0 0.0
        %5626 = vmatpush.msra.mxu0 0.0
        %5627 = vmatpush.msra.mxu0 0.0
        %5628 = vmatpush.msra.mxu0 0.0
        %5629 = vmatpush.msra.mxu0 0.0
        %5630 = vmatpush.msra.mxu0 0.0
        %5631 = vmatpush.msra.mxu0 0.0
        %5632 = vmatpush.msra.mxu0 0.0
        %v5633 = vand.u32 %v5610, 4294901760
        %5634 = vmatpush.msra.mxu0 %v5633
        %v5635 = vand.u32 %v5609, 4294901760
        %5636 = vmatpush.msra.mxu0 %v5635
        %v5637 = vand.u32 %v5608, 4294901760
        %5638 = vmatpush.msra.mxu0 %v5637
        %v5639 = vand.u32 %v5607, 4294901760
        %5640 = vmatpush.msra.mxu0 %v5639
        %v5641 = vand.u32 %v5616, 4294901760
        %v5642 = vsub.f32 %v5616, %v5641
        %v5643 = vand.u32 %v5642, 4294901760
        %v5644 = vsub.f32 %v5642, %v5643
        %v5645 = vand.u32 %v5644, 4294901760
        %5646 = vmatmul.f32.gmra.mxu0 %v5645
        %v5647 = vpop.f32.mrf.mxu0
        %v5648 = vadd.f32 %v5613, %v5647
        %v5649 = vand.u32 %v5619, 4294901760
        %v5650 = vsub.f32 %v5619, %v5649
        %v5651 = vand.u32 %v5650, 4294901760
        %v5652 = vsub.f32 %v5650, %v5651
        %v5653 = vand.u32 %v5652, 4294901760
        %5654 = vmatmul.f32.gmra.mxu0 %v5653
        %v5655 = vpop.f32.mrf.mxu0
        %v5656 = vadd.f32 %v5613, %v5655
        %5657 = vdwg.mxu0
        %5658 = vmatpush.msra.mxu0 0.0
        %5659 = vmatpush.msra.mxu0 0.0
        %5660 = vmatpush.msra.mxu0 0.0
        %5661 = vmatpush.msra.mxu0 0.0
        %5662 = vmatpush.msra.mxu0 0.0
        %5663 = vmatpush.msra.mxu0 0.0
        %5664 = vmatpush.msra.mxu0 0.0
        %5665 = vmatpush.msra.mxu0 0.0
        %5666 = vmatpush.msra.mxu0 0.0
        %5667 = vmatpush.msra.mxu0 0.0
        %5668 = vmatpush.msra.mxu0 0.0
        %5669 = vmatpush.msra.mxu0 0.0
        %v5670 = vand.u32 %v5610, 4294901760
        %v5671 = vsub.f32 %v5610, %v5670
        %v5672 = vand.u32 %v5671, 4294901760
        %v5673 = vsub.f32 %v5671, %v5672
        %v5674 = vand.u32 %v5673, 4294901760
        %5675 = vmatpush.msra.mxu0 %v5674
        %v5676 = vand.u32 %v5609, 4294901760
        %v5677 = vsub.f32 %v5609, %v5676
        %v5678 = vand.u32 %v5677, 4294901760
        %v5679 = vsub.f32 %v5677, %v5678
        %v5680 = vand.u32 %v5679, 4294901760
        %5681 = vmatpush.msra.mxu0 %v5680
        %v5682 = vand.u32 %v5608, 4294901760
        %v5683 = vsub.f32 %v5608, %v5682
        %v5684 = vand.u32 %v5683, 4294901760
        %v5685 = vsub.f32 %v5683, %v5684
        %v5686 = vand.u32 %v5685, 4294901760
        %5687 = vmatpush.msra.mxu0 %v5686
        %v5688 = vand.u32 %v5607, 4294901760
        %v5689 = vsub.f32 %v5607, %v5688
        %v5690 = vand.u32 %v5689, 4294901760
        %v5691 = vsub.f32 %v5689, %v5690
        %v5692 = vand.u32 %v5691, 4294901760
        %5693 = vmatpush.msra.mxu0 %v5692
        %v5694 = vand.u32 %v5616, 4294901760
        %5695 = vmatmul.f32.gmra.mxu0 %v5694
        %v5696 = vpop.f32.mrf.mxu0
        %v5697 = vadd.f32 %v5648, %v5696
        %v5698 = vand.u32 %v5619, 4294901760
        %5699 = vmatmul.f32.gmra.mxu0 %v5698
        %v5700 = vpop.f32.mrf.mxu0
        %v5701 = vadd.f32 %v5656, %v5700
        %5702 = vdwg.mxu0
        %5703 = vmatpush.msra.mxu0 0.0
        %5704 = vmatpush.msra.mxu0 0.0
        %5705 = vmatpush.msra.mxu0 0.0
        %5706 = vmatpush.msra.mxu0 0.0
        %5707 = vmatpush.msra.mxu0 0.0
        %5708 = vmatpush.msra.mxu0 0.0
        %5709 = vmatpush.msra.mxu0 0.0
        %5710 = vmatpush.msra.mxu0 0.0
        %5711 = vmatpush.msra.mxu0 0.0
        %5712 = vmatpush.msra.mxu0 0.0
        %5713 = vmatpush.msra.mxu0 0.0
        %5714 = vmatpush.msra.mxu0 0.0
        %v5715 = vand.u32 %v5610, 4294901760
        %v5716 = vsub.f32 %v5610, %v5715
        %5717 = vmatpush.msra.mxu0 %v5716
        %v5718 = vand.u32 %v5609, 4294901760
        %v5719 = vsub.f32 %v5609, %v5718
        %5720 = vmatpush.msra.mxu0 %v5719
        %v5721 = vand.u32 %v5608, 4294901760
        %v5722 = vsub.f32 %v5608, %v5721
        %5723 = vmatpush.msra.mxu0 %v5722
        %v5724 = vand.u32 %v5607, 4294901760
        %v5725 = vsub.f32 %v5607, %v5724
        %5726 = vmatpush.msra.mxu0 %v5725
        %v5727 = vand.u32 %v5616, 4294901760
        %v5728 = vsub.f32 %v5616, %v5727
        %5729 = vmatmul.f32.gmra.mxu0 %v5728
        %v5730 = vpop.f32.mrf.mxu0
        %v5731 = vadd.f32 %v5697, %v5730
        %v5732 = vand.u32 %v5619, 4294901760
        %v5733 = vsub.f32 %v5619, %v5732
        %5734 = vmatmul.f32.gmra.mxu0 %v5733
        %v5735 = vpop.f32.mrf.mxu0
        %v5736 = vadd.f32 %v5701, %v5735
        %5737 = vdwg.mxu0
        %5738 = vmatpush.msra.mxu0 0.0
        %5739 = vmatpush.msra.mxu0 0.0
        %5740 = vmatpush.msra.mxu0 0.0
        %5741 = vmatpush.msra.mxu0 0.0
        %5742 = vmatpush.msra.mxu0 0.0
        %5743 = vmatpush.msra.mxu0 0.0
        %5744 = vmatpush.msra.mxu0 0.0
        %5745 = vmatpush.msra.mxu0 0.0
        %5746 = vmatpush.msra.mxu0 0.0
        %5747 = vmatpush.msra.mxu0 0.0
        %5748 = vmatpush.msra.mxu0 0.0
        %5749 = vmatpush.msra.mxu0 0.0
        %v5750 = vand.u32 %v5610, 4294901760
        %5751 = vmatpush.msra.mxu0 %v5750
        %v5752 = vand.u32 %v5609, 4294901760
        %5753 = vmatpush.msra.mxu0 %v5752
        %v5754 = vand.u32 %v5608, 4294901760
        %5755 = vmatpush.msra.mxu0 %v5754
        %v5756 = vand.u32 %v5607, 4294901760
        %5757 = vmatpush.msra.mxu0 %v5756
        %v5758 = vand.u32 %v5616, 4294901760
        %v5759 = vsub.f32 %v5616, %v5758
        %v5760 = vand.u32 %v5759, 4294901760
        %5761 = vmatmul.f32.gmra.mxu0 %v5760
        %v5762 = vpop.f32.mrf.mxu0
        %v5763 = vadd.f32 %v5731, %v5762
        %v5764 = vand.u32 %v5619, 4294901760
        %v5765 = vsub.f32 %v5619, %v5764
        %v5766 = vand.u32 %v5765, 4294901760
        %5767 = vmatmul.f32.gmra.mxu0 %v5766
        %v5768 = vpop.f32.mrf.mxu0
        %v5769 = vadd.f32 %v5736, %v5768
        %5770 = vdwg.mxu0
        %5771 = vmatpush.msra.mxu0 0.0
        %5772 = vmatpush.msra.mxu0 0.0
        %5773 = vmatpush.msra.mxu0 0.0
        %5774 = vmatpush.msra.mxu0 0.0
        %5775 = vmatpush.msra.mxu0 0.0
        %5776 = vmatpush.msra.mxu0 0.0
        %5777 = vmatpush.msra.mxu0 0.0
        %5778 = vmatpush.msra.mxu0 0.0
        %5779 = vmatpush.msra.mxu0 0.0
        %5780 = vmatpush.msra.mxu0 0.0
        %5781 = vmatpush.msra.mxu0 0.0
        %5782 = vmatpush.msra.mxu0 0.0
        %v5783 = vand.u32 %v5610, 4294901760
        %v5784 = vsub.f32 %v5610, %v5783
        %v5785 = vand.u32 %v5784, 4294901760
        %5786 = vmatpush.msra.mxu0 %v5785
        %v5787 = vand.u32 %v5609, 4294901760
        %v5788 = vsub.f32 %v5609, %v5787
        %v5789 = vand.u32 %v5788, 4294901760
        %5790 = vmatpush.msra.mxu0 %v5789
        %v5791 = vand.u32 %v5608, 4294901760
        %v5792 = vsub.f32 %v5608, %v5791
        %v5793 = vand.u32 %v5792, 4294901760
        %5794 = vmatpush.msra.mxu0 %v5793
        %v5795 = vand.u32 %v5607, 4294901760
        %v5796 = vsub.f32 %v5607, %v5795
        %v5797 = vand.u32 %v5796, 4294901760
        %5798 = vmatpush.msra.mxu0 %v5797
        %v5799 = vand.u32 %v5616, 4294901760
        %5800 = vmatmul.f32.gmra.mxu0 %v5799
        %v5801 = vpop.f32.mrf.mxu0
        %v5802 = vadd.f32 %v5763, %v5801
        %v5803 = vand.u32 %v5619, 4294901760
        %5804 = vmatmul.f32.gmra.mxu0 %v5803
        %v5805 = vpop.f32.mrf.mxu0
        %v5806 = vadd.f32 %v5769, %v5805
        %5807 = vdwg.mxu0
        %5808 = vmatpush.msra.mxu0 0.0
        %5809 = vmatpush.msra.mxu0 0.0
        %5810 = vmatpush.msra.mxu0 0.0
        %5811 = vmatpush.msra.mxu0 0.0
        %5812 = vmatpush.msra.mxu0 0.0
        %5813 = vmatpush.msra.mxu0 0.0
        %5814 = vmatpush.msra.mxu0 0.0
        %5815 = vmatpush.msra.mxu0 0.0
        %5816 = vmatpush.msra.mxu0 0.0
        %5817 = vmatpush.msra.mxu0 0.0
        %5818 = vmatpush.msra.mxu0 0.0
        %5819 = vmatpush.msra.mxu0 0.0
        %v5820 = vand.u32 %v5610, 4294901760
        %5821 = vmatpush.msra.mxu0 %v5820
        %v5822 = vand.u32 %v5609, 4294901760
        %5823 = vmatpush.msra.mxu0 %v5822
        %v5824 = vand.u32 %v5608, 4294901760
        %5825 = vmatpush.msra.mxu0 %v5824
        %v5826 = vand.u32 %v5607, 4294901760
        %5827 = vmatpush.msra.mxu0 %v5826
        %v5828 = vand.u32 %v5616, 4294901760
        %5829 = vmatmul.f32.gmra.mxu0 %v5828
        %v5830 = vpop.f32.mrf.mxu0
        %v5831 = vadd.f32 %v5802, %v5830
        %v5832 = vand.u32 %v5619, 4294901760
        %5833 = vmatmul.f32.gmra.mxu0 %v5832
        %v5834 = vpop.f32.mrf.mxu0
        %v5835 = vadd.f32 %v5806, %v5834
        %5836 = vdwg.mxu0
        %vm5837 = vcmask 31744
        %v5838 = vsel %vm5837, %v5831, 0.0
        %v5839 = vsel %vm5837, %v5835, 0.0
        %v5840 = vadd.f32 %v5838, %v5839
        %v5841 = vrot.slane %v5840, 4
        %v5842 = vadd.f32 %v5840, %v5841
        %v5843 = vrot.slane %v5842, 2
        %v5844 = vadd.f32 %v5842, %v5843
        %v5845 = vrot.slane %v5844, 1
        %v5846 = vadd.f32 %v5844, %v5845
        %v5847 = vrcp.pop 16.0
        %v5848 = vmul.f32 16.0, %v5847
        %v5849 = vsub.f32 1.0, %v5848
        %v5850 = vmul.f32 %v5847, %v5849
        %v5851 = vadd.f32 %v5847, %v5850
        %vm5852 = vweird.f32 %v5847
        %v5853 = vsel %vm5852, %v5847, %v5851
        %v5854 = vmul.f32 %v5846, %v5853
        %vm5855 = vcmask 24576
        %5856 = vst.msk [vmem:[%s636] sm:$0x1] %vm5855, %v5854
        %s5857 = sand.u32 %s472, 1
        %s5858 = scalar_lea.sflag [#allocation3], %s5857
        %s5859 = sand.u32 %s472, 1
        %s5860 = scalar_lea.vmem [#allocation2], %s5859
        // Predicated region
        $region101: #{tpu_custom_call.1} parent=99 // pred_check
          %p5861 = pneg %p482
        $region102: #{tpu_custom_call.1} parent=99 // pred_check_branch
          %5863 = sbr.rel (%p5861) target = $region104
        $region103: #{tpu_custom_call.1} parent=99 // pred_region
          %5865 = vsyncadd %s5858, 0
          %s5866 = scalar_lea.hbm %s20, %s34
          %s5868 = sshll.u32 %s5860, 4
          %s5869 = int_to_ptr.vmem [resolvable:$true] %s5868
          %s5870 = sshll.u32 %s5866, 4
          %s5871 = int_to_ptr.hbm [resolvable:$true] %s5870
          %5873 = dma.vmem_to_hbm [thread:$0]  %s5869, 16, %s5871, %s5858
        $region104: #{tpu_custom_call.1} parent=99 // pred_fallthru
          _
      $region100: #{tpu_custom_call.1} parent=5 // pred_fallthru
        _
      %p5874 = scmp.le.s32.totalorder 2, %s29
      // Predicated region
      $region105: #{tpu_custom_call.1} parent=5 // pred_check
        %p5875 = pneg %p5874
      $region106: #{tpu_custom_call.1} parent=5 // pred_check_branch
        %5877 = sbr.rel (%p5875) target = $region108
      $region107: #{tpu_custom_call.1} parent=5 // pred_region
        %s5878 = ssub.s32 %s29, 2
        // Predicated region
        $region109: #{tpu_custom_call.1} parent=107 // pred_check
          %p5879 = pneg %p488
        $region110: #{tpu_custom_call.1} parent=107 // pred_check_branch
          %5881 = sbr.rel (%p5879) target = $region112
        $region111: #{tpu_custom_call.1} parent=107 // pred_region
          %s5882 = sand.u32 %s473, 1
          %s5883 = scalar_lea.sflag [#allocation3], %s5882
          %s5884 = sand.u32 %s473, 1
          %s5885 = scalar_lea.vmem [#allocation2], %s5884
          %5887 = dma.done %s5883, 16
        $region112: #{tpu_custom_call.1} parent=107 // pred_fallthru
          _
      $region108: #{tpu_custom_call.1} parent=5 // pred_fallthru
        _
    $region6: #{tpu_custom_call.1} parent=1 // loop_footer
      %s33 = sadd.s32 1, %s29
    $region7: #{tpu_custom_call.1} parent=1 // loop_footer_branch
      %28 = sbr.rel target = $region3
    $region8: #{tpu_custom_call.1} parent=1 // loop_exit
      _
    %5888 = vsyncpa [#allocation3], 1
    %s5889 = scalar_lea.sflag [#allocation3], 1
    %5890 = vsyncpa %s5889, 1

</llo_original>
